<compile_context>
chip_gen: v6e
topology: v6e:2x2x1
jax: 0.10.0
libtpu: 0.0.40
codegen_flags: <defaults>
</compile_context>

<pallas_src>
import jax
import jax.numpy as jnp
from jax import lax
from jax.experimental import pallas as pl
from jax.experimental.pallas import tpu as pltpu

_VMEM_LIMIT = 32 * 1024 * 1024  # safe across v5e/v6e (128 MiB physical) and v7x (64 MiB)


# ---------------------------------------------------------------------------
# Fused kernel: bidirectional GRU recurrence + self-attention + bmm + FC head
# ---------------------------------------------------------------------------
def gru_attn_head_kernel(x_ref, len_ref, wih_ref, bih_ref,
                         whh_f_ref, bhh_f_ref, whh_b_ref, bhh_b_ref,
                         w1f_ref, w1b_ref, w2_ref,
                         wh1_ref, bh1_ref, wh2_ref, bh2_ref,
                         o_ref,
                         gif_ref, gib_ref, outf_ref, outb_ref):
    T, B, E = x_ref.shape
    H = whh_f_ref.shape[0]
    H3 = 3 * H
    A = w2_ref.shape[1]

    lengths = len_ref[...]                                               # (B, 1) int32

    # ---- hoisted input projection: ONE big MXU matmul for both directions ----
    gi = jnp.dot(x_ref[...].reshape(T * B, E), wih_ref[...],
                 preferred_element_type=jnp.float32) + bih_ref[...]      # (T*B, 6H)
    gif_ref[...] = gi[:, :H3].reshape(T, B, H3)
    gib_ref[...] = gi[:, H3:].reshape(T, B, H3)

    whh_f = whh_f_ref[...]
    whh_b = whh_b_ref[...]
    # Hoist bias broadcasts out of the loop (JAX does not CSE broadcast_in_dim).
    bhh_f = jnp.broadcast_to(bhh_f_ref[...], (B, H3))
    bhh_b = jnp.broadcast_to(bhh_b_ref[...], (B, H3))

    def cell(h_prev, gi_t, whh, bhh):
        # PyTorch GRU gate order [r, z, n]; gi_t already contains x@W_ih + b_ih.
        gh = jnp.dot(h_prev, whh, preferred_element_type=jnp.float32) + bhh
        r = jax.nn.sigmoid(gi_t[:, 0:H] + gh[:, 0:H])
        z = jax.nn.sigmoid(gi_t[:, H:2 * H] + gh[:, H:2 * H])
        n = jnp.tanh(gi_t[:, 2 * H:H3] + r * gh[:, 2 * H:H3])
        return n + z * (h_prev - n)                                      # == (1-z)*n + z*h_prev

    def body(t, carry):
        hf, hb = carry
        tr = T - 1 - t
        # forward direction at step t (pack_padded: hidden frozen, output zeroed for t >= len)
        mf = lengths > t                                                 # (B, 1) bool
        hf = jnp.where(mf, cell(hf, gif_ref[t], whh_f, bhh_f), hf)
        outf_ref[t] = jnp.where(mf, hf, 0.0)
        # backward direction at step T-1-t (independent chain, interleaved to hide latency)
        mb = lengths > tr
        hb = jnp.where(mb, cell(hb, gib_ref[tr], whh_b, bhh_b), hb)
        outb_ref[tr] = jnp.where(mb, hb, 0.0)
        return hf, hb

    h0 = jnp.zeros((B, H), jnp.float32)
    lax.fori_loop(0, T, body, (h0, h0), unroll=True)

    # ---- self-attention: per-direction W1 halves avoid materializing a (T*B, 2H) concat ----
    outf = outf_ref[...]                                                 # (T, B, H)
    outb = outb_ref[...]                                                 # (T, B, H)
    hid = jnp.tanh(
        jnp.dot(outf.reshape(T * B, H), w1f_ref[...], preferred_element_type=jnp.float32)
        + jnp.dot(outb.reshape(T * B, H), w1b_ref[...], preferred_element_type=jnp.float32))
    scores = jnp.dot(hid, w2_ref[...],
                     preferred_element_type=jnp.float32).reshape(T, B, A)

    # mask padded steps with a large finite negative, softmax over the time axis
    tt = lax.broadcasted_iota(jnp.int32, (T, B, 1), 0)
    valid = tt < lengths[None, :, :]                                     # (T, B, 1)
    scores = jnp.where(valid, scores, jnp.float32(-1e30))
    scores = scores - jnp.max(scores, axis=0, keepdims=True)
    e = jnp.exp(scores)
    attn = e / jnp.sum(e, axis=0, keepdims=True)                         # (T, B, A)

    # bmm(attn_weights(B,A,T), outputs(B,T,2H)) -> (B, A, 2H), unrolled over the A (=8)
    # outputs as VPU reductions over T; concat order matches PyTorch .view(B, -1).
    parts = []
    for a in range(A):
        w = attn[:, :, a:a + 1]                                          # (T, B, 1)
        parts.append(jnp.sum(w * outf, axis=0))                          # (B, H)  fwd half
        parts.append(jnp.sum(w * outb, axis=0))                          # (B, H)  bwd half
    ctx = jnp.concatenate(parts, axis=-1)                                # (B, 2*A*H)

    # FC head: Linear -> ReLU -> Linear (dropout p=0 -> identity)
    h1 = jnp.maximum(
        jnp.dot(ctx, wh1_ref[...], preferred_element_type=jnp.float32) + bh1_ref[...], 0.0)
    o_ref[...] = jnp.dot(h1, wh2_ref[...], preferred_element_type=jnp.float32) + bh2_ref[...]


# ---------------------------------------------------------------------------
# Wrapper
# ---------------------------------------------------------------------------
def gru_attention_head(x_tbe, lengths, p, *, batch_block=None):
    T, B, E = x_tbe.shape
    H = p['whh_f'].shape[0]
    A = p['w2'].shape[1]
    tb = B if batch_block is None else batch_block

    # fuse fwd/bwd input-projection weights so the kernel does ONE big matmul
    wih = jnp.concatenate([p['wih_f'], p['wih_b']], axis=1)              # (E, 6H)
    bih = jnp.concatenate([p['bih_f'], p['bih_b']], axis=1)              # (1, 6H)
    # split attention W1 into per-direction halves (avoids in-kernel concat)
    w1f = p['w1'][:H, :]                                                 # (H, H)
    w1b = p['w1'][H:, :]                                                 # (H, H)
    len2d = lengths.reshape(B, 1).astype(jnp.int32)

    x_map = lambda b: (0, b, 0)
    b_map = lambda b: (b, 0)
    w_map = lambda b: (0, 0)

    return pl.pallas_call(
        gru_attn_head_kernel,
        out_shape=jax.ShapeDtypeStruct((B, 2), jnp.float32),
        grid_spec=pltpu.PrefetchScalarGridSpec(
            num_scalar_prefetch=0,
            grid=(pl.cdiv(B, tb),),
            in_specs=[
                pl.BlockSpec((T, tb, E), x_map),          # x (time-major)
                pl.BlockSpec((tb, 1), b_map),             # lengths
                pl.BlockSpec((E, 6 * H), w_map),          # wih (fwd | bwd)
                pl.BlockSpec((1, 6 * H), w_map),          # bih (fwd | bwd)
                pl.BlockSpec((H, 3 * H), w_map),          # whh_f
                pl.BlockSpec((1, 3 * H), w_map),          # bhh_f
                pl.BlockSpec((H, 3 * H), w_map),          # whh_b
                pl.BlockSpec((1, 3 * H), w_map),          # bhh_b
                pl.BlockSpec((H, H), w_map),              # w1 fwd half
                pl.BlockSpec((H, H), w_map),              # w1 bwd half
                pl.BlockSpec((H, A), w_map),              # w2
                pl.BlockSpec(p['wh1'].shape, w_map),
                pl.BlockSpec(p['bh1'].shape, w_map),
                pl.BlockSpec(p['wh2'].shape, w_map),
                pl.BlockSpec(p['bh2'].shape, w_map),
            ],
            out_specs=pl.BlockSpec((tb, 2), b_map),
            scratch_shapes=[pltpu.VMEM((T, tb, 3 * H), jnp.float32),     # precomputed gi (fwd)
                            pltpu.VMEM((T, tb, 3 * H), jnp.float32),     # precomputed gi (bwd)
                            pltpu.VMEM((T, tb, H), jnp.float32),         # GRU fwd outputs
                            pltpu.VMEM((T, tb, H), jnp.float32)]),       # GRU bwd outputs
        compiler_params=pltpu.CompilerParams(
            dimension_semantics=("parallel",),
            vmem_limit_bytes=_VMEM_LIMIT),
    )(x_tbe, len2d, wih, bih, p['whh_f'], p['bhh_f'], p['whh_b'], p['bhh_b'],
      w1f, w1b, p['w2'], p['wh1'], p['bh1'], p['wh2'], p['bh2'])


def gru_self_attention_forward(tokens, lengths, embed_vecs, p):
    # TODO(synk): nn.Embedding row gather (data-dependent) kept in plain JAX glue.
    x_tbe = jnp.take(embed_vecs, tokens.T, axis=0).astype(jnp.float32)   # (T, B, E), emb_dropout p=0
    return gru_attention_head(x_tbe, lengths, p)                         # (B, 2)


# ---------------------------------------------------------------------------
# Deterministic parameter init + example run
# ---------------------------------------------------------------------------
def init_params(key, E, H, A):
    ks = jax.random.split(key, 14)
    s = 0.1
    return {
        # GRU weights, stored transposed for right-matmul; gate order [r, z, n]
        'wih_f': s * jax.random.normal(ks[0], (E, 3 * H), jnp.float32),
        'whh_f': s * jax.random.normal(ks[1], (H, 3 * H), jnp.float32),
        'bih_f': s * jax.random.normal(ks[2], (1, 3 * H), jnp.float32),
        'bhh_f': s * jax.random.normal(ks[3], (1, 3 * H), jnp.float32),
        'wih_b': s * jax.random.normal(ks[4], (E, 3 * H), jnp.float32),
        'whh_b': s * jax.random.normal(ks[5], (H, 3 * H), jnp.float32),
        'bih_b': s * jax.random.normal(ks[6], (1, 3 * H), jnp.float32),
        'bhh_b': s * jax.random.normal(ks[7], (1, 3 * H), jnp.float32),
        # SelfAttention: W1 (2H -> H), W2 (H -> A), no biases
        'w1': s * jax.random.normal(ks[8], (2 * H, H), jnp.float32),
        'w2': s * jax.random.normal(ks[9], (H, A), jnp.float32),
        # Head: Linear(2*A*H -> A*H), ReLU, Linear(A*H -> 2)
        'wh1': s * jax.random.normal(ks[10], (2 * A * H, A * H), jnp.float32),
        'bh1': s * jax.random.normal(ks[11], (1, A * H), jnp.float32),
        'wh2': s * jax.random.normal(ks[12], (A * H, 2), jnp.float32),
        'bh2': s * jax.random.normal(ks[13], (1, 2), jnp.float32),
    }


if __name__ == "__main__":
    key = jax.random.PRNGKey(0)
    B, T, V, E, H, A = 2, 8, 16, 32, 32, 8   # batch, seq, vocab, embed, hidden, attn outputs

    k_emb, k_tok, k_par = jax.random.split(key, 3)
    embed_vecs = jax.random.normal(k_emb, (V, E), jnp.float32)           # pretrained embedding table
    tokens = jax.random.randint(k_tok, (B, T), 0, V, dtype=jnp.int32)
    # max(lengths) == T so pad_packed_sequence seq length matches T exactly
    lengths = jnp.array([T, 5], dtype=jnp.int32)

    params = init_params(k_par, E, H, A)

    logits = gru_self_attention_forward(tokens, lengths, embed_vecs, params)
    jax.block_until_ready(logits)
    assert logits.shape == (B, 2) and logits.dtype == jnp.float32
    print("KERNEL_OK")
</pallas_src>

<mosaic_0001>
module attributes {stable_mosaic.version = 11 : i64} {
  func.func @gru_attn_head_kernel(%arg0: i32, %arg1: memref<8x2x32xf32, #tpu.memory_space<vmem>>, %arg2: memref<2x1xi32, #tpu.memory_space<vmem>>, %arg3: memref<32x192xf32, #tpu.memory_space<vmem>>, %arg4: memref<1x192xf32, #tpu.memory_space<vmem>>, %arg5: memref<32x96xf32, #tpu.memory_space<vmem>>, %arg6: memref<1x96xf32, #tpu.memory_space<vmem>>, %arg7: memref<32x96xf32, #tpu.memory_space<vmem>>, %arg8: memref<1x96xf32, #tpu.memory_space<vmem>>, %arg9: memref<32x32xf32, #tpu.memory_space<vmem>>, %arg10: memref<32x32xf32, #tpu.memory_space<vmem>>, %arg11: memref<32x8xf32, #tpu.memory_space<vmem>>, %arg12: memref<512x256xf32, #tpu.memory_space<vmem>>, %arg13: memref<1x256xf32, #tpu.memory_space<vmem>>, %arg14: memref<256x2xf32, #tpu.memory_space<vmem>>, %arg15: memref<1x2xf32, #tpu.memory_space<vmem>>, %arg16: memref<2x2xf32, #tpu.memory_space<vmem>>, %arg17: memref<8x2x96xf32, #tpu.memory_space<vmem>>, %arg18: memref<8x2x96xf32, #tpu.memory_space<vmem>>, %arg19: memref<8x2x32xf32, #tpu.memory_space<vmem>>, %arg20: memref<8x2x32xf32, #tpu.memory_space<vmem>>) attributes {dimension_semantics = [#tpu.dimension_semantics<parallel>], iteration_bounds = array<i64: 1>, scalar_prefetch = 0 : i64, scratch_operands = 4 : i64, tpu.core_type = #tpu.core_type<tc>, window_params = [{transform_indices = @transform_0, window_bounds = array<i64: 8, 2, 32>}, {transform_indices = @transform_1, window_bounds = array<i64: 2, 1>}, {pipeline_mode = #tpu.pipeline_mode<synchronous>, transform_indices = @transform_2, window_bounds = array<i64: 32, 192>}, {pipeline_mode = #tpu.pipeline_mode<synchronous>, transform_indices = @transform_3, window_bounds = array<i64: 1, 192>}, {pipeline_mode = #tpu.pipeline_mode<synchronous>, transform_indices = @transform_4, window_bounds = array<i64: 32, 96>}, {pipeline_mode = #tpu.pipeline_mode<synchronous>, transform_indices = @transform_5, window_bounds = array<i64: 1, 96>}, {pipeline_mode = #tpu.pipeline_mode<synchronous>, transform_indices = @transform_6, window_bounds = array<i64: 32, 96>}, {pipeline_mode = #tpu.pipeline_mode<synchronous>, transform_indices = @transform_7, window_bounds = array<i64: 1, 96>}, {pipeline_mode = #tpu.pipeline_mode<synchronous>, transform_indices = @transform_8, window_bounds = array<i64: 32, 32>}, {pipeline_mode = #tpu.pipeline_mode<synchronous>, transform_indices = @transform_9, window_bounds = array<i64: 32, 32>}, {pipeline_mode = #tpu.pipeline_mode<synchronous>, transform_indices = @transform_10, window_bounds = array<i64: 32, 8>}, {pipeline_mode = #tpu.pipeline_mode<synchronous>, transform_indices = @transform_11, window_bounds = array<i64: 512, 256>}, {pipeline_mode = #tpu.pipeline_mode<synchronous>, transform_indices = @transform_12, window_bounds = array<i64: 1, 256>}, {pipeline_mode = #tpu.pipeline_mode<synchronous>, transform_indices = @transform_13, window_bounds = array<i64: 256, 2>}, {pipeline_mode = #tpu.pipeline_mode<synchronous>, transform_indices = @transform_14, window_bounds = array<i64: 1, 2>}, {transform_indices = @transform_15, window_bounds = array<i64: 2, 2>}]} {
    %c0 = arith.constant 0 : index
    %c0_0 = arith.constant 0 : index
    %0 = vector.load %arg2[%c0, %c0_0] : memref<2x1xi32, #tpu.memory_space<vmem>>, vector<2x1xi32>
    %c0_1 = arith.constant 0 : index
    %c0_2 = arith.constant 0 : index
    %c0_3 = arith.constant 0 : index
    %1 = vector.load %arg1[%c0_1, %c0_2, %c0_3] : memref<8x2x32xf32, #tpu.memory_space<vmem>>, vector<8x2x32xf32>
    %2 = vector.shape_cast %1 : vector<8x2x32xf32> to vector<16x32xf32>
    %c0_4 = arith.constant 0 : index
    %c0_5 = arith.constant 0 : index
    %3 = vector.load %arg3[%c0_4, %c0_5] : memref<32x192xf32, #tpu.memory_space<vmem>>, vector<32x192xf32>
    %cst = arith.constant dense<0.000000e+00> : vector<16x192xf32>
    %4 = tpu.matmul %2, %3, %cst {dimension_numbers = #tpu.dot_dimension_numbers<[1], [0], [0], [1], [0, 0, 1, 1], [], []>} : vector<16x32xf32>, vector<32x192xf32>, vector<16x192xf32> -> vector<16x192xf32>
    %c0_6 = arith.constant 0 : index
    %c0_7 = arith.constant 0 : index
    %5 = vector.load %arg4[%c0_6, %c0_7] : memref<1x192xf32, #tpu.memory_space<vmem>>, vector<1x192xf32>
    %6 = vector.broadcast %5 : vector<1x192xf32> to vector<16x192xf32>
    %7 = arith.addf %4, %6 : vector<16x192xf32>
    %8 = vector.extract_strided_slice %7 {offsets = [0, 0], sizes = [16, 96], strides = [1, 1]} : vector<16x192xf32> to vector<16x96xf32>
    %9 = vector.shape_cast %8 : vector<16x96xf32> to vector<8x2x96xf32>
    %c0_8 = arith.constant 0 : index
    %c0_9 = arith.constant 0 : index
    %c0_10 = arith.constant 0 : index
    %10 = vector.load %arg17[%c0_8, %c0_9, %c0_10] : memref<8x2x96xf32, #tpu.memory_space<vmem>>, vector<8x2x96xf32>
    tpu.vector_store %arg17[%c0_8, %c0_9, %c0_10], %9 {strides = array<i32>} : memref<8x2x96xf32, #tpu.memory_space<vmem>>, vector<8x2x96xf32>,
    %11 = vector.extract_strided_slice %7 {offsets = [0, 96], sizes = [16, 96], strides = [1, 1]} : vector<16x192xf32> to vector<16x96xf32>
    %12 = vector.shape_cast %11 : vector<16x96xf32> to vector<8x2x96xf32>
    %c0_11 = arith.constant 0 : index
    %c0_12 = arith.constant 0 : index
    %c0_13 = arith.constant 0 : index
    %13 = vector.load %arg18[%c0_11, %c0_12, %c0_13] : memref<8x2x96xf32, #tpu.memory_space<vmem>>, vector<8x2x96xf32>
    tpu.vector_store %arg18[%c0_11, %c0_12, %c0_13], %12 {strides = array<i32>} : memref<8x2x96xf32, #tpu.memory_space<vmem>>, vector<8x2x96xf32>,
    %c0_14 = arith.constant 0 : index
    %c0_15 = arith.constant 0 : index
    %14 = vector.load %arg5[%c0_14, %c0_15] : memref<32x96xf32, #tpu.memory_space<vmem>>, vector<32x96xf32>
    %c0_16 = arith.constant 0 : index
    %c0_17 = arith.constant 0 : index
    %15 = vector.load %arg7[%c0_16, %c0_17] : memref<32x96xf32, #tpu.memory_space<vmem>>, vector<32x96xf32>
    %c0_18 = arith.constant 0 : index
    %c0_19 = arith.constant 0 : index
    %16 = vector.load %arg6[%c0_18, %c0_19] : memref<1x96xf32, #tpu.memory_space<vmem>>, vector<1x96xf32>
    %17 = vector.shape_cast %16 : vector<1x96xf32> to vector<1x96xf32>
    %18 = vector.broadcast %17 : vector<1x96xf32> to vector<2x96xf32>
    %c0_20 = arith.constant 0 : index
    %c0_21 = arith.constant 0 : index
    %19 = vector.load %arg8[%c0_20, %c0_21] : memref<1x96xf32, #tpu.memory_space<vmem>>, vector<1x96xf32>
    %20 = vector.shape_cast %19 : vector<1x96xf32> to vector<1x96xf32>
    %21 = vector.broadcast %20 : vector<1x96xf32> to vector<2x96xf32>
    %cst_22 = arith.constant 0.000000e+00 : f32
    %22 = vector.broadcast %cst_22 : f32 to vector<2x32xf32>
    %c0_i32 = arith.constant 0 : i32
    %c7_i32 = arith.constant 7 : i32
    %23 = arith.subi %c7_i32, %c0_i32 : i32
    %24 = vector.broadcast %c0_i32 : i32 to vector<2x1xi32>
    %25 = arith.cmpi sgt, %0, %24 : vector<2x1xi32>
    %26 = arith.index_cast %c0_i32 : i32 to index
    %c0_23 = arith.constant 0 : index
    %c0_24 = arith.constant 0 : index
    %27 = vector.load %arg17[%26, %c0_23, %c0_24] : memref<8x2x96xf32, #tpu.memory_space<vmem>>, vector<1x2x96xf32>
    %28 = vector.shape_cast %27 : vector<1x2x96xf32> to vector<2x96xf32>
    %cst_25 = arith.constant dense<0.000000e+00> : vector<2x96xf32>
    %29 = tpu.matmul %22, %14, %cst_25 {dimension_numbers = #tpu.dot_dimension_numbers<[1], [0], [0], [1], [0, 0, 1, 1], [], []>} : vector<2x32xf32>, vector<32x96xf32>, vector<2x96xf32> -> vector<2x96xf32>
    %30 = arith.addf %29, %18 : vector<2x96xf32>
    %31 = vector.extract_strided_slice %28 {offsets = [0, 0], sizes = [2, 32], strides = [1, 1]} : vector<2x96xf32> to vector<2x32xf32>
    %32 = vector.extract_strided_slice %30 {offsets = [0, 0], sizes = [2, 32], strides = [1, 1]} : vector<2x96xf32> to vector<2x32xf32>
    %33 = arith.addf %31, %32 : vector<2x32xf32>
    %34 = arith.negf %33 : vector<2x32xf32>
    %35 = math.exp %34 : vector<2x32xf32>
    %cst_26 = arith.constant 1.000000e+00 : f32
    %36 = vector.broadcast %cst_26 : f32 to vector<2x32xf32>
    %37 = arith.addf %36, %35 : vector<2x32xf32>
    %38 = arith.divf %36, %37 : vector<2x32xf32>
    %39 = vector.extract_strided_slice %28 {offsets = [0, 32], sizes = [2, 32], strides = [1, 1]} : vector<2x96xf32> to vector<2x32xf32>
    %40 = vector.extract_strided_slice %30 {offsets = [0, 32], sizes = [2, 32], strides = [1, 1]} : vector<2x96xf32> to vector<2x32xf32>
    %41 = arith.addf %39, %40 : vector<2x32xf32>
    %42 = arith.negf %41 : vector<2x32xf32>
    %43 = math.exp %42 : vector<2x32xf32>
    %cst_27 = arith.constant 1.000000e+00 : f32
    %44 = vector.broadcast %cst_27 : f32 to vector<2x32xf32>
    %45 = arith.addf %44, %43 : vector<2x32xf32>
    %46 = arith.divf %44, %45 : vector<2x32xf32>
    %47 = vector.extract_strided_slice %28 {offsets = [0, 64], sizes = [2, 32], strides = [1, 1]} : vector<2x96xf32> to vector<2x32xf32>
    %48 = vector.extract_strided_slice %30 {offsets = [0, 64], sizes = [2, 32], strides = [1, 1]} : vector<2x96xf32> to vector<2x32xf32>
    %49 = arith.mulf %38, %48 : vector<2x32xf32>
    %50 = arith.addf %47, %49 : vector<2x32xf32>
    %51 = math.tanh %50 : vector<2x32xf32>
    %52 = arith.subf %22, %51 : vector<2x32xf32>
    %53 = arith.mulf %46, %52 : vector<2x32xf32>
    %54 = arith.addf %51, %53 : vector<2x32xf32>
    %55 = vector.shape_cast %25 : vector<2x1xi1> to vector<2x1xi1>
    %56 = vector.broadcast %55 : vector<2x1xi1> to vector<2x32xi1>
    %57 = arith.select %56, %54, %22 : vector<2x32xi1>, vector<2x32xf32>
    %cst_28 = arith.constant 0.000000e+00 : f32
    %58 = vector.shape_cast %25 : vector<2x1xi1> to vector<2x1xi1>
    %59 = vector.broadcast %58 : vector<2x1xi1> to vector<2x32xi1>
    %60 = vector.broadcast %cst_28 : f32 to vector<2x32xf32>
    %61 = arith.select %59, %57, %60 : vector<2x32xi1>, vector<2x32xf32>
    %62 = arith.index_cast %c0_i32 : i32 to index
    %c0_29 = arith.constant 0 : index
    %c0_30 = arith.constant 0 : index
    %63 = vector.load %arg19[%62, %c0_29, %c0_30] : memref<8x2x32xf32, #tpu.memory_space<vmem>>, vector<1x2x32xf32>
    %64 = vector.shape_cast %63 : vector<1x2x32xf32> to vector<2x32xf32>
    %65 = vector.shape_cast %61 : vector<2x32xf32> to vector<1x2x32xf32>
    tpu.vector_store %arg19[%62, %c0_29, %c0_30], %65 {strides = array<i32>} : memref<8x2x32xf32, #tpu.memory_space<vmem>>, vector<1x2x32xf32>,
    %66 = vector.broadcast %23 : i32 to vector<2x1xi32>
    %67 = arith.cmpi sgt, %0, %66 : vector<2x1xi32>
    %68 = arith.index_cast %23 : i32 to index
    %c0_31 = arith.constant 0 : index
    %c0_32 = arith.constant 0 : index
    %69 = vector.load %arg18[%68, %c0_31, %c0_32] : memref<8x2x96xf32, #tpu.memory_space<vmem>>, vector<1x2x96xf32>
    %70 = vector.shape_cast %69 : vector<1x2x96xf32> to vector<2x96xf32>
    %cst_33 = arith.constant dense<0.000000e+00> : vector<2x96xf32>
    %71 = tpu.matmul %22, %15, %cst_33 {dimension_numbers = #tpu.dot_dimension_numbers<[1], [0], [0], [1], [0, 0, 1, 1], [], []>} : vector<2x32xf32>, vector<32x96xf32>, vector<2x96xf32> -> vector<2x96xf32>
    %72 = arith.addf %71, %21 : vector<2x96xf32>
    %73 = vector.extract_strided_slice %70 {offsets = [0, 0], sizes = [2, 32], strides = [1, 1]} : vector<2x96xf32> to vector<2x32xf32>
    %74 = vector.extract_strided_slice %72 {offsets = [0, 0], sizes = [2, 32], strides = [1, 1]} : vector<2x96xf32> to vector<2x32xf32>
    %75 = arith.addf %73, %74 : vector<2x32xf32>
    %76 = arith.negf %75 : vector<2x32xf32>
    %77 = math.exp %76 : vector<2x32xf32>
    %cst_34 = arith.constant 1.000000e+00 : f32
    %78 = vector.broadcast %cst_34 : f32 to vector<2x32xf32>
    %79 = arith.addf %78, %77 : vector<2x32xf32>
    %80 = arith.divf %78, %79 : vector<2x32xf32>
    %81 = vector.extract_strided_slice %70 {offsets = [0, 32], sizes = [2, 32], strides = [1, 1]} : vector<2x96xf32> to vector<2x32xf32>
    %82 = vector.extract_strided_slice %72 {offsets = [0, 32], sizes = [2, 32], strides = [1, 1]} : vector<2x96xf32> to vector<2x32xf32>
    %83 = arith.addf %81, %82 : vector<2x32xf32>
    %84 = arith.negf %83 : vector<2x32xf32>
    %85 = math.exp %84 : vector<2x32xf32>
    %cst_35 = arith.constant 1.000000e+00 : f32
    %86 = vector.broadcast %cst_35 : f32 to vector<2x32xf32>
    %87 = arith.addf %86, %85 : vector<2x32xf32>
    %88 = arith.divf %86, %87 : vector<2x32xf32>
    %89 = vector.extract_strided_slice %70 {offsets = [0, 64], sizes = [2, 32], strides = [1, 1]} : vector<2x96xf32> to vector<2x32xf32>
    %90 = vector.extract_strided_slice %72 {offsets = [0, 64], sizes = [2, 32], strides = [1, 1]} : vector<2x96xf32> to vector<2x32xf32>
    %91 = arith.mulf %80, %90 : vector<2x32xf32>
    %92 = arith.addf %89, %91 : vector<2x32xf32>
    %93 = math.tanh %92 : vector<2x32xf32>
    %94 = arith.subf %22, %93 : vector<2x32xf32>
    %95 = arith.mulf %88, %94 : vector<2x32xf32>
    %96 = arith.addf %93, %95 : vector<2x32xf32>
    %97 = vector.shape_cast %67 : vector<2x1xi1> to vector<2x1xi1>
    %98 = vector.broadcast %97 : vector<2x1xi1> to vector<2x32xi1>
    %99 = arith.select %98, %96, %22 : vector<2x32xi1>, vector<2x32xf32>
    %cst_36 = arith.constant 0.000000e+00 : f32
    %100 = vector.shape_cast %67 : vector<2x1xi1> to vector<2x1xi1>
    %101 = vector.broadcast %100 : vector<2x1xi1> to vector<2x32xi1>
    %102 = vector.broadcast %cst_36 : f32 to vector<2x32xf32>
    %103 = arith.select %101, %99, %102 : vector<2x32xi1>, vector<2x32xf32>
    %104 = arith.index_cast %23 : i32 to index
    %c0_37 = arith.constant 0 : index
    %c0_38 = arith.constant 0 : index
    %105 = vector.load %arg20[%104, %c0_37, %c0_38] : memref<8x2x32xf32, #tpu.memory_space<vmem>>, vector<1x2x32xf32>
    %106 = vector.shape_cast %105 : vector<1x2x32xf32> to vector<2x32xf32>
    %107 = vector.shape_cast %103 : vector<2x32xf32> to vector<1x2x32xf32>
    tpu.vector_store %arg20[%104, %c0_37, %c0_38], %107 {strides = array<i32>} : memref<8x2x32xf32, #tpu.memory_space<vmem>>, vector<1x2x32xf32>,
    %c1_i32 = arith.constant 1 : i32
    %c7_i32_39 = arith.constant 7 : i32
    %108 = arith.subi %c7_i32_39, %c1_i32 : i32
    %109 = vector.broadcast %c1_i32 : i32 to vector<2x1xi32>
    %110 = arith.cmpi sgt, %0, %109 : vector<2x1xi32>
    %111 = arith.index_cast %c1_i32 : i32 to index
    %c0_40 = arith.constant 0 : index
    %c0_41 = arith.constant 0 : index
    %112 = vector.load %arg17[%111, %c0_40, %c0_41] : memref<8x2x96xf32, #tpu.memory_space<vmem>>, vector<1x2x96xf32>
    %113 = vector.shape_cast %112 : vector<1x2x96xf32> to vector<2x96xf32>
    %cst_42 = arith.constant dense<0.000000e+00> : vector<2x96xf32>
    %114 = tpu.matmul %57, %14, %cst_42 {dimension_numbers = #tpu.dot_dimension_numbers<[1], [0], [0], [1], [0, 0, 1, 1], [], []>} : vector<2x32xf32>, vector<32x96xf32>, vector<2x96xf32> -> vector<2x96xf32>
    %115 = arith.addf %114, %18 : vector<2x96xf32>
    %116 = vector.extract_strided_slice %113 {offsets = [0, 0], sizes = [2, 32], strides = [1, 1]} : vector<2x96xf32> to vector<2x32xf32>
    %117 = vector.extract_strided_slice %115 {offsets = [0, 0], sizes = [2, 32], strides = [1, 1]} : vector<2x96xf32> to vector<2x32xf32>
    %118 = arith.addf %116, %117 : vector<2x32xf32>
    %119 = arith.negf %118 : vector<2x32xf32>
    %120 = math.exp %119 : vector<2x32xf32>
    %cst_43 = arith.constant 1.000000e+00 : f32
    %121 = vector.broadcast %cst_43 : f32 to vector<2x32xf32>
    %122 = arith.addf %121, %120 : vector<2x32xf32>
    %123 = arith.divf %121, %122 : vector<2x32xf32>
    %124 = vector.extract_strided_slice %113 {offsets = [0, 32], sizes = [2, 32], strides = [1, 1]} : vector<2x96xf32> to vector<2x32xf32>
    %125 = vector.extract_strided_slice %115 {offsets = [0, 32], sizes = [2, 32], strides = [1, 1]} : vector<2x96xf32> to vector<2x32xf32>
    %126 = arith.addf %124, %125 : vector<2x32xf32>
    %127 = arith.negf %126 : vector<2x32xf32>
    %128 = math.exp %127 : vector<2x32xf32>
    %cst_44 = arith.constant 1.000000e+00 : f32
    %129 = vector.broadcast %cst_44 : f32 to vector<2x32xf32>
    %130 = arith.addf %129, %128 : vector<2x32xf32>
    %131 = arith.divf %129, %130 : vector<2x32xf32>
    %132 = vector.extract_strided_slice %113 {offsets = [0, 64], sizes = [2, 32], strides = [1, 1]} : vector<2x96xf32> to vector<2x32xf32>
    %133 = vector.extract_strided_slice %115 {offsets = [0, 64], sizes = [2, 32], strides = [1, 1]} : vector<2x96xf32> to vector<2x32xf32>
    %134 = arith.mulf %123, %133 : vector<2x32xf32>
    %135 = arith.addf %132, %134 : vector<2x32xf32>
    %136 = math.tanh %135 : vector<2x32xf32>
    %137 = arith.subf %57, %136 : vector<2x32xf32>
    %138 = arith.mulf %131, %137 : vector<2x32xf32>
    %139 = arith.addf %136, %138 : vector<2x32xf32>
    %140 = vector.shape_cast %110 : vector<2x1xi1> to vector<2x1xi1>
    %141 = vector.broadcast %140 : vector<2x1xi1> to vector<2x32xi1>
    %142 = arith.select %141, %139, %57 : vector<2x32xi1>, vector<2x32xf32>
    %cst_45 = arith.constant 0.000000e+00 : f32
    %143 = vector.shape_cast %110 : vector<2x1xi1> to vector<2x1xi1>
    %144 = vector.broadcast %143 : vector<2x1xi1> to vector<2x32xi1>
    %145 = vector.broadcast %cst_45 : f32 to vector<2x32xf32>
    %146 = arith.select %144, %142, %145 : vector<2x32xi1>, vector<2x32xf32>
    %147 = arith.index_cast %c1_i32 : i32 to index
    %c0_46 = arith.constant 0 : index
    %c0_47 = arith.constant 0 : index
    %148 = vector.load %arg19[%147, %c0_46, %c0_47] : memref<8x2x32xf32, #tpu.memory_space<vmem>>, vector<1x2x32xf32>
    %149 = vector.shape_cast %148 : vector<1x2x32xf32> to vector<2x32xf32>
    %150 = vector.shape_cast %146 : vector<2x32xf32> to vector<1x2x32xf32>
    tpu.vector_store %arg19[%147, %c0_46, %c0_47], %150 {strides = array<i32>} : memref<8x2x32xf32, #tpu.memory_space<vmem>>, vector<1x2x32xf32>,
    %151 = vector.broadcast %108 : i32 to vector<2x1xi32>
    %152 = arith.cmpi sgt, %0, %151 : vector<2x1xi32>
    %153 = arith.index_cast %108 : i32 to index
    %c0_48 = arith.constant 0 : index
    %c0_49 = arith.constant 0 : index
    %154 = vector.load %arg18[%153, %c0_48, %c0_49] : memref<8x2x96xf32, #tpu.memory_space<vmem>>, vector<1x2x96xf32>
    %155 = vector.shape_cast %154 : vector<1x2x96xf32> to vector<2x96xf32>
    %cst_50 = arith.constant dense<0.000000e+00> : vector<2x96xf32>
    %156 = tpu.matmul %99, %15, %cst_50 {dimension_numbers = #tpu.dot_dimension_numbers<[1], [0], [0], [1], [0, 0, 1, 1], [], []>} : vector<2x32xf32>, vector<32x96xf32>, vector<2x96xf32> -> vector<2x96xf32>
    %157 = arith.addf %156, %21 : vector<2x96xf32>
    %158 = vector.extract_strided_slice %155 {offsets = [0, 0], sizes = [2, 32], strides = [1, 1]} : vector<2x96xf32> to vector<2x32xf32>
    %159 = vector.extract_strided_slice %157 {offsets = [0, 0], sizes = [2, 32], strides = [1, 1]} : vector<2x96xf32> to vector<2x32xf32>
    %160 = arith.addf %158, %159 : vector<2x32xf32>
    %161 = arith.negf %160 : vector<2x32xf32>
    %162 = math.exp %161 : vector<2x32xf32>
    %cst_51 = arith.constant 1.000000e+00 : f32
    %163 = vector.broadcast %cst_51 : f32 to vector<2x32xf32>
    %164 = arith.addf %163, %162 : vector<2x32xf32>
    %165 = arith.divf %163, %164 : vector<2x32xf32>
    %166 = vector.extract_strided_slice %155 {offsets = [0, 32], sizes = [2, 32], strides = [1, 1]} : vector<2x96xf32> to vector<2x32xf32>
    %167 = vector.extract_strided_slice %157 {offsets = [0, 32], sizes = [2, 32], strides = [1, 1]} : vector<2x96xf32> to vector<2x32xf32>
    %168 = arith.addf %166, %167 : vector<2x32xf32>
    %169 = arith.negf %168 : vector<2x32xf32>
    %170 = math.exp %169 : vector<2x32xf32>
    %cst_52 = arith.constant 1.000000e+00 : f32
    %171 = vector.broadcast %cst_52 : f32 to vector<2x32xf32>
    %172 = arith.addf %171, %170 : vector<2x32xf32>
    %173 = arith.divf %171, %172 : vector<2x32xf32>
    %174 = vector.extract_strided_slice %155 {offsets = [0, 64], sizes = [2, 32], strides = [1, 1]} : vector<2x96xf32> to vector<2x32xf32>
    %175 = vector.extract_strided_slice %157 {offsets = [0, 64], sizes = [2, 32], strides = [1, 1]} : vector<2x96xf32> to vector<2x32xf32>
    %176 = arith.mulf %165, %175 : vector<2x32xf32>
    %177 = arith.addf %174, %176 : vector<2x32xf32>
    %178 = math.tanh %177 : vector<2x32xf32>
    %179 = arith.subf %99, %178 : vector<2x32xf32>
    %180 = arith.mulf %173, %179 : vector<2x32xf32>
    %181 = arith.addf %178, %180 : vector<2x32xf32>
    %182 = vector.shape_cast %152 : vector<2x1xi1> to vector<2x1xi1>
    %183 = vector.broadcast %182 : vector<2x1xi1> to vector<2x32xi1>
    %184 = arith.select %183, %181, %99 : vector<2x32xi1>, vector<2x32xf32>
    %cst_53 = arith.constant 0.000000e+00 : f32
    %185 = vector.shape_cast %152 : vector<2x1xi1> to vector<2x1xi1>
    %186 = vector.broadcast %185 : vector<2x1xi1> to vector<2x32xi1>
    %187 = vector.broadcast %cst_53 : f32 to vector<2x32xf32>
    %188 = arith.select %186, %184, %187 : vector<2x32xi1>, vector<2x32xf32>
    %189 = arith.index_cast %108 : i32 to index
    %c0_54 = arith.constant 0 : index
    %c0_55 = arith.constant 0 : index
    %190 = vector.load %arg20[%189, %c0_54, %c0_55] : memref<8x2x32xf32, #tpu.memory_space<vmem>>, vector<1x2x32xf32>
    %191 = vector.shape_cast %190 : vector<1x2x32xf32> to vector<2x32xf32>
    %192 = vector.shape_cast %188 : vector<2x32xf32> to vector<1x2x32xf32>
    tpu.vector_store %arg20[%189, %c0_54, %c0_55], %192 {strides = array<i32>} : memref<8x2x32xf32, #tpu.memory_space<vmem>>, vector<1x2x32xf32>,
    %c2_i32 = arith.constant 2 : i32
    %c7_i32_56 = arith.constant 7 : i32
    %193 = arith.subi %c7_i32_56, %c2_i32 : i32
    %194 = vector.broadcast %c2_i32 : i32 to vector<2x1xi32>
    %195 = arith.cmpi sgt, %0, %194 : vector<2x1xi32>
    %196 = arith.index_cast %c2_i32 : i32 to index
    %c0_57 = arith.constant 0 : index
    %c0_58 = arith.constant 0 : index
    %197 = vector.load %arg17[%196, %c0_57, %c0_58] : memref<8x2x96xf32, #tpu.memory_space<vmem>>, vector<1x2x96xf32>
    %198 = vector.shape_cast %197 : vector<1x2x96xf32> to vector<2x96xf32>
    %cst_59 = arith.constant dense<0.000000e+00> : vector<2x96xf32>
    %199 = tpu.matmul %142, %14, %cst_59 {dimension_numbers = #tpu.dot_dimension_numbers<[1], [0], [0], [1], [0, 0, 1, 1], [], []>} : vector<2x32xf32>, vector<32x96xf32>, vector<2x96xf32> -> vector<2x96xf32>
    %200 = arith.addf %199, %18 : vector<2x96xf32>
    %201 = vector.extract_strided_slice %198 {offsets = [0, 0], sizes = [2, 32], strides = [1, 1]} : vector<2x96xf32> to vector<2x32xf32>
    %202 = vector.extract_strided_slice %200 {offsets = [0, 0], sizes = [2, 32], strides = [1, 1]} : vector<2x96xf32> to vector<2x32xf32>
    %203 = arith.addf %201, %202 : vector<2x32xf32>
    %204 = arith.negf %203 : vector<2x32xf32>
    %205 = math.exp %204 : vector<2x32xf32>
    %cst_60 = arith.constant 1.000000e+00 : f32
    %206 = vector.broadcast %cst_60 : f32 to vector<2x32xf32>
    %207 = arith.addf %206, %205 : vector<2x32xf32>
    %208 = arith.divf %206, %207 : vector<2x32xf32>
    %209 = vector.extract_strided_slice %198 {offsets = [0, 32], sizes = [2, 32], strides = [1, 1]} : vector<2x96xf32> to vector<2x32xf32>
    %210 = vector.extract_strided_slice %200 {offsets = [0, 32], sizes = [2, 32], strides = [1, 1]} : vector<2x96xf32> to vector<2x32xf32>
    %211 = arith.addf %209, %210 : vector<2x32xf32>
    %212 = arith.negf %211 : vector<2x32xf32>
    %213 = math.exp %212 : vector<2x32xf32>
    %cst_61 = arith.constant 1.000000e+00 : f32
    %214 = vector.broadcast %cst_61 : f32 to vector<2x32xf32>
    %215 = arith.addf %214, %213 : vector<2x32xf32>
    %216 = arith.divf %214, %215 : vector<2x32xf32>
    %217 = vector.extract_strided_slice %198 {offsets = [0, 64], sizes = [2, 32], strides = [1, 1]} : vector<2x96xf32> to vector<2x32xf32>
    %218 = vector.extract_strided_slice %200 {offsets = [0, 64], sizes = [2, 32], strides = [1, 1]} : vector<2x96xf32> to vector<2x32xf32>
    %219 = arith.mulf %208, %218 : vector<2x32xf32>
    %220 = arith.addf %217, %219 : vector<2x32xf32>
    %221 = math.tanh %220 : vector<2x32xf32>
    %222 = arith.subf %142, %221 : vector<2x32xf32>
    %223 = arith.mulf %216, %222 : vector<2x32xf32>
    %224 = arith.addf %221, %223 : vector<2x32xf32>
    %225 = vector.shape_cast %195 : vector<2x1xi1> to vector<2x1xi1>
    %226 = vector.broadcast %225 : vector<2x1xi1> to vector<2x32xi1>
    %227 = arith.select %226, %224, %142 : vector<2x32xi1>, vector<2x32xf32>
    %cst_62 = arith.constant 0.000000e+00 : f32
    %228 = vector.shape_cast %195 : vector<2x1xi1> to vector<2x1xi1>
    %229 = vector.broadcast %228 : vector<2x1xi1> to vector<2x32xi1>
    %230 = vector.broadcast %cst_62 : f32 to vector<2x32xf32>
    %231 = arith.select %229, %227, %230 : vector<2x32xi1>, vector<2x32xf32>
    %232 = arith.index_cast %c2_i32 : i32 to index
    %c0_63 = arith.constant 0 : index
    %c0_64 = arith.constant 0 : index
    %233 = vector.load %arg19[%232, %c0_63, %c0_64] : memref<8x2x32xf32, #tpu.memory_space<vmem>>, vector<1x2x32xf32>
    %234 = vector.shape_cast %233 : vector<1x2x32xf32> to vector<2x32xf32>
    %235 = vector.shape_cast %231 : vector<2x32xf32> to vector<1x2x32xf32>
    tpu.vector_store %arg19[%232, %c0_63, %c0_64], %235 {strides = array<i32>} : memref<8x2x32xf32, #tpu.memory_space<vmem>>, vector<1x2x32xf32>,
    %236 = vector.broadcast %193 : i32 to vector<2x1xi32>
    %237 = arith.cmpi sgt, %0, %236 : vector<2x1xi32>
    %238 = arith.index_cast %193 : i32 to index
    %c0_65 = arith.constant 0 : index
    %c0_66 = arith.constant 0 : index
    %239 = vector.load %arg18[%238, %c0_65, %c0_66] : memref<8x2x96xf32, #tpu.memory_space<vmem>>, vector<1x2x96xf32>
    %240 = vector.shape_cast %239 : vector<1x2x96xf32> to vector<2x96xf32>
    %cst_67 = arith.constant dense<0.000000e+00> : vector<2x96xf32>
    %241 = tpu.matmul %184, %15, %cst_67 {dimension_numbers = #tpu.dot_dimension_numbers<[1], [0], [0], [1], [0, 0, 1, 1], [], []>} : vector<2x32xf32>, vector<32x96xf32>, vector<2x96xf32> -> vector<2x96xf32>
    %242 = arith.addf %241, %21 : vector<2x96xf32>
    %243 = vector.extract_strided_slice %240 {offsets = [0, 0], sizes = [2, 32], strides = [1, 1]} : vector<2x96xf32> to vector<2x32xf32>
    %244 = vector.extract_strided_slice %242 {offsets = [0, 0], sizes = [2, 32], strides = [1, 1]} : vector<2x96xf32> to vector<2x32xf32>
    %245 = arith.addf %243, %244 : vector<2x32xf32>
    %246 = arith.negf %245 : vector<2x32xf32>
    %247 = math.exp %246 : vector<2x32xf32>
    %cst_68 = arith.constant 1.000000e+00 : f32
    %248 = vector.broadcast %cst_68 : f32 to vector<2x32xf32>
    %249 = arith.addf %248, %247 : vector<2x32xf32>
    %250 = arith.divf %248, %249 : vector<2x32xf32>
    %251 = vector.extract_strided_slice %240 {offsets = [0, 32], sizes = [2, 32], strides = [1, 1]} : vector<2x96xf32> to vector<2x32xf32>
    %252 = vector.extract_strided_slice %242 {offsets = [0, 32], sizes = [2, 32], strides = [1, 1]} : vector<2x96xf32> to vector<2x32xf32>
    %253 = arith.addf %251, %252 : vector<2x32xf32>
    %254 = arith.negf %253 : vector<2x32xf32>
    %255 = math.exp %254 : vector<2x32xf32>
    %cst_69 = arith.constant 1.000000e+00 : f32
    %256 = vector.broadcast %cst_69 : f32 to vector<2x32xf32>
    %257 = arith.addf %256, %255 : vector<2x32xf32>
    %258 = arith.divf %256, %257 : vector<2x32xf32>
    %259 = vector.extract_strided_slice %240 {offsets = [0, 64], sizes = [2, 32], strides = [1, 1]} : vector<2x96xf32> to vector<2x32xf32>
    %260 = vector.extract_strided_slice %242 {offsets = [0, 64], sizes = [2, 32], strides = [1, 1]} : vector<2x96xf32> to vector<2x32xf32>
    %261 = arith.mulf %250, %260 : vector<2x32xf32>
    %262 = arith.addf %259, %261 : vector<2x32xf32>
    %263 = math.tanh %262 : vector<2x32xf32>
    %264 = arith.subf %184, %263 : vector<2x32xf32>
    %265 = arith.mulf %258, %264 : vector<2x32xf32>
    %266 = arith.addf %263, %265 : vector<2x32xf32>
    %267 = vector.shape_cast %237 : vector<2x1xi1> to vector<2x1xi1>
    %268 = vector.broadcast %267 : vector<2x1xi1> to vector<2x32xi1>
    %269 = arith.select %268, %266, %184 : vector<2x32xi1>, vector<2x32xf32>
    %cst_70 = arith.constant 0.000000e+00 : f32
    %270 = vector.shape_cast %237 : vector<2x1xi1> to vector<2x1xi1>
    %271 = vector.broadcast %270 : vector<2x1xi1> to vector<2x32xi1>
    %272 = vector.broadcast %cst_70 : f32 to vector<2x32xf32>
    %273 = arith.select %271, %269, %272 : vector<2x32xi1>, vector<2x32xf32>
    %274 = arith.index_cast %193 : i32 to index
    %c0_71 = arith.constant 0 : index
    %c0_72 = arith.constant 0 : index
    %275 = vector.load %arg20[%274, %c0_71, %c0_72] : memref<8x2x32xf32, #tpu.memory_space<vmem>>, vector<1x2x32xf32>
    %276 = vector.shape_cast %275 : vector<1x2x32xf32> to vector<2x32xf32>
    %277 = vector.shape_cast %273 : vector<2x32xf32> to vector<1x2x32xf32>
    tpu.vector_store %arg20[%274, %c0_71, %c0_72], %277 {strides = array<i32>} : memref<8x2x32xf32, #tpu.memory_space<vmem>>, vector<1x2x32xf32>,
    %c3_i32 = arith.constant 3 : i32
    %c7_i32_73 = arith.constant 7 : i32
    %278 = arith.subi %c7_i32_73, %c3_i32 : i32
    %279 = vector.broadcast %c3_i32 : i32 to vector<2x1xi32>
    %280 = arith.cmpi sgt, %0, %279 : vector<2x1xi32>
    %281 = arith.index_cast %c3_i32 : i32 to index
    %c0_74 = arith.constant 0 : index
    %c0_75 = arith.constant 0 : index
    %282 = vector.load %arg17[%281, %c0_74, %c0_75] : memref<8x2x96xf32, #tpu.memory_space<vmem>>, vector<1x2x96xf32>
    %283 = vector.shape_cast %282 : vector<1x2x96xf32> to vector<2x96xf32>
    %cst_76 = arith.constant dense<0.000000e+00> : vector<2x96xf32>
    %284 = tpu.matmul %227, %14, %cst_76 {dimension_numbers = #tpu.dot_dimension_numbers<[1], [0], [0], [1], [0, 0, 1, 1], [], []>} : vector<2x32xf32>, vector<32x96xf32>, vector<2x96xf32> -> vector<2x96xf32>
    %285 = arith.addf %284, %18 : vector<2x96xf32>
    %286 = vector.extract_strided_slice %283 {offsets = [0, 0], sizes = [2, 32], strides = [1, 1]} : vector<2x96xf32> to vector<2x32xf32>
    %287 = vector.extract_strided_slice %285 {offsets = [0, 0], sizes = [2, 32], strides = [1, 1]} : vector<2x96xf32> to vector<2x32xf32>
    %288 = arith.addf %286, %287 : vector<2x32xf32>
    %289 = arith.negf %288 : vector<2x32xf32>
    %290 = math.exp %289 : vector<2x32xf32>
    %cst_77 = arith.constant 1.000000e+00 : f32
    %291 = vector.broadcast %cst_77 : f32 to vector<2x32xf32>
    %292 = arith.addf %291, %290 : vector<2x32xf32>
    %293 = arith.divf %291, %292 : vector<2x32xf32>
    %294 = vector.extract_strided_slice %283 {offsets = [0, 32], sizes = [2, 32], strides = [1, 1]} : vector<2x96xf32> to vector<2x32xf32>
    %295 = vector.extract_strided_slice %285 {offsets = [0, 32], sizes = [2, 32], strides = [1, 1]} : vector<2x96xf32> to vector<2x32xf32>
    %296 = arith.addf %294, %295 : vector<2x32xf32>
    %297 = arith.negf %296 : vector<2x32xf32>
    %298 = math.exp %297 : vector<2x32xf32>
    %cst_78 = arith.constant 1.000000e+00 : f32
    %299 = vector.broadcast %cst_78 : f32 to vector<2x32xf32>
    %300 = arith.addf %299, %298 : vector<2x32xf32>
    %301 = arith.divf %299, %300 : vector<2x32xf32>
    %302 = vector.extract_strided_slice %283 {offsets = [0, 64], sizes = [2, 32], strides = [1, 1]} : vector<2x96xf32> to vector<2x32xf32>
    %303 = vector.extract_strided_slice %285 {offsets = [0, 64], sizes = [2, 32], strides = [1, 1]} : vector<2x96xf32> to vector<2x32xf32>
    %304 = arith.mulf %293, %303 : vector<2x32xf32>
    %305 = arith.addf %302, %304 : vector<2x32xf32>
    %306 = math.tanh %305 : vector<2x32xf32>
    %307 = arith.subf %227, %306 : vector<2x32xf32>
    %308 = arith.mulf %301, %307 : vector<2x32xf32>
    %309 = arith.addf %306, %308 : vector<2x32xf32>
    %310 = vector.shape_cast %280 : vector<2x1xi1> to vector<2x1xi1>
    %311 = vector.broadcast %310 : vector<2x1xi1> to vector<2x32xi1>
    %312 = arith.select %311, %309, %227 : vector<2x32xi1>, vector<2x32xf32>
    %cst_79 = arith.constant 0.000000e+00 : f32
    %313 = vector.shape_cast %280 : vector<2x1xi1> to vector<2x1xi1>
    %314 = vector.broadcast %313 : vector<2x1xi1> to vector<2x32xi1>
    %315 = vector.broadcast %cst_79 : f32 to vector<2x32xf32>
    %316 = arith.select %314, %312, %315 : vector<2x32xi1>, vector<2x32xf32>
    %317 = arith.index_cast %c3_i32 : i32 to index
    %c0_80 = arith.constant 0 : index
    %c0_81 = arith.constant 0 : index
    %318 = vector.load %arg19[%317, %c0_80, %c0_81] : memref<8x2x32xf32, #tpu.memory_space<vmem>>, vector<1x2x32xf32>
    %319 = vector.shape_cast %318 : vector<1x2x32xf32> to vector<2x32xf32>
    %320 = vector.shape_cast %316 : vector<2x32xf32> to vector<1x2x32xf32>
    tpu.vector_store %arg19[%317, %c0_80, %c0_81], %320 {strides = array<i32>} : memref<8x2x32xf32, #tpu.memory_space<vmem>>, vector<1x2x32xf32>,
    %321 = vector.broadcast %278 : i32 to vector<2x1xi32>
    %322 = arith.cmpi sgt, %0, %321 : vector<2x1xi32>
    %323 = arith.index_cast %278 : i32 to index
    %c0_82 = arith.constant 0 : index
    %c0_83 = arith.constant 0 : index
    %324 = vector.load %arg18[%323, %c0_82, %c0_83] : memref<8x2x96xf32, #tpu.memory_space<vmem>>, vector<1x2x96xf32>
    %325 = vector.shape_cast %324 : vector<1x2x96xf32> to vector<2x96xf32>
    %cst_84 = arith.constant dense<0.000000e+00> : vector<2x96xf32>
    %326 = tpu.matmul %269, %15, %cst_84 {dimension_numbers = #tpu.dot_dimension_numbers<[1], [0], [0], [1], [0, 0, 1, 1], [], []>} : vector<2x32xf32>, vector<32x96xf32>, vector<2x96xf32> -> vector<2x96xf32>
    %327 = arith.addf %326, %21 : vector<2x96xf32>
    %328 = vector.extract_strided_slice %325 {offsets = [0, 0], sizes = [2, 32], strides = [1, 1]} : vector<2x96xf32> to vector<2x32xf32>
    %329 = vector.extract_strided_slice %327 {offsets = [0, 0], sizes = [2, 32], strides = [1, 1]} : vector<2x96xf32> to vector<2x32xf32>
    %330 = arith.addf %328, %329 : vector<2x32xf32>
    %331 = arith.negf %330 : vector<2x32xf32>
    %332 = math.exp %331 : vector<2x32xf32>
    %cst_85 = arith.constant 1.000000e+00 : f32
    %333 = vector.broadcast %cst_85 : f32 to vector<2x32xf32>
    %334 = arith.addf %333, %332 : vector<2x32xf32>
    %335 = arith.divf %333, %334 : vector<2x32xf32>
    %336 = vector.extract_strided_slice %325 {offsets = [0, 32], sizes = [2, 32], strides = [1, 1]} : vector<2x96xf32> to vector<2x32xf32>
    %337 = vector.extract_strided_slice %327 {offsets = [0, 32], sizes = [2, 32], strides = [1, 1]} : vector<2x96xf32> to vector<2x32xf32>
    %338 = arith.addf %336, %337 : vector<2x32xf32>
    %339 = arith.negf %338 : vector<2x32xf32>
    %340 = math.exp %339 : vector<2x32xf32>
    %cst_86 = arith.constant 1.000000e+00 : f32
    %341 = vector.broadcast %cst_86 : f32 to vector<2x32xf32>
    %342 = arith.addf %341, %340 : vector<2x32xf32>
    %343 = arith.divf %341, %342 : vector<2x32xf32>
    %344 = vector.extract_strided_slice %325 {offsets = [0, 64], sizes = [2, 32], strides = [1, 1]} : vector<2x96xf32> to vector<2x32xf32>
    %345 = vector.extract_strided_slice %327 {offsets = [0, 64], sizes = [2, 32], strides = [1, 1]} : vector<2x96xf32> to vector<2x32xf32>
    %346 = arith.mulf %335, %345 : vector<2x32xf32>
    %347 = arith.addf %344, %346 : vector<2x32xf32>
    %348 = math.tanh %347 : vector<2x32xf32>
    %349 = arith.subf %269, %348 : vector<2x32xf32>
    %350 = arith.mulf %343, %349 : vector<2x32xf32>
    %351 = arith.addf %348, %350 : vector<2x32xf32>
    %352 = vector.shape_cast %322 : vector<2x1xi1> to vector<2x1xi1>
    %353 = vector.broadcast %352 : vector<2x1xi1> to vector<2x32xi1>
    %354 = arith.select %353, %351, %269 : vector<2x32xi1>, vector<2x32xf32>
    %cst_87 = arith.constant 0.000000e+00 : f32
    %355 = vector.shape_cast %322 : vector<2x1xi1> to vector<2x1xi1>
    %356 = vector.broadcast %355 : vector<2x1xi1> to vector<2x32xi1>
    %357 = vector.broadcast %cst_87 : f32 to vector<2x32xf32>
    %358 = arith.select %356, %354, %357 : vector<2x32xi1>, vector<2x32xf32>
    %359 = arith.index_cast %278 : i32 to index
    %c0_88 = arith.constant 0 : index
    %c0_89 = arith.constant 0 : index
    %360 = vector.load %arg20[%359, %c0_88, %c0_89] : memref<8x2x32xf32, #tpu.memory_space<vmem>>, vector<1x2x32xf32>
    %361 = vector.shape_cast %360 : vector<1x2x32xf32> to vector<2x32xf32>
    %362 = vector.shape_cast %358 : vector<2x32xf32> to vector<1x2x32xf32>
    tpu.vector_store %arg20[%359, %c0_88, %c0_89], %362 {strides = array<i32>} : memref<8x2x32xf32, #tpu.memory_space<vmem>>, vector<1x2x32xf32>,
    %c4_i32 = arith.constant 4 : i32
    %c7_i32_90 = arith.constant 7 : i32
    %363 = arith.subi %c7_i32_90, %c4_i32 : i32
    %364 = vector.broadcast %c4_i32 : i32 to vector<2x1xi32>
    %365 = arith.cmpi sgt, %0, %364 : vector<2x1xi32>
    %366 = arith.index_cast %c4_i32 : i32 to index
    %c0_91 = arith.constant 0 : index
    %c0_92 = arith.constant 0 : index
    %367 = vector.load %arg17[%366, %c0_91, %c0_92] : memref<8x2x96xf32, #tpu.memory_space<vmem>>, vector<1x2x96xf32>
    %368 = vector.shape_cast %367 : vector<1x2x96xf32> to vector<2x96xf32>
    %cst_93 = arith.constant dense<0.000000e+00> : vector<2x96xf32>
    %369 = tpu.matmul %312, %14, %cst_93 {dimension_numbers = #tpu.dot_dimension_numbers<[1], [0], [0], [1], [0, 0, 1, 1], [], []>} : vector<2x32xf32>, vector<32x96xf32>, vector<2x96xf32> -> vector<2x96xf32>
    %370 = arith.addf %369, %18 : vector<2x96xf32>
    %371 = vector.extract_strided_slice %368 {offsets = [0, 0], sizes = [2, 32], strides = [1, 1]} : vector<2x96xf32> to vector<2x32xf32>
    %372 = vector.extract_strided_slice %370 {offsets = [0, 0], sizes = [2, 32], strides = [1, 1]} : vector<2x96xf32> to vector<2x32xf32>
    %373 = arith.addf %371, %372 : vector<2x32xf32>
    %374 = arith.negf %373 : vector<2x32xf32>
    %375 = math.exp %374 : vector<2x32xf32>
    %cst_94 = arith.constant 1.000000e+00 : f32
    %376 = vector.broadcast %cst_94 : f32 to vector<2x32xf32>
    %377 = arith.addf %376, %375 : vector<2x32xf32>
    %378 = arith.divf %376, %377 : vector<2x32xf32>
    %379 = vector.extract_strided_slice %368 {offsets = [0, 32], sizes = [2, 32], strides = [1, 1]} : vector<2x96xf32> to vector<2x32xf32>
    %380 = vector.extract_strided_slice %370 {offsets = [0, 32], sizes = [2, 32], strides = [1, 1]} : vector<2x96xf32> to vector<2x32xf32>
    %381 = arith.addf %379, %380 : vector<2x32xf32>
    %382 = arith.negf %381 : vector<2x32xf32>
    %383 = math.exp %382 : vector<2x32xf32>
    %cst_95 = arith.constant 1.000000e+00 : f32
    %384 = vector.broadcast %cst_95 : f32 to vector<2x32xf32>
    %385 = arith.addf %384, %383 : vector<2x32xf32>
    %386 = arith.divf %384, %385 : vector<2x32xf32>
    %387 = vector.extract_strided_slice %368 {offsets = [0, 64], sizes = [2, 32], strides = [1, 1]} : vector<2x96xf32> to vector<2x32xf32>
    %388 = vector.extract_strided_slice %370 {offsets = [0, 64], sizes = [2, 32], strides = [1, 1]} : vector<2x96xf32> to vector<2x32xf32>
    %389 = arith.mulf %378, %388 : vector<2x32xf32>
    %390 = arith.addf %387, %389 : vector<2x32xf32>
    %391 = math.tanh %390 : vector<2x32xf32>
    %392 = arith.subf %312, %391 : vector<2x32xf32>
    %393 = arith.mulf %386, %392 : vector<2x32xf32>
    %394 = arith.addf %391, %393 : vector<2x32xf32>
    %395 = vector.shape_cast %365 : vector<2x1xi1> to vector<2x1xi1>
    %396 = vector.broadcast %395 : vector<2x1xi1> to vector<2x32xi1>
    %397 = arith.select %396, %394, %312 : vector<2x32xi1>, vector<2x32xf32>
    %cst_96 = arith.constant 0.000000e+00 : f32
    %398 = vector.shape_cast %365 : vector<2x1xi1> to vector<2x1xi1>
    %399 = vector.broadcast %398 : vector<2x1xi1> to vector<2x32xi1>
    %400 = vector.broadcast %cst_96 : f32 to vector<2x32xf32>
    %401 = arith.select %399, %397, %400 : vector<2x32xi1>, vector<2x32xf32>
    %402 = arith.index_cast %c4_i32 : i32 to index
    %c0_97 = arith.constant 0 : index
    %c0_98 = arith.constant 0 : index
    %403 = vector.load %arg19[%402, %c0_97, %c0_98] : memref<8x2x32xf32, #tpu.memory_space<vmem>>, vector<1x2x32xf32>
    %404 = vector.shape_cast %403 : vector<1x2x32xf32> to vector<2x32xf32>
    %405 = vector.shape_cast %401 : vector<2x32xf32> to vector<1x2x32xf32>
    tpu.vector_store %arg19[%402, %c0_97, %c0_98], %405 {strides = array<i32>} : memref<8x2x32xf32, #tpu.memory_space<vmem>>, vector<1x2x32xf32>,
    %406 = vector.broadcast %363 : i32 to vector<2x1xi32>
    %407 = arith.cmpi sgt, %0, %406 : vector<2x1xi32>
    %408 = arith.index_cast %363 : i32 to index
    %c0_99 = arith.constant 0 : index
    %c0_100 = arith.constant 0 : index
    %409 = vector.load %arg18[%408, %c0_99, %c0_100] : memref<8x2x96xf32, #tpu.memory_space<vmem>>, vector<1x2x96xf32>
    %410 = vector.shape_cast %409 : vector<1x2x96xf32> to vector<2x96xf32>
    %cst_101 = arith.constant dense<0.000000e+00> : vector<2x96xf32>
    %411 = tpu.matmul %354, %15, %cst_101 {dimension_numbers = #tpu.dot_dimension_numbers<[1], [0], [0], [1], [0, 0, 1, 1], [], []>} : vector<2x32xf32>, vector<32x96xf32>, vector<2x96xf32> -> vector<2x96xf32>
    %412 = arith.addf %411, %21 : vector<2x96xf32>
    %413 = vector.extract_strided_slice %410 {offsets = [0, 0], sizes = [2, 32], strides = [1, 1]} : vector<2x96xf32> to vector<2x32xf32>
    %414 = vector.extract_strided_slice %412 {offsets = [0, 0], sizes = [2, 32], strides = [1, 1]} : vector<2x96xf32> to vector<2x32xf32>
    %415 = arith.addf %413, %414 : vector<2x32xf32>
    %416 = arith.negf %415 : vector<2x32xf32>
    %417 = math.exp %416 : vector<2x32xf32>
    %cst_102 = arith.constant 1.000000e+00 : f32
    %418 = vector.broadcast %cst_102 : f32 to vector<2x32xf32>
    %419 = arith.addf %418, %417 : vector<2x32xf32>
    %420 = arith.divf %418, %419 : vector<2x32xf32>
    %421 = vector.extract_strided_slice %410 {offsets = [0, 32], sizes = [2, 32], strides = [1, 1]} : vector<2x96xf32> to vector<2x32xf32>
    %422 = vector.extract_strided_slice %412 {offsets = [0, 32], sizes = [2, 32], strides = [1, 1]} : vector<2x96xf32> to vector<2x32xf32>
    %423 = arith.addf %421, %422 : vector<2x32xf32>
    %424 = arith.negf %423 : vector<2x32xf32>
    %425 = math.exp %424 : vector<2x32xf32>
    %cst_103 = arith.constant 1.000000e+00 : f32
    %426 = vector.broadcast %cst_103 : f32 to vector<2x32xf32>
    %427 = arith.addf %426, %425 : vector<2x32xf32>
    %428 = arith.divf %426, %427 : vector<2x32xf32>
    %429 = vector.extract_strided_slice %410 {offsets = [0, 64], sizes = [2, 32], strides = [1, 1]} : vector<2x96xf32> to vector<2x32xf32>
    %430 = vector.extract_strided_slice %412 {offsets = [0, 64], sizes = [2, 32], strides = [1, 1]} : vector<2x96xf32> to vector<2x32xf32>
    %431 = arith.mulf %420, %430 : vector<2x32xf32>
    %432 = arith.addf %429, %431 : vector<2x32xf32>
    %433 = math.tanh %432 : vector<2x32xf32>
    %434 = arith.subf %354, %433 : vector<2x32xf32>
    %435 = arith.mulf %428, %434 : vector<2x32xf32>
    %436 = arith.addf %433, %435 : vector<2x32xf32>
    %437 = vector.shape_cast %407 : vector<2x1xi1> to vector<2x1xi1>
    %438 = vector.broadcast %437 : vector<2x1xi1> to vector<2x32xi1>
    %439 = arith.select %438, %436, %354 : vector<2x32xi1>, vector<2x32xf32>
    %cst_104 = arith.constant 0.000000e+00 : f32
    %440 = vector.shape_cast %407 : vector<2x1xi1> to vector<2x1xi1>
    %441 = vector.broadcast %440 : vector<2x1xi1> to vector<2x32xi1>
    %442 = vector.broadcast %cst_104 : f32 to vector<2x32xf32>
    %443 = arith.select %441, %439, %442 : vector<2x32xi1>, vector<2x32xf32>
    %444 = arith.index_cast %363 : i32 to index
    %c0_105 = arith.constant 0 : index
    %c0_106 = arith.constant 0 : index
    %445 = vector.load %arg20[%444, %c0_105, %c0_106] : memref<8x2x32xf32, #tpu.memory_space<vmem>>, vector<1x2x32xf32>
    %446 = vector.shape_cast %445 : vector<1x2x32xf32> to vector<2x32xf32>
    %447 = vector.shape_cast %443 : vector<2x32xf32> to vector<1x2x32xf32>
    tpu.vector_store %arg20[%444, %c0_105, %c0_106], %447 {strides = array<i32>} : memref<8x2x32xf32, #tpu.memory_space<vmem>>, vector<1x2x32xf32>,
    %c5_i32 = arith.constant 5 : i32
    %c7_i32_107 = arith.constant 7 : i32
    %448 = arith.subi %c7_i32_107, %c5_i32 : i32
    %449 = vector.broadcast %c5_i32 : i32 to vector<2x1xi32>
    %450 = arith.cmpi sgt, %0, %449 : vector<2x1xi32>
    %451 = arith.index_cast %c5_i32 : i32 to index
    %c0_108 = arith.constant 0 : index
    %c0_109 = arith.constant 0 : index
    %452 = vector.load %arg17[%451, %c0_108, %c0_109] : memref<8x2x96xf32, #tpu.memory_space<vmem>>, vector<1x2x96xf32>
    %453 = vector.shape_cast %452 : vector<1x2x96xf32> to vector<2x96xf32>
    %cst_110 = arith.constant dense<0.000000e+00> : vector<2x96xf32>
    %454 = tpu.matmul %397, %14, %cst_110 {dimension_numbers = #tpu.dot_dimension_numbers<[1], [0], [0], [1], [0, 0, 1, 1], [], []>} : vector<2x32xf32>, vector<32x96xf32>, vector<2x96xf32> -> vector<2x96xf32>
    %455 = arith.addf %454, %18 : vector<2x96xf32>
    %456 = vector.extract_strided_slice %453 {offsets = [0, 0], sizes = [2, 32], strides = [1, 1]} : vector<2x96xf32> to vector<2x32xf32>
    %457 = vector.extract_strided_slice %455 {offsets = [0, 0], sizes = [2, 32], strides = [1, 1]} : vector<2x96xf32> to vector<2x32xf32>
    %458 = arith.addf %456, %457 : vector<2x32xf32>
    %459 = arith.negf %458 : vector<2x32xf32>
    %460 = math.exp %459 : vector<2x32xf32>
    %cst_111 = arith.constant 1.000000e+00 : f32
    %461 = vector.broadcast %cst_111 : f32 to vector<2x32xf32>
    %462 = arith.addf %461, %460 : vector<2x32xf32>
    %463 = arith.divf %461, %462 : vector<2x32xf32>
    %464 = vector.extract_strided_slice %453 {offsets = [0, 32], sizes = [2, 32], strides = [1, 1]} : vector<2x96xf32> to vector<2x32xf32>
    %465 = vector.extract_strided_slice %455 {offsets = [0, 32], sizes = [2, 32], strides = [1, 1]} : vector<2x96xf32> to vector<2x32xf32>
    %466 = arith.addf %464, %465 : vector<2x32xf32>
    %467 = arith.negf %466 : vector<2x32xf32>
    %468 = math.exp %467 : vector<2x32xf32>
    %cst_112 = arith.constant 1.000000e+00 : f32
    %469 = vector.broadcast %cst_112 : f32 to vector<2x32xf32>
    %470 = arith.addf %469, %468 : vector<2x32xf32>
    %471 = arith.divf %469, %470 : vector<2x32xf32>
    %472 = vector.extract_strided_slice %453 {offsets = [0, 64], sizes = [2, 32], strides = [1, 1]} : vector<2x96xf32> to vector<2x32xf32>
    %473 = vector.extract_strided_slice %455 {offsets = [0, 64], sizes = [2, 32], strides = [1, 1]} : vector<2x96xf32> to vector<2x32xf32>
    %474 = arith.mulf %463, %473 : vector<2x32xf32>
    %475 = arith.addf %472, %474 : vector<2x32xf32>
    %476 = math.tanh %475 : vector<2x32xf32>
    %477 = arith.subf %397, %476 : vector<2x32xf32>
    %478 = arith.mulf %471, %477 : vector<2x32xf32>
    %479 = arith.addf %476, %478 : vector<2x32xf32>
    %480 = vector.shape_cast %450 : vector<2x1xi1> to vector<2x1xi1>
    %481 = vector.broadcast %480 : vector<2x1xi1> to vector<2x32xi1>
    %482 = arith.select %481, %479, %397 : vector<2x32xi1>, vector<2x32xf32>
    %cst_113 = arith.constant 0.000000e+00 : f32
    %483 = vector.shape_cast %450 : vector<2x1xi1> to vector<2x1xi1>
    %484 = vector.broadcast %483 : vector<2x1xi1> to vector<2x32xi1>
    %485 = vector.broadcast %cst_113 : f32 to vector<2x32xf32>
    %486 = arith.select %484, %482, %485 : vector<2x32xi1>, vector<2x32xf32>
    %487 = arith.index_cast %c5_i32 : i32 to index
    %c0_114 = arith.constant 0 : index
    %c0_115 = arith.constant 0 : index
    %488 = vector.load %arg19[%487, %c0_114, %c0_115] : memref<8x2x32xf32, #tpu.memory_space<vmem>>, vector<1x2x32xf32>
    %489 = vector.shape_cast %488 : vector<1x2x32xf32> to vector<2x32xf32>
    %490 = vector.shape_cast %486 : vector<2x32xf32> to vector<1x2x32xf32>
    tpu.vector_store %arg19[%487, %c0_114, %c0_115], %490 {strides = array<i32>} : memref<8x2x32xf32, #tpu.memory_space<vmem>>, vector<1x2x32xf32>,
    %491 = vector.broadcast %448 : i32 to vector<2x1xi32>
    %492 = arith.cmpi sgt, %0, %491 : vector<2x1xi32>
    %493 = arith.index_cast %448 : i32 to index
    %c0_116 = arith.constant 0 : index
    %c0_117 = arith.constant 0 : index
    %494 = vector.load %arg18[%493, %c0_116, %c0_117] : memref<8x2x96xf32, #tpu.memory_space<vmem>>, vector<1x2x96xf32>
    %495 = vector.shape_cast %494 : vector<1x2x96xf32> to vector<2x96xf32>
    %cst_118 = arith.constant dense<0.000000e+00> : vector<2x96xf32>
    %496 = tpu.matmul %439, %15, %cst_118 {dimension_numbers = #tpu.dot_dimension_numbers<[1], [0], [0], [1], [0, 0, 1, 1], [], []>} : vector<2x32xf32>, vector<32x96xf32>, vector<2x96xf32> -> vector<2x96xf32>
    %497 = arith.addf %496, %21 : vector<2x96xf32>
    %498 = vector.extract_strided_slice %495 {offsets = [0, 0], sizes = [2, 32], strides = [1, 1]} : vector<2x96xf32> to vector<2x32xf32>
    %499 = vector.extract_strided_slice %497 {offsets = [0, 0], sizes = [2, 32], strides = [1, 1]} : vector<2x96xf32> to vector<2x32xf32>
    %500 = arith.addf %498, %499 : vector<2x32xf32>
    %501 = arith.negf %500 : vector<2x32xf32>
    %502 = math.exp %501 : vector<2x32xf32>
    %cst_119 = arith.constant 1.000000e+00 : f32
    %503 = vector.broadcast %cst_119 : f32 to vector<2x32xf32>
    %504 = arith.addf %503, %502 : vector<2x32xf32>
    %505 = arith.divf %503, %504 : vector<2x32xf32>
    %506 = vector.extract_strided_slice %495 {offsets = [0, 32], sizes = [2, 32], strides = [1, 1]} : vector<2x96xf32> to vector<2x32xf32>
    %507 = vector.extract_strided_slice %497 {offsets = [0, 32], sizes = [2, 32], strides = [1, 1]} : vector<2x96xf32> to vector<2x32xf32>
    %508 = arith.addf %506, %507 : vector<2x32xf32>
    %509 = arith.negf %508 : vector<2x32xf32>
    %510 = math.exp %509 : vector<2x32xf32>
    %cst_120 = arith.constant 1.000000e+00 : f32
    %511 = vector.broadcast %cst_120 : f32 to vector<2x32xf32>
    %512 = arith.addf %511, %510 : vector<2x32xf32>
    %513 = arith.divf %511, %512 : vector<2x32xf32>
    %514 = vector.extract_strided_slice %495 {offsets = [0, 64], sizes = [2, 32], strides = [1, 1]} : vector<2x96xf32> to vector<2x32xf32>
    %515 = vector.extract_strided_slice %497 {offsets = [0, 64], sizes = [2, 32], strides = [1, 1]} : vector<2x96xf32> to vector<2x32xf32>
    %516 = arith.mulf %505, %515 : vector<2x32xf32>
    %517 = arith.addf %514, %516 : vector<2x32xf32>
    %518 = math.tanh %517 : vector<2x32xf32>
    %519 = arith.subf %439, %518 : vector<2x32xf32>
    %520 = arith.mulf %513, %519 : vector<2x32xf32>
    %521 = arith.addf %518, %520 : vector<2x32xf32>
    %522 = vector.shape_cast %492 : vector<2x1xi1> to vector<2x1xi1>
    %523 = vector.broadcast %522 : vector<2x1xi1> to vector<2x32xi1>
    %524 = arith.select %523, %521, %439 : vector<2x32xi1>, vector<2x32xf32>
    %cst_121 = arith.constant 0.000000e+00 : f32
    %525 = vector.shape_cast %492 : vector<2x1xi1> to vector<2x1xi1>
    %526 = vector.broadcast %525 : vector<2x1xi1> to vector<2x32xi1>
    %527 = vector.broadcast %cst_121 : f32 to vector<2x32xf32>
    %528 = arith.select %526, %524, %527 : vector<2x32xi1>, vector<2x32xf32>
    %529 = arith.index_cast %448 : i32 to index
    %c0_122 = arith.constant 0 : index
    %c0_123 = arith.constant 0 : index
    %530 = vector.load %arg20[%529, %c0_122, %c0_123] : memref<8x2x32xf32, #tpu.memory_space<vmem>>, vector<1x2x32xf32>
    %531 = vector.shape_cast %530 : vector<1x2x32xf32> to vector<2x32xf32>
    %532 = vector.shape_cast %528 : vector<2x32xf32> to vector<1x2x32xf32>
    tpu.vector_store %arg20[%529, %c0_122, %c0_123], %532 {strides = array<i32>} : memref<8x2x32xf32, #tpu.memory_space<vmem>>, vector<1x2x32xf32>,
    %c6_i32 = arith.constant 6 : i32
    %c7_i32_124 = arith.constant 7 : i32
    %533 = arith.subi %c7_i32_124, %c6_i32 : i32
    %534 = vector.broadcast %c6_i32 : i32 to vector<2x1xi32>
    %535 = arith.cmpi sgt, %0, %534 : vector<2x1xi32>
    %536 = arith.index_cast %c6_i32 : i32 to index
    %c0_125 = arith.constant 0 : index
    %c0_126 = arith.constant 0 : index
    %537 = vector.load %arg17[%536, %c0_125, %c0_126] : memref<8x2x96xf32, #tpu.memory_space<vmem>>, vector<1x2x96xf32>
    %538 = vector.shape_cast %537 : vector<1x2x96xf32> to vector<2x96xf32>
    %cst_127 = arith.constant dense<0.000000e+00> : vector<2x96xf32>
    %539 = tpu.matmul %482, %14, %cst_127 {dimension_numbers = #tpu.dot_dimension_numbers<[1], [0], [0], [1], [0, 0, 1, 1], [], []>} : vector<2x32xf32>, vector<32x96xf32>, vector<2x96xf32> -> vector<2x96xf32>
    %540 = arith.addf %539, %18 : vector<2x96xf32>
    %541 = vector.extract_strided_slice %538 {offsets = [0, 0], sizes = [2, 32], strides = [1, 1]} : vector<2x96xf32> to vector<2x32xf32>
    %542 = vector.extract_strided_slice %540 {offsets = [0, 0], sizes = [2, 32], strides = [1, 1]} : vector<2x96xf32> to vector<2x32xf32>
    %543 = arith.addf %541, %542 : vector<2x32xf32>
    %544 = arith.negf %543 : vector<2x32xf32>
    %545 = math.exp %544 : vector<2x32xf32>
    %cst_128 = arith.constant 1.000000e+00 : f32
    %546 = vector.broadcast %cst_128 : f32 to vector<2x32xf32>
    %547 = arith.addf %546, %545 : vector<2x32xf32>
    %548 = arith.divf %546, %547 : vector<2x32xf32>
    %549 = vector.extract_strided_slice %538 {offsets = [0, 32], sizes = [2, 32], strides = [1, 1]} : vector<2x96xf32> to vector<2x32xf32>
    %550 = vector.extract_strided_slice %540 {offsets = [0, 32], sizes = [2, 32], strides = [1, 1]} : vector<2x96xf32> to vector<2x32xf32>
    %551 = arith.addf %549, %550 : vector<2x32xf32>
    %552 = arith.negf %551 : vector<2x32xf32>
    %553 = math.exp %552 : vector<2x32xf32>
    %cst_129 = arith.constant 1.000000e+00 : f32
    %554 = vector.broadcast %cst_129 : f32 to vector<2x32xf32>
    %555 = arith.addf %554, %553 : vector<2x32xf32>
    %556 = arith.divf %554, %555 : vector<2x32xf32>
    %557 = vector.extract_strided_slice %538 {offsets = [0, 64], sizes = [2, 32], strides = [1, 1]} : vector<2x96xf32> to vector<2x32xf32>
    %558 = vector.extract_strided_slice %540 {offsets = [0, 64], sizes = [2, 32], strides = [1, 1]} : vector<2x96xf32> to vector<2x32xf32>
    %559 = arith.mulf %548, %558 : vector<2x32xf32>
    %560 = arith.addf %557, %559 : vector<2x32xf32>
    %561 = math.tanh %560 : vector<2x32xf32>
    %562 = arith.subf %482, %561 : vector<2x32xf32>
    %563 = arith.mulf %556, %562 : vector<2x32xf32>
    %564 = arith.addf %561, %563 : vector<2x32xf32>
    %565 = vector.shape_cast %535 : vector<2x1xi1> to vector<2x1xi1>
    %566 = vector.broadcast %565 : vector<2x1xi1> to vector<2x32xi1>
    %567 = arith.select %566, %564, %482 : vector<2x32xi1>, vector<2x32xf32>
    %cst_130 = arith.constant 0.000000e+00 : f32
    %568 = vector.shape_cast %535 : vector<2x1xi1> to vector<2x1xi1>
    %569 = vector.broadcast %568 : vector<2x1xi1> to vector<2x32xi1>
    %570 = vector.broadcast %cst_130 : f32 to vector<2x32xf32>
    %571 = arith.select %569, %567, %570 : vector<2x32xi1>, vector<2x32xf32>
    %572 = arith.index_cast %c6_i32 : i32 to index
    %c0_131 = arith.constant 0 : index
    %c0_132 = arith.constant 0 : index
    %573 = vector.load %arg19[%572, %c0_131, %c0_132] : memref<8x2x32xf32, #tpu.memory_space<vmem>>, vector<1x2x32xf32>
    %574 = vector.shape_cast %573 : vector<1x2x32xf32> to vector<2x32xf32>
    %575 = vector.shape_cast %571 : vector<2x32xf32> to vector<1x2x32xf32>
    tpu.vector_store %arg19[%572, %c0_131, %c0_132], %575 {strides = array<i32>} : memref<8x2x32xf32, #tpu.memory_space<vmem>>, vector<1x2x32xf32>,
    %576 = vector.broadcast %533 : i32 to vector<2x1xi32>
    %577 = arith.cmpi sgt, %0, %576 : vector<2x1xi32>
    %578 = arith.index_cast %533 : i32 to index
    %c0_133 = arith.constant 0 : index
    %c0_134 = arith.constant 0 : index
    %579 = vector.load %arg18[%578, %c0_133, %c0_134] : memref<8x2x96xf32, #tpu.memory_space<vmem>>, vector<1x2x96xf32>
    %580 = vector.shape_cast %579 : vector<1x2x96xf32> to vector<2x96xf32>
    %cst_135 = arith.constant dense<0.000000e+00> : vector<2x96xf32>
    %581 = tpu.matmul %524, %15, %cst_135 {dimension_numbers = #tpu.dot_dimension_numbers<[1], [0], [0], [1], [0, 0, 1, 1], [], []>} : vector<2x32xf32>, vector<32x96xf32>, vector<2x96xf32> -> vector<2x96xf32>
    %582 = arith.addf %581, %21 : vector<2x96xf32>
    %583 = vector.extract_strided_slice %580 {offsets = [0, 0], sizes = [2, 32], strides = [1, 1]} : vector<2x96xf32> to vector<2x32xf32>
    %584 = vector.extract_strided_slice %582 {offsets = [0, 0], sizes = [2, 32], strides = [1, 1]} : vector<2x96xf32> to vector<2x32xf32>
    %585 = arith.addf %583, %584 : vector<2x32xf32>
    %586 = arith.negf %585 : vector<2x32xf32>
    %587 = math.exp %586 : vector<2x32xf32>
    %cst_136 = arith.constant 1.000000e+00 : f32
    %588 = vector.broadcast %cst_136 : f32 to vector<2x32xf32>
    %589 = arith.addf %588, %587 : vector<2x32xf32>
    %590 = arith.divf %588, %589 : vector<2x32xf32>
    %591 = vector.extract_strided_slice %580 {offsets = [0, 32], sizes = [2, 32], strides = [1, 1]} : vector<2x96xf32> to vector<2x32xf32>
    %592 = vector.extract_strided_slice %582 {offsets = [0, 32], sizes = [2, 32], strides = [1, 1]} : vector<2x96xf32> to vector<2x32xf32>
    %593 = arith.addf %591, %592 : vector<2x32xf32>
    %594 = arith.negf %593 : vector<2x32xf32>
    %595 = math.exp %594 : vector<2x32xf32>
    %cst_137 = arith.constant 1.000000e+00 : f32
    %596 = vector.broadcast %cst_137 : f32 to vector<2x32xf32>
    %597 = arith.addf %596, %595 : vector<2x32xf32>
    %598 = arith.divf %596, %597 : vector<2x32xf32>
    %599 = vector.extract_strided_slice %580 {offsets = [0, 64], sizes = [2, 32], strides = [1, 1]} : vector<2x96xf32> to vector<2x32xf32>
    %600 = vector.extract_strided_slice %582 {offsets = [0, 64], sizes = [2, 32], strides = [1, 1]} : vector<2x96xf32> to vector<2x32xf32>
    %601 = arith.mulf %590, %600 : vector<2x32xf32>
    %602 = arith.addf %599, %601 : vector<2x32xf32>
    %603 = math.tanh %602 : vector<2x32xf32>
    %604 = arith.subf %524, %603 : vector<2x32xf32>
    %605 = arith.mulf %598, %604 : vector<2x32xf32>
    %606 = arith.addf %603, %605 : vector<2x32xf32>
    %607 = vector.shape_cast %577 : vector<2x1xi1> to vector<2x1xi1>
    %608 = vector.broadcast %607 : vector<2x1xi1> to vector<2x32xi1>
    %609 = arith.select %608, %606, %524 : vector<2x32xi1>, vector<2x32xf32>
    %cst_138 = arith.constant 0.000000e+00 : f32
    %610 = vector.shape_cast %577 : vector<2x1xi1> to vector<2x1xi1>
    %611 = vector.broadcast %610 : vector<2x1xi1> to vector<2x32xi1>
    %612 = vector.broadcast %cst_138 : f32 to vector<2x32xf32>
    %613 = arith.select %611, %609, %612 : vector<2x32xi1>, vector<2x32xf32>
    %614 = arith.index_cast %533 : i32 to index
    %c0_139 = arith.constant 0 : index
    %c0_140 = arith.constant 0 : index
    %615 = vector.load %arg20[%614, %c0_139, %c0_140] : memref<8x2x32xf32, #tpu.memory_space<vmem>>, vector<1x2x32xf32>
    %616 = vector.shape_cast %615 : vector<1x2x32xf32> to vector<2x32xf32>
    %617 = vector.shape_cast %613 : vector<2x32xf32> to vector<1x2x32xf32>
    tpu.vector_store %arg20[%614, %c0_139, %c0_140], %617 {strides = array<i32>} : memref<8x2x32xf32, #tpu.memory_space<vmem>>, vector<1x2x32xf32>,
    %c7_i32_141 = arith.constant 7 : i32
    %c7_i32_142 = arith.constant 7 : i32
    %618 = arith.subi %c7_i32_142, %c7_i32_141 : i32
    %619 = vector.broadcast %c7_i32_141 : i32 to vector<2x1xi32>
    %620 = arith.cmpi sgt, %0, %619 : vector<2x1xi32>
    %621 = arith.index_cast %c7_i32_141 : i32 to index
    %c0_143 = arith.constant 0 : index
    %c0_144 = arith.constant 0 : index
    %622 = vector.load %arg17[%621, %c0_143, %c0_144] : memref<8x2x96xf32, #tpu.memory_space<vmem>>, vector<1x2x96xf32>
    %623 = vector.shape_cast %622 : vector<1x2x96xf32> to vector<2x96xf32>
    %cst_145 = arith.constant dense<0.000000e+00> : vector<2x96xf32>
    %624 = tpu.matmul %567, %14, %cst_145 {dimension_numbers = #tpu.dot_dimension_numbers<[1], [0], [0], [1], [0, 0, 1, 1], [], []>} : vector<2x32xf32>, vector<32x96xf32>, vector<2x96xf32> -> vector<2x96xf32>
    %625 = arith.addf %624, %18 : vector<2x96xf32>
    %626 = vector.extract_strided_slice %623 {offsets = [0, 0], sizes = [2, 32], strides = [1, 1]} : vector<2x96xf32> to vector<2x32xf32>
    %627 = vector.extract_strided_slice %625 {offsets = [0, 0], sizes = [2, 32], strides = [1, 1]} : vector<2x96xf32> to vector<2x32xf32>
    %628 = arith.addf %626, %627 : vector<2x32xf32>
    %629 = arith.negf %628 : vector<2x32xf32>
    %630 = math.exp %629 : vector<2x32xf32>
    %cst_146 = arith.constant 1.000000e+00 : f32
    %631 = vector.broadcast %cst_146 : f32 to vector<2x32xf32>
    %632 = arith.addf %631, %630 : vector<2x32xf32>
    %633 = arith.divf %631, %632 : vector<2x32xf32>
    %634 = vector.extract_strided_slice %623 {offsets = [0, 32], sizes = [2, 32], strides = [1, 1]} : vector<2x96xf32> to vector<2x32xf32>
    %635 = vector.extract_strided_slice %625 {offsets = [0, 32], sizes = [2, 32], strides = [1, 1]} : vector<2x96xf32> to vector<2x32xf32>
    %636 = arith.addf %634, %635 : vector<2x32xf32>
    %637 = arith.negf %636 : vector<2x32xf32>
    %638 = math.exp %637 : vector<2x32xf32>
    %cst_147 = arith.constant 1.000000e+00 : f32
    %639 = vector.broadcast %cst_147 : f32 to vector<2x32xf32>
    %640 = arith.addf %639, %638 : vector<2x32xf32>
    %641 = arith.divf %639, %640 : vector<2x32xf32>
    %642 = vector.extract_strided_slice %623 {offsets = [0, 64], sizes = [2, 32], strides = [1, 1]} : vector<2x96xf32> to vector<2x32xf32>
    %643 = vector.extract_strided_slice %625 {offsets = [0, 64], sizes = [2, 32], strides = [1, 1]} : vector<2x96xf32> to vector<2x32xf32>
    %644 = arith.mulf %633, %643 : vector<2x32xf32>
    %645 = arith.addf %642, %644 : vector<2x32xf32>
    %646 = math.tanh %645 : vector<2x32xf32>
    %647 = arith.subf %567, %646 : vector<2x32xf32>
    %648 = arith.mulf %641, %647 : vector<2x32xf32>
    %649 = arith.addf %646, %648 : vector<2x32xf32>
    %650 = vector.shape_cast %620 : vector<2x1xi1> to vector<2x1xi1>
    %651 = vector.broadcast %650 : vector<2x1xi1> to vector<2x32xi1>
    %652 = arith.select %651, %649, %567 : vector<2x32xi1>, vector<2x32xf32>
    %cst_148 = arith.constant 0.000000e+00 : f32
    %653 = vector.shape_cast %620 : vector<2x1xi1> to vector<2x1xi1>
    %654 = vector.broadcast %653 : vector<2x1xi1> to vector<2x32xi1>
    %655 = vector.broadcast %cst_148 : f32 to vector<2x32xf32>
    %656 = arith.select %654, %652, %655 : vector<2x32xi1>, vector<2x32xf32>
    %657 = arith.index_cast %c7_i32_141 : i32 to index
    %c0_149 = arith.constant 0 : index
    %c0_150 = arith.constant 0 : index
    %658 = vector.load %arg19[%657, %c0_149, %c0_150] : memref<8x2x32xf32, #tpu.memory_space<vmem>>, vector<1x2x32xf32>
    %659 = vector.shape_cast %658 : vector<1x2x32xf32> to vector<2x32xf32>
    %660 = vector.shape_cast %656 : vector<2x32xf32> to vector<1x2x32xf32>
    tpu.vector_store %arg19[%657, %c0_149, %c0_150], %660 {strides = array<i32>} : memref<8x2x32xf32, #tpu.memory_space<vmem>>, vector<1x2x32xf32>,
    %661 = vector.broadcast %618 : i32 to vector<2x1xi32>
    %662 = arith.cmpi sgt, %0, %661 : vector<2x1xi32>
    %663 = arith.index_cast %618 : i32 to index
    %c0_151 = arith.constant 0 : index
    %c0_152 = arith.constant 0 : index
    %664 = vector.load %arg18[%663, %c0_151, %c0_152] : memref<8x2x96xf32, #tpu.memory_space<vmem>>, vector<1x2x96xf32>
    %665 = vector.shape_cast %664 : vector<1x2x96xf32> to vector<2x96xf32>
    %cst_153 = arith.constant dense<0.000000e+00> : vector<2x96xf32>
    %666 = tpu.matmul %609, %15, %cst_153 {dimension_numbers = #tpu.dot_dimension_numbers<[1], [0], [0], [1], [0, 0, 1, 1], [], []>} : vector<2x32xf32>, vector<32x96xf32>, vector<2x96xf32> -> vector<2x96xf32>
    %667 = arith.addf %666, %21 : vector<2x96xf32>
    %668 = vector.extract_strided_slice %665 {offsets = [0, 0], sizes = [2, 32], strides = [1, 1]} : vector<2x96xf32> to vector<2x32xf32>
    %669 = vector.extract_strided_slice %667 {offsets = [0, 0], sizes = [2, 32], strides = [1, 1]} : vector<2x96xf32> to vector<2x32xf32>
    %670 = arith.addf %668, %669 : vector<2x32xf32>
    %671 = arith.negf %670 : vector<2x32xf32>
    %672 = math.exp %671 : vector<2x32xf32>
    %cst_154 = arith.constant 1.000000e+00 : f32
    %673 = vector.broadcast %cst_154 : f32 to vector<2x32xf32>
    %674 = arith.addf %673, %672 : vector<2x32xf32>
    %675 = arith.divf %673, %674 : vector<2x32xf32>
    %676 = vector.extract_strided_slice %665 {offsets = [0, 32], sizes = [2, 32], strides = [1, 1]} : vector<2x96xf32> to vector<2x32xf32>
    %677 = vector.extract_strided_slice %667 {offsets = [0, 32], sizes = [2, 32], strides = [1, 1]} : vector<2x96xf32> to vector<2x32xf32>
    %678 = arith.addf %676, %677 : vector<2x32xf32>
    %679 = arith.negf %678 : vector<2x32xf32>
    %680 = math.exp %679 : vector<2x32xf32>
    %cst_155 = arith.constant 1.000000e+00 : f32
    %681 = vector.broadcast %cst_155 : f32 to vector<2x32xf32>
    %682 = arith.addf %681, %680 : vector<2x32xf32>
    %683 = arith.divf %681, %682 : vector<2x32xf32>
    %684 = vector.extract_strided_slice %665 {offsets = [0, 64], sizes = [2, 32], strides = [1, 1]} : vector<2x96xf32> to vector<2x32xf32>
    %685 = vector.extract_strided_slice %667 {offsets = [0, 64], sizes = [2, 32], strides = [1, 1]} : vector<2x96xf32> to vector<2x32xf32>
    %686 = arith.mulf %675, %685 : vector<2x32xf32>
    %687 = arith.addf %684, %686 : vector<2x32xf32>
    %688 = math.tanh %687 : vector<2x32xf32>
    %689 = arith.subf %609, %688 : vector<2x32xf32>
    %690 = arith.mulf %683, %689 : vector<2x32xf32>
    %691 = arith.addf %688, %690 : vector<2x32xf32>
    %692 = vector.shape_cast %662 : vector<2x1xi1> to vector<2x1xi1>
    %693 = vector.broadcast %692 : vector<2x1xi1> to vector<2x32xi1>
    %694 = arith.select %693, %691, %609 : vector<2x32xi1>, vector<2x32xf32>
    %cst_156 = arith.constant 0.000000e+00 : f32
    %695 = vector.shape_cast %662 : vector<2x1xi1> to vector<2x1xi1>
    %696 = vector.broadcast %695 : vector<2x1xi1> to vector<2x32xi1>
    %697 = vector.broadcast %cst_156 : f32 to vector<2x32xf32>
    %698 = arith.select %696, %694, %697 : vector<2x32xi1>, vector<2x32xf32>
    %699 = arith.index_cast %618 : i32 to index
    %c0_157 = arith.constant 0 : index
    %c0_158 = arith.constant 0 : index
    %700 = vector.load %arg20[%699, %c0_157, %c0_158] : memref<8x2x32xf32, #tpu.memory_space<vmem>>, vector<1x2x32xf32>
    %701 = vector.shape_cast %700 : vector<1x2x32xf32> to vector<2x32xf32>
    %702 = vector.shape_cast %698 : vector<2x32xf32> to vector<1x2x32xf32>
    tpu.vector_store %arg20[%699, %c0_157, %c0_158], %702 {strides = array<i32>} : memref<8x2x32xf32, #tpu.memory_space<vmem>>, vector<1x2x32xf32>,
    %c8_i32 = arith.constant 8 : i32
    %c0_159 = arith.constant 0 : index
    %c0_160 = arith.constant 0 : index
    %c0_161 = arith.constant 0 : index
    %703 = vector.load %arg19[%c0_159, %c0_160, %c0_161] : memref<8x2x32xf32, #tpu.memory_space<vmem>>, vector<8x2x32xf32>
    %c0_162 = arith.constant 0 : index
    %c0_163 = arith.constant 0 : index
    %c0_164 = arith.constant 0 : index
    %704 = vector.load %arg20[%c0_162, %c0_163, %c0_164] : memref<8x2x32xf32, #tpu.memory_space<vmem>>, vector<8x2x32xf32>
    %705 = vector.shape_cast %703 : vector<8x2x32xf32> to vector<16x32xf32>
    %c0_165 = arith.constant 0 : index
    %c0_166 = arith.constant 0 : index
    %706 = vector.load %arg9[%c0_165, %c0_166] : memref<32x32xf32, #tpu.memory_space<vmem>>, vector<32x32xf32>
    %cst_167 = arith.constant dense<0.000000e+00> : vector<16x32xf32>
    %707 = tpu.matmul %705, %706, %cst_167 {dimension_numbers = #tpu.dot_dimension_numbers<[1], [0], [0], [1], [0, 0, 1, 1], [], []>} : vector<16x32xf32>, vector<32x32xf32>, vector<16x32xf32> -> vector<16x32xf32>
    %708 = vector.shape_cast %704 : vector<8x2x32xf32> to vector<16x32xf32>
    %c0_168 = arith.constant 0 : index
    %c0_169 = arith.constant 0 : index
    %709 = vector.load %arg10[%c0_168, %c0_169] : memref<32x32xf32, #tpu.memory_space<vmem>>, vector<32x32xf32>
    %cst_170 = arith.constant dense<0.000000e+00> : vector<16x32xf32>
    %710 = tpu.matmul %708, %709, %cst_170 {dimension_numbers = #tpu.dot_dimension_numbers<[1], [0], [0], [1], [0, 0, 1, 1], [], []>} : vector<16x32xf32>, vector<32x32xf32>, vector<16x32xf32> -> vector<16x32xf32>
    %711 = arith.addf %707, %710 : vector<16x32xf32>
    %712 = math.tanh %711 : vector<16x32xf32>
    %c0_171 = arith.constant 0 : index
    %c0_172 = arith.constant 0 : index
    %713 = vector.load %arg11[%c0_171, %c0_172] : memref<32x8xf32, #tpu.memory_space<vmem>>, vector<32x8xf32>
    %cst_173 = arith.constant dense<0.000000e+00> : vector<16x8xf32>
    %714 = tpu.matmul %712, %713, %cst_173 {dimension_numbers = #tpu.dot_dimension_numbers<[1], [0], [0], [1], [0, 0, 1, 1], [], []>} : vector<16x32xf32>, vector<32x8xf32>, vector<16x8xf32> -> vector<16x8xf32>
    %715 = vector.shape_cast %714 : vector<16x8xf32> to vector<8x2x8xf32>
    %716 = tpu.iota {dimensions = array<i32: 0>} : vector<8x2x1xi32>
    %717 = vector.shape_cast %0 : vector<2x1xi32> to vector<1x2x1xi32>
    %718 = vector.broadcast %717 : vector<1x2x1xi32> to vector<8x2x1xi32>
    %719 = arith.cmpi slt, %716, %718 : vector<8x2x1xi32>
    %cst_174 = arith.constant -1.000000e+30 : f32
    %720 = vector.shape_cast %719 : vector<8x2x1xi1> to vector<8x2x1xi1>
    %721 = vector.broadcast %720 : vector<8x2x1xi1> to vector<8x2x8xi1>
    %722 = vector.broadcast %cst_174 : f32 to vector<8x2x8xf32>
    %723 = arith.select %721, %715, %722 : vector<8x2x8xi1>, vector<8x2x8xf32>
    %cst_175 = arith.constant dense<0xFF800000> : vector<2x8xf32>
    %724 = vector.multi_reduction <maximumf>, %723, %cst_175 [0] : vector<8x2x8xf32> to vector<2x8xf32>
    %725 = vector.shape_cast %724 : vector<2x8xf32> to vector<1x2x8xf32>
    %726 = vector.broadcast %725 : vector<1x2x8xf32> to vector<8x2x8xf32>
    %727 = arith.subf %723, %726 : vector<8x2x8xf32>
    %728 = math.exp %727 : vector<8x2x8xf32>
    %cst_176 = arith.constant dense<0.000000e+00> : vector<2x8xf32>
    %729 = vector.multi_reduction <add>, %728, %cst_176 [0] : vector<8x2x8xf32> to vector<2x8xf32>
    %730 = vector.shape_cast %729 : vector<2x8xf32> to vector<1x2x8xf32>
    %731 = vector.broadcast %730 : vector<1x2x8xf32> to vector<8x2x8xf32>
    %732 = arith.divf %728, %731 : vector<8x2x8xf32>
    %733 = vector.extract_strided_slice %732 {offsets = [0, 0, 0], sizes = [8, 2, 1], strides = [1, 1, 1]} : vector<8x2x8xf32> to vector<8x2x1xf32>
    %734 = vector.broadcast %733 : vector<8x2x1xf32> to vector<8x2x32xf32>
    %735 = arith.mulf %734, %703 : vector<8x2x32xf32>
    %cst_177 = arith.constant dense<0.000000e+00> : vector<2x32xf32>
    %736 = vector.multi_reduction <add>, %735, %cst_177 [0] : vector<8x2x32xf32> to vector<2x32xf32>
    %737 = vector.broadcast %733 : vector<8x2x1xf32> to vector<8x2x32xf32>
    %738 = arith.mulf %737, %704 : vector<8x2x32xf32>
    %cst_178 = arith.constant dense<0.000000e+00> : vector<2x32xf32>
    %739 = vector.multi_reduction <add>, %738, %cst_178 [0] : vector<8x2x32xf32> to vector<2x32xf32>
    %740 = vector.extract_strided_slice %732 {offsets = [0, 0, 1], sizes = [8, 2, 1], strides = [1, 1, 1]} : vector<8x2x8xf32> to vector<8x2x1xf32>
    %741 = vector.broadcast %740 : vector<8x2x1xf32> to vector<8x2x32xf32>
    %742 = arith.mulf %741, %703 : vector<8x2x32xf32>
    %cst_179 = arith.constant dense<0.000000e+00> : vector<2x32xf32>
    %743 = vector.multi_reduction <add>, %742, %cst_179 [0] : vector<8x2x32xf32> to vector<2x32xf32>
    %744 = vector.broadcast %740 : vector<8x2x1xf32> to vector<8x2x32xf32>
    %745 = arith.mulf %744, %704 : vector<8x2x32xf32>
    %cst_180 = arith.constant dense<0.000000e+00> : vector<2x32xf32>
    %746 = vector.multi_reduction <add>, %745, %cst_180 [0] : vector<8x2x32xf32> to vector<2x32xf32>
    %747 = vector.extract_strided_slice %732 {offsets = [0, 0, 2], sizes = [8, 2, 1], strides = [1, 1, 1]} : vector<8x2x8xf32> to vector<8x2x1xf32>
    %748 = vector.broadcast %747 : vector<8x2x1xf32> to vector<8x2x32xf32>
    %749 = arith.mulf %748, %703 : vector<8x2x32xf32>
    %cst_181 = arith.constant dense<0.000000e+00> : vector<2x32xf32>
    %750 = vector.multi_reduction <add>, %749, %cst_181 [0] : vector<8x2x32xf32> to vector<2x32xf32>
    %751 = vector.broadcast %747 : vector<8x2x1xf32> to vector<8x2x32xf32>
    %752 = arith.mulf %751, %704 : vector<8x2x32xf32>
    %cst_182 = arith.constant dense<0.000000e+00> : vector<2x32xf32>
    %753 = vector.multi_reduction <add>, %752, %cst_182 [0] : vector<8x2x32xf32> to vector<2x32xf32>
    %754 = vector.extract_strided_slice %732 {offsets = [0, 0, 3], sizes = [8, 2, 1], strides = [1, 1, 1]} : vector<8x2x8xf32> to vector<8x2x1xf32>
    %755 = vector.broadcast %754 : vector<8x2x1xf32> to vector<8x2x32xf32>
    %756 = arith.mulf %755, %703 : vector<8x2x32xf32>
    %cst_183 = arith.constant dense<0.000000e+00> : vector<2x32xf32>
    %757 = vector.multi_reduction <add>, %756, %cst_183 [0] : vector<8x2x32xf32> to vector<2x32xf32>
    %758 = vector.broadcast %754 : vector<8x2x1xf32> to vector<8x2x32xf32>
    %759 = arith.mulf %758, %704 : vector<8x2x32xf32>
    %cst_184 = arith.constant dense<0.000000e+00> : vector<2x32xf32>
    %760 = vector.multi_reduction <add>, %759, %cst_184 [0] : vector<8x2x32xf32> to vector<2x32xf32>
    %761 = vector.extract_strided_slice %732 {offsets = [0, 0, 4], sizes = [8, 2, 1], strides = [1, 1, 1]} : vector<8x2x8xf32> to vector<8x2x1xf32>
    %762 = vector.broadcast %761 : vector<8x2x1xf32> to vector<8x2x32xf32>
    %763 = arith.mulf %762, %703 : vector<8x2x32xf32>
    %cst_185 = arith.constant dense<0.000000e+00> : vector<2x32xf32>
    %764 = vector.multi_reduction <add>, %763, %cst_185 [0] : vector<8x2x32xf32> to vector<2x32xf32>
    %765 = vector.broadcast %761 : vector<8x2x1xf32> to vector<8x2x32xf32>
    %766 = arith.mulf %765, %704 : vector<8x2x32xf32>
    %cst_186 = arith.constant dense<0.000000e+00> : vector<2x32xf32>
    %767 = vector.multi_reduction <add>, %766, %cst_186 [0] : vector<8x2x32xf32> to vector<2x32xf32>
    %768 = vector.extract_strided_slice %732 {offsets = [0, 0, 5], sizes = [8, 2, 1], strides = [1, 1, 1]} : vector<8x2x8xf32> to vector<8x2x1xf32>
    %769 = vector.broadcast %768 : vector<8x2x1xf32> to vector<8x2x32xf32>
    %770 = arith.mulf %769, %703 : vector<8x2x32xf32>
    %cst_187 = arith.constant dense<0.000000e+00> : vector<2x32xf32>
    %771 = vector.multi_reduction <add>, %770, %cst_187 [0] : vector<8x2x32xf32> to vector<2x32xf32>
    %772 = vector.broadcast %768 : vector<8x2x1xf32> to vector<8x2x32xf32>
    %773 = arith.mulf %772, %704 : vector<8x2x32xf32>
    %cst_188 = arith.constant dense<0.000000e+00> : vector<2x32xf32>
    %774 = vector.multi_reduction <add>, %773, %cst_188 [0] : vector<8x2x32xf32> to vector<2x32xf32>
    %775 = vector.extract_strided_slice %732 {offsets = [0, 0, 6], sizes = [8, 2, 1], strides = [1, 1, 1]} : vector<8x2x8xf32> to vector<8x2x1xf32>
    %776 = vector.broadcast %775 : vector<8x2x1xf32> to vector<8x2x32xf32>
    %777 = arith.mulf %776, %703 : vector<8x2x32xf32>
    %cst_189 = arith.constant dense<0.000000e+00> : vector<2x32xf32>
    %778 = vector.multi_reduction <add>, %777, %cst_189 [0] : vector<8x2x32xf32> to vector<2x32xf32>
    %779 = vector.broadcast %775 : vector<8x2x1xf32> to vector<8x2x32xf32>
    %780 = arith.mulf %779, %704 : vector<8x2x32xf32>
    %cst_190 = arith.constant dense<0.000000e+00> : vector<2x32xf32>
    %781 = vector.multi_reduction <add>, %780, %cst_190 [0] : vector<8x2x32xf32> to vector<2x32xf32>
    %782 = vector.extract_strided_slice %732 {offsets = [0, 0, 7], sizes = [8, 2, 1], strides = [1, 1, 1]} : vector<8x2x8xf32> to vector<8x2x1xf32>
    %783 = vector.broadcast %782 : vector<8x2x1xf32> to vector<8x2x32xf32>
    %784 = arith.mulf %783, %703 : vector<8x2x32xf32>
    %cst_191 = arith.constant dense<0.000000e+00> : vector<2x32xf32>
    %785 = vector.multi_reduction <add>, %784, %cst_191 [0] : vector<8x2x32xf32> to vector<2x32xf32>
    %786 = vector.broadcast %782 : vector<8x2x1xf32> to vector<8x2x32xf32>
    %787 = arith.mulf %786, %704 : vector<8x2x32xf32>
    %cst_192 = arith.constant dense<0.000000e+00> : vector<2x32xf32>
    %788 = vector.multi_reduction <add>, %787, %cst_192 [0] : vector<8x2x32xf32> to vector<2x32xf32>
    %789 = tpu.concatenate %736, %739, %743, %746, %750, %753, %757, %760, %764, %767, %771, %774, %778, %781, %785, %788 in 1 : vector<2x32xf32>, vector<2x32xf32>, vector<2x32xf32>, vector<2x32xf32>, vector<2x32xf32>, vector<2x32xf32>, vector<2x32xf32>, vector<2x32xf32>, vector<2x32xf32>, vector<2x32xf32>, vector<2x32xf32>, vector<2x32xf32>, vector<2x32xf32>, vector<2x32xf32>, vector<2x32xf32>, vector<2x32xf32> -> vector<2x512xf32>
    %c0_193 = arith.constant 0 : index
    %c0_194 = arith.constant 0 : index
    %790 = vector.load %arg12[%c0_193, %c0_194] : memref<512x256xf32, #tpu.memory_space<vmem>>, vector<512x256xf32>
    %cst_195 = arith.constant dense<0.000000e+00> : vector<2x256xf32>
    %791 = tpu.matmul %789, %790, %cst_195 {dimension_numbers = #tpu.dot_dimension_numbers<[1], [0], [0], [1], [0, 0, 1, 1], [], []>} : vector<2x512xf32>, vector<512x256xf32>, vector<2x256xf32> -> vector<2x256xf32>
    %c0_196 = arith.constant 0 : index
    %c0_197 = arith.constant 0 : index
    %792 = vector.load %arg13[%c0_196, %c0_197] : memref<1x256xf32, #tpu.memory_space<vmem>>, vector<1x256xf32>
    %793 = vector.broadcast %792 : vector<1x256xf32> to vector<2x256xf32>
    %794 = arith.addf %791, %793 : vector<2x256xf32>
    %cst_198 = arith.constant 0.000000e+00 : f32
    %795 = vector.broadcast %cst_198 : f32 to vector<2x256xf32>
    %796 = arith.maximumf %794, %795 : vector<2x256xf32>
    %c0_199 = arith.constant 0 : index
    %c0_200 = arith.constant 0 : index
    %797 = vector.load %arg14[%c0_199, %c0_200] : memref<256x2xf32, #tpu.memory_space<vmem>>, vector<256x2xf32>
    %cst_201 = arith.constant dense<0.000000e+00> : vector<2x2xf32>
    %798 = tpu.matmul %796, %797, %cst_201 {dimension_numbers = #tpu.dot_dimension_numbers<[1], [0], [0], [1], [0, 0, 1, 1], [], []>} : vector<2x256xf32>, vector<256x2xf32>, vector<2x2xf32> -> vector<2x2xf32>
    %c0_202 = arith.constant 0 : index
    %c0_203 = arith.constant 0 : index
    %799 = vector.load %arg15[%c0_202, %c0_203] : memref<1x2xf32, #tpu.memory_space<vmem>>, vector<1x2xf32>
    %800 = vector.broadcast %799 : vector<1x2xf32> to vector<2x2xf32>
    %801 = arith.addf %798, %800 : vector<2x2xf32>
    %c0_204 = arith.constant 0 : index
    %c0_205 = arith.constant 0 : index
    %802 = vector.load %arg16[%c0_204, %c0_205] : memref<2x2xf32, #tpu.memory_space<vmem>>, vector<2x2xf32>
    tpu.vector_store %arg16[%c0_204, %c0_205], %801 {strides = array<i32>} : memref<2x2xf32, #tpu.memory_space<vmem>>, vector<2x2xf32>,
    return
  }
  func.func @transform_0(%arg0: i32) -> (i32, i32, i32) {
    %c0_i32 = arith.constant 0 : i32
    %c0_i32_0 = arith.constant 0 : i32
    %c0_i32_1 = arith.constant 0 : i32
    return %c0_i32, %arg0, %c0_i32_0 : i32, i32, i32
  }
  func.func @transform_1(%arg0: i32) -> (i32, i32) {
    %c0_i32 = arith.constant 0 : i32
    %c0_i32_0 = arith.constant 0 : i32
    return %arg0, %c0_i32 : i32, i32
  }
  func.func @transform_2(%arg0: i32) -> (i32, i32) {
    %c0_i32 = arith.constant 0 : i32
    %c0_i32_0 = arith.constant 0 : i32
    %c0_i32_1 = arith.constant 0 : i32
    return %c0_i32, %c0_i32_0 : i32, i32
  }
  func.func @transform_3(%arg0: i32) -> (i32, i32) {
    %c0_i32 = arith.constant 0 : i32
    %c0_i32_0 = arith.constant 0 : i32
    %c0_i32_1 = arith.constant 0 : i32
    return %c0_i32, %c0_i32_0 : i32, i32
  }
  func.func @transform_4(%arg0: i32) -> (i32, i32) {
    %c0_i32 = arith.constant 0 : i32
    %c0_i32_0 = arith.constant 0 : i32
    %c0_i32_1 = arith.constant 0 : i32
    return %c0_i32, %c0_i32_0 : i32, i32
  }
  func.func @transform_5(%arg0: i32) -> (i32, i32) {
    %c0_i32 = arith.constant 0 : i32
    %c0_i32_0 = arith.constant 0 : i32
    %c0_i32_1 = arith.constant 0 : i32
    return %c0_i32, %c0_i32_0 : i32, i32
  }
  func.func @transform_6(%arg0: i32) -> (i32, i32) {
    %c0_i32 = arith.constant 0 : i32
    %c0_i32_0 = arith.constant 0 : i32
    %c0_i32_1 = arith.constant 0 : i32
    return %c0_i32, %c0_i32_0 : i32, i32
  }
  func.func @transform_7(%arg0: i32) -> (i32, i32) {
    %c0_i32 = arith.constant 0 : i32
    %c0_i32_0 = arith.constant 0 : i32
    %c0_i32_1 = arith.constant 0 : i32
    return %c0_i32, %c0_i32_0 : i32, i32
  }
  func.func @transform_8(%arg0: i32) -> (i32, i32) {
    %c0_i32 = arith.constant 0 : i32
    %c0_i32_0 = arith.constant 0 : i32
    %c0_i32_1 = arith.constant 0 : i32
    return %c0_i32, %c0_i32_0 : i32, i32
  }
  func.func @transform_9(%arg0: i32) -> (i32, i32) {
    %c0_i32 = arith.constant 0 : i32
    %c0_i32_0 = arith.constant 0 : i32
    %c0_i32_1 = arith.constant 0 : i32
    return %c0_i32, %c0_i32_0 : i32, i32
  }
  func.func @transform_10(%arg0: i32) -> (i32, i32) {
    %c0_i32 = arith.constant 0 : i32
    %c0_i32_0 = arith.constant 0 : i32
    %c0_i32_1 = arith.constant 0 : i32
    return %c0_i32, %c0_i32_0 : i32, i32
  }
  func.func @transform_11(%arg0: i32) -> (i32, i32) {
    %c0_i32 = arith.constant 0 : i32
    %c0_i32_0 = arith.constant 0 : i32
    %c0_i32_1 = arith.constant 0 : i32
    return %c0_i32, %c0_i32_0 : i32, i32
  }
  func.func @transform_12(%arg0: i32) -> (i32, i32) {
    %c0_i32 = arith.constant 0 : i32
    %c0_i32_0 = arith.constant 0 : i32
    %c0_i32_1 = arith.constant 0 : i32
    return %c0_i32, %c0_i32_0 : i32, i32
  }
  func.func @transform_13(%arg0: i32) -> (i32, i32) {
    %c0_i32 = arith.constant 0 : i32
    %c0_i32_0 = arith.constant 0 : i32
    %c0_i32_1 = arith.constant 0 : i32
    return %c0_i32, %c0_i32_0 : i32, i32
  }
  func.func @transform_14(%arg0: i32) -> (i32, i32) {
    %c0_i32 = arith.constant 0 : i32
    %c0_i32_0 = arith.constant 0 : i32
    %c0_i32_1 = arith.constant 0 : i32
    return %c0_i32, %c0_i32_0 : i32, i32
  }
  func.func @transform_15(%arg0: i32) -> (i32, i32) {
    %c0_i32 = arith.constant 0 : i32
    %c0_i32_0 = arith.constant 0 : i32
    return %arg0, %c0_i32 : i32, i32
  }
}

</mosaic_0001>

<llo_original>
// kernel: tpu_custom_call.1
$region0: #{tpu_custom_call.1}
  #allocation0 [shape = 'u32[]', space=smem, size = 0x4, offset = 0x4, fixed_abs, tag = 'smem constant byte address 0x4 - core index']
  #allocation1 [shape = 'u32[144,128]{1,0:T(1,128)}', space=vmem, size = 0x12000, scoped, tag = 'internal scratch']
  #allocation2 [shape = 'f32[8,2,96]{2,1,0:T(2,128)}', space=vmem, size = 0x2000, scoped, tag = 'scratch operand']
  #allocation3 [shape = 'f32[8,2,96]{2,1,0:T(2,128)}', space=vmem, size = 0x2000, scoped, tag = 'scratch operand']
  #allocation4 [shape = 'f32[8,2,32]{2,1,0:T(2,128)}', space=vmem, size = 0x2000, scoped, tag = 'scratch operand']
  #allocation5 [shape = 'f32[8,2,32]{2,1,0:T(2,128)}', space=vmem, size = 0x2000, scoped, tag = 'scratch operand']
  %s0 = inlined_call_operand.vmem [shape: f32[8,2,32], index: 0, kind: input, shape index: {}]
  %s1 = inlined_call_operand.vmem [shape: s32[2,1], index: 1, kind: input, shape index: {}]
  %s2 = inlined_call_operand.vmem [shape: f32[32,192], index: 2, kind: input, shape index: {}]
  %s3 = inlined_call_operand.vmem [shape: f32[1,192], index: 3, kind: input, shape index: {}]
  %s4 = inlined_call_operand.vmem [shape: f32[32,96], index: 4, kind: input, shape index: {}]
  %s5 = inlined_call_operand.vmem [shape: f32[1,96], index: 5, kind: input, shape index: {}]
  %s6 = inlined_call_operand.vmem [shape: f32[32,96], index: 6, kind: input, shape index: {}]
  %s7 = inlined_call_operand.vmem [shape: f32[1,96], index: 7, kind: input, shape index: {}]
  %s8 = inlined_call_operand.vmem [shape: f32[32,32], index: 8, kind: input, shape index: {}]
  %s9 = inlined_call_operand.vmem [shape: f32[32,32], index: 9, kind: input, shape index: {}]
  %s10 = inlined_call_operand.vmem [shape: f32[32,8], index: 10, kind: input, shape index: {}]
  %s11 = inlined_call_operand.hbm [shape: f32[512,256], index: 11, kind: input, shape index: {}]
  %s12 = inlined_call_operand.vmem [shape: f32[1,256], index: 12, kind: input, shape index: {}]
  %s13 = inlined_call_operand.vmem [shape: f32[256,2], index: 13, kind: input, shape index: {}]
  %s14 = inlined_call_operand.vmem [shape: f32[1,2], index: 14, kind: input, shape index: {}]
  %s15 = inlined_call_operand.hbm [shape: f32[2,2], index: 15, kind: output, shape index: {}]
  %s16 = sld [smem:[#allocation0]]
  $region74: #{tpu_custom_call.1} parent=0
    _
  %s18 = ssub.s32 1, %s16
  %s19 = scalar_select 0, %s18, %s16
  $region1: #{tpu_custom_call.1} parent=0
    #allocation6 [shape = 'u8[524288]{0}', space=vmem, size = 0x80000, scoped, tag = 'input window, operand 11, single buffered']
    #allocation7 [shape = 's32[1]{0}', space=sflag, size = 0x4, scoped, tag = 'scoped memory for tpu_custom_call.1']
    #allocation8 [shape = 's32[1]{0}', space=sflag, size = 0x4, scoped, tag = 'scoped memory for tpu_custom_call.1']
    #allocation9 [shape = 'u8[1024]{0}', space=vmem, size = 0x400, scoped, tag = 'output window, operand 0, single buffered']
    %20 = vsyncpa [#allocation7], 0
    %21 = vsyncpa [#allocation8], 0
    // Predicated region
    $region2: #{tpu_custom_call.1} parent=1 // pred_check
      _
    $region3: #{tpu_custom_call.1} parent=1 // pred_check_branch
      %23 = sbr.rel (0) target = $region5
    $region4: #{tpu_custom_call.1} parent=1 // pred_region
      _
    $region5: #{tpu_custom_call.1} parent=1 // pred_fallthru
      _
    // Predicated region
    $region6: #{tpu_custom_call.1} parent=1 // pred_check
      _
    $region7: #{tpu_custom_call.1} parent=1 // pred_check_branch
      %25 = sbr.rel (0) target = $region9
    $region8: #{tpu_custom_call.1} parent=1 // pred_region
      _
    $region9: #{tpu_custom_call.1} parent=1 // pred_fallthru
      _
    // Predicated region
    $region10: #{tpu_custom_call.1} parent=1 // pred_check
      _
    $region11: #{tpu_custom_call.1} parent=1 // pred_check_branch
      %27 = sbr.rel (0) target = $region13
    $region12: #{tpu_custom_call.1} parent=1 // pred_region
      _
    $region13: #{tpu_custom_call.1} parent=1 // pred_fallthru
      _
    // Predicated region
    $region14: #{tpu_custom_call.1} parent=1 // pred_check
      _
    $region15: #{tpu_custom_call.1} parent=1 // pred_check_branch
      %29 = sbr.rel (0) target = $region17
    $region16: #{tpu_custom_call.1} parent=1 // pred_region
      _
    $region17: #{tpu_custom_call.1} parent=1 // pred_fallthru
      _
    // Predicated region
    $region18: #{tpu_custom_call.1} parent=1 // pred_check
      _
    $region19: #{tpu_custom_call.1} parent=1 // pred_check_branch
      %31 = sbr.rel (0) target = $region21
    $region20: #{tpu_custom_call.1} parent=1 // pred_region
      _
    $region21: #{tpu_custom_call.1} parent=1 // pred_fallthru
      _
    // Predicated region
    $region22: #{tpu_custom_call.1} parent=1 // pred_check
      _
    $region23: #{tpu_custom_call.1} parent=1 // pred_check_branch
      %33 = sbr.rel (0) target = $region25
    $region24: #{tpu_custom_call.1} parent=1 // pred_region
      _
    $region25: #{tpu_custom_call.1} parent=1 // pred_fallthru
      _
    // Predicated region
    $region26: #{tpu_custom_call.1} parent=1 // pred_check
      _
    $region27: #{tpu_custom_call.1} parent=1 // pred_check_branch
      %35 = sbr.rel (0) target = $region29
    $region28: #{tpu_custom_call.1} parent=1 // pred_region
      _
    $region29: #{tpu_custom_call.1} parent=1 // pred_fallthru
      _
    // Predicated region
    $region30: #{tpu_custom_call.1} parent=1 // pred_check
      _
    $region31: #{tpu_custom_call.1} parent=1 // pred_check_branch
      %37 = sbr.rel (0) target = $region33
    $region32: #{tpu_custom_call.1} parent=1 // pred_region
      _
    $region33: #{tpu_custom_call.1} parent=1 // pred_fallthru
      _
    // Predicated region
    $region34: #{tpu_custom_call.1} parent=1 // pred_check
      _
    $region35: #{tpu_custom_call.1} parent=1 // pred_check_branch
      %39 = sbr.rel (0) target = $region37
    $region36: #{tpu_custom_call.1} parent=1 // pred_region
      _
    $region37: #{tpu_custom_call.1} parent=1 // pred_fallthru
      _
    // Predicated region
    $region38: #{tpu_custom_call.1} parent=1 // pred_check
      _
    $region39: #{tpu_custom_call.1} parent=1 // pred_check_branch
      %41 = sbr.rel (0) target = $region41
    $region40: #{tpu_custom_call.1} parent=1 // pred_region
      _
    $region41: #{tpu_custom_call.1} parent=1 // pred_fallthru
      _
    // Predicated region
    $region42: #{tpu_custom_call.1} parent=1 // pred_check
      _
    $region43: #{tpu_custom_call.1} parent=1 // pred_check_branch
      %43 = sbr.rel (0) target = $region45
    $region44: #{tpu_custom_call.1} parent=1 // pred_region
      _
    $region45: #{tpu_custom_call.1} parent=1 // pred_fallthru
      _
    // Predicated region
    $region46: #{tpu_custom_call.1} parent=1 // pred_check
      _
    $region47: #{tpu_custom_call.1} parent=1 // pred_check_branch
      %45 = sbr.rel (0) target = $region49
    $region48: #{tpu_custom_call.1} parent=1 // pred_region
      %s47 = ssub.s32 16384, 16384
      %48 = vsyncadd [#allocation7], %s47
      %s49 = sshll.u32 [#allocation6], 4
      %s50 = int_to_ptr.vmem [resolvable:$true] %s49
      %55 = dma.hbm_to_vmem [thread:$0]  %s11, 16384, %s50, [#allocation7], 256, 256, 16
    $region49: #{tpu_custom_call.1} parent=1 // pred_fallthru
      _
    // Predicated region
    $region50: #{tpu_custom_call.1} parent=1 // pred_check
      _
    $region51: #{tpu_custom_call.1} parent=1 // pred_check_branch
      %57 = sbr.rel (0) target = $region53
    $region52: #{tpu_custom_call.1} parent=1 // pred_region
      _
    $region53: #{tpu_custom_call.1} parent=1 // pred_fallthru
      _
    // Predicated region
    $region54: #{tpu_custom_call.1} parent=1 // pred_check
      _
    $region55: #{tpu_custom_call.1} parent=1 // pred_check_branch
      %59 = sbr.rel (0) target = $region57
    $region56: #{tpu_custom_call.1} parent=1 // pred_region
      _
    $region57: #{tpu_custom_call.1} parent=1 // pred_fallthru
      _
    // Predicated region
    $region58: #{tpu_custom_call.1} parent=1 // pred_check
      _
    $region59: #{tpu_custom_call.1} parent=1 // pred_check_branch
      %61 = sbr.rel (0) target = $region61
    $region60: #{tpu_custom_call.1} parent=1 // pred_region
      _
    $region61: #{tpu_custom_call.1} parent=1 // pred_fallthru
      _
    // Predicated region
    $region62: #{tpu_custom_call.1} parent=1 // pred_check
      _
    $region63: #{tpu_custom_call.1} parent=1 // pred_check_branch
      %63 = sbr.rel (0) target = $region65
    $region64: #{tpu_custom_call.1} parent=1 // pred_region
      %64 = dma.done [#allocation7], 16384
    $region65: #{tpu_custom_call.1} parent=1 // pred_fallthru
      _
    %v65 = vld [vmem:[%s1] sm:$0x3]
    %v66 = vld [vmem:[%s0] sm:$0x3]
    %v67 = vld [vmem:[%s0 + $0x2] sm:$0x3]
    %v68 = vld [vmem:[%s0 + $0x4] sm:$0x3]
    %v69 = vld [vmem:[%s0 + $0x6] sm:$0x3]
    %v70 = vld [vmem:[%s0 + $0x8] sm:$0x3]
    %v71 = vld [vmem:[%s0 + $0xa] sm:$0x3]
    %v72 = vld [vmem:[%s0 + $0xc] sm:$0x3]
    %v73 = vld [vmem:[%s0 + $0xe] sm:$0x3]
    %v74 = vld [vmem:[%s2] sm:$0xff]
    %v75 = vld [vmem:[%s2 + $0x8] sm:$0xff]
    %v76 = vld [vmem:[%s2 + $0x10] sm:$0xff]
    %v77 = vld [vmem:[%s2 + $0x18] sm:$0xff]
    %v78 = vld [vmem:[%s2 + $0x20] sm:$0xff]
    %v79 = vld [vmem:[%s2 + $0x28] sm:$0xff]
    %v80 = vld [vmem:[%s2 + $0x30] sm:$0xff]
    %v81 = vld [vmem:[%s2 + $0x38] sm:$0xff]
    %v82 = vld [vmem:[%s3] sm:$0x3]
    %v84 = vlaneseq
    %v85 = vshrl.u32 %v84, 7
    %v86 = vsub.s32 0, %v85
    %v87 = vrot.slane %v82, %v86
    %v88 = vlaneseq
    %v89 = vshrl.u32 %v88, 7
    %v90 = vsub.s32 1, %v89
    %v91 = vrot.slane %v82, %v90
    %v102 = vcombine.low %v66, %v67
    %v103 = vcombine.low %v68, %v69
    %v105 = vunpack.c.l.s4 1983009808
    %v106 = vunpack.c.0.s8 %v105
    %v107 = vlaneseq
    %v108 = vshrl.u32 %v107, 7
    %v109 = vsub.s32 %v106, %v108
    %v110 = vrot.slane %v102, %v109
    %v112 = vunpack.c.l.s4 1983009808
    %v113 = vunpack.c.0.s8 %v112
    %v114 = vlaneseq
    %v115 = vshrl.u32 %v114, 7
    %v116 = vsub.s32 %v113, %v115
    %v117 = vrot.slane %v103, %v116
    %v118 = vcombine.low %v110, %v117
    %v119 = vcombine.low %v70, %v71
    %v120 = vcombine.low %v72, %v73
    %v122 = vunpack.c.l.s4 1983009808
    %v123 = vunpack.c.0.s8 %v122
    %v124 = vlaneseq
    %v125 = vshrl.u32 %v124, 7
    %v126 = vsub.s32 %v123, %v125
    %v127 = vrot.slane %v119, %v126
    %v129 = vunpack.c.l.s4 1983009808
    %v130 = vunpack.c.0.s8 %v129
    %v131 = vlaneseq
    %v132 = vshrl.u32 %v131, 7
    %v133 = vsub.s32 %v130, %v132
    %v134 = vrot.slane %v120, %v133
    %v135 = vcombine.low %v127, %v134
    %vm136 = vcmask 261120
    %v137 = vsel %vm136, %v118, 0
    %v139 = vsel %vm136, %v135, 0
    %141 = vmatprep.subr.mxu0 0.0
    %142 = vmatpush1.msra.mxu0 0.0
    %143 = vmatprep.subr.mxu0 0.0
    %144 = vmatpush1.msra.mxu0 0.0
    %145 = vmatprep.subr.mxu0 0.0
    %146 = vmatpush1.msra.mxu0 0.0
    %147 = vmatprep.subr.mxu0 0.0
    %148 = vmatpush1.msra.mxu0 0.0
    %149 = vmatprep.subr.mxu0 0.0
    %150 = vmatpush1.msra.mxu0 0.0
    %151 = vmatprep.subr.mxu0 0.0
    %152 = vmatpush1.msra.mxu0 0.0
    %153 = vmatprep.subr.mxu0 0.0
    %154 = vmatpush1.msra.mxu0 0.0
    %155 = vmatprep.subr.mxu0 0.0
    %156 = vmatpush1.msra.mxu0 0.0
    %157 = vmatprep.subr.mxu0 0.0
    %158 = vmatpush1.msra.mxu0 0.0
    %159 = vmatprep.subr.mxu0 0.0
    %160 = vmatpush1.msra.mxu0 0.0
    %161 = vmatprep.subr.mxu0 0.0
    %162 = vmatpush1.msra.mxu0 0.0
    %163 = vmatprep.subr.mxu0 0.0
    %164 = vmatpush1.msra.mxu0 0.0
    %165 = vmatprep.subr.mxu0 %v81
    %166 = vmatpush1.msra.mxu0 %v80
    %167 = vmatprep.subr.mxu0 %v79
    %168 = vmatpush1.msra.mxu0 %v78
    %169 = vmatprep.subr.mxu0 %v77
    %170 = vmatpush1.msra.mxu0 %v76
    %171 = vmatprep.subr.mxu0 %v75
    %172 = vmatpush1.msra.mxu0 %v74
    %173 = vmatprep.subr.mxu0 0.0
    %174 = vmatpush2.msra.mxu0 0.0
    %175 = vmatprep.subr.mxu0 0.0
    %176 = vmatpush2.msra.mxu0 0.0
    %177 = vmatprep.subr.mxu0 0.0
    %178 = vmatpush2.msra.mxu0 0.0
    %179 = vmatprep.subr.mxu0 0.0
    %180 = vmatpush2.msra.mxu0 0.0
    %181 = vmatprep.subr.mxu0 0.0
    %182 = vmatpush2.msra.mxu0 0.0
    %183 = vmatprep.subr.mxu0 0.0
    %184 = vmatpush2.msra.mxu0 0.0
    %185 = vmatprep.subr.mxu0 0.0
    %186 = vmatpush2.msra.mxu0 0.0
    %187 = vmatprep.subr.mxu0 0.0
    %188 = vmatpush2.msra.mxu0 0.0
    %189 = vmatprep.subr.mxu0 0.0
    %190 = vmatpush2.msra.mxu0 0.0
    %191 = vmatprep.subr.mxu0 0.0
    %192 = vmatpush2.msra.mxu0 0.0
    %193 = vmatprep.subr.mxu0 0.0
    %194 = vmatpush2.msra.mxu0 0.0
    %195 = vmatprep.subr.mxu0 0.0
    %196 = vmatpush2.msra.mxu0 0.0
    %197 = vmatprep.subr.mxu0 0.0
    %198 = vmatpush2.msra.mxu0 0.0
    %199 = vmatprep.subr.mxu0 0.0
    %200 = vmatpush2.msra.mxu0 0.0
    %201 = vmatprep.subr.mxu0 0.0
    %202 = vmatpush2.msra.mxu0 0.0
    %203 = vmatprep.subr.mxu0 0.0
    %204 = vmatpush2.msra.mxu0 0.0
    %205 = vmatprep.mubr.f32.mxu0 0.0
    %206 = vmatmul.mubr.f32.gmra.mxu0 %v137
    %v207 = vpop.f32.mrf.mxu0
    %v208 = vadd.f32 %v87, %v207
    %v209 = vpop.f32.mrf.mxu0
    %v210 = vadd.f32 %v91, %v209
    %211 = vmatprep.mubr.f32.mxu0 0.0
    %212 = vmatmul.mubr.f32.gmra.mxu0 %v139
    %v213 = vpop.f32.mrf.mxu0
    %v214 = vadd.f32 %v87, %v213
    %v215 = vpop.f32.mrf.mxu0
    %v216 = vadd.f32 %v91, %v215
    %217 = vdwg.mxu0
    %v220 = vcombine.high %v208, %v208
    %v222 = vunpack.c.l.s4 1983009808
    %v223 = vunpack.c.0.s8 %v222
    %v224 = vlaneseq
    %v225 = vshrl.u32 %v224, 7
    %v226 = vsub.s32 %v223, %v225
    %v227 = vrot.slane %v208, %v226
    %v229 = vunpack.c.l.s4 1983009808
    %v230 = vunpack.c.0.s8 %v229
    %v231 = vlaneseq
    %v232 = vshrl.u32 %v231, 7
    %v233 = vsub.s32 %v230, %v232
    %v234 = vrot.slane %v220, %v233
    %v235 = vcombine.high %v227, %v227
    %v236 = vcombine.high %v234, %v234
    %v237 = vcombine.high %v214, %v214
    %v239 = vunpack.c.l.s4 1983009808
    %v240 = vunpack.c.0.s8 %v239
    %v241 = vlaneseq
    %v242 = vshrl.u32 %v241, 7
    %v243 = vsub.s32 %v240, %v242
    %v244 = vrot.slane %v214, %v243
    %v246 = vunpack.c.l.s4 1983009808
    %v247 = vunpack.c.0.s8 %v246
    %v248 = vlaneseq
    %v249 = vshrl.u32 %v248, 7
    %v250 = vsub.s32 %v247, %v249
    %v251 = vrot.slane %v237, %v250
    %v252 = vcombine.high %v244, %v244
    %v253 = vcombine.high %v251, %v251
    %vm262 = vcmask 779264
    %263 = vst.msk [vmem:[#allocation2] sm:$0x3] %vm262, %v227
    %264 = vst.msk [vmem:[#allocation2 + $0x2] sm:$0x3] %vm262, %v235
    %265 = vst.msk [vmem:[#allocation2 + $0x4] sm:$0x3] %vm262, %v234
    %266 = vst.msk [vmem:[#allocation2 + $0x6] sm:$0x3] %vm262, %v236
    %267 = vst.msk [vmem:[#allocation2 + $0x8] sm:$0x3] %vm262, %v244
    %268 = vst.msk [vmem:[#allocation2 + $0xa] sm:$0x3] %vm262, %v252
    %269 = vst.msk [vmem:[#allocation2 + $0xc] sm:$0x3] %vm262, %v251
    %270 = vst.msk [vmem:[#allocation2 + $0xe] sm:$0x3] %vm262, %v253
    %v273 = vcombine.low %v208, %v210
    %v274 = vcombine.high %v208, %v210
    %v276 = vunpack.c.l.s4 1983009808
    %v277 = vunpack.c.0.s8 %v276
    %v278 = vlaneseq
    %v279 = vshrl.u32 %v278, 7
    %v280 = vsub.s32 %v277, %v279
    %v281 = vrot.slane %v273, %v280
    %v283 = vunpack.c.l.s4 1983009808
    %v284 = vunpack.c.0.s8 %v283
    %v285 = vlaneseq
    %v286 = vshrl.u32 %v285, 7
    %v287 = vsub.s32 %v284, %v286
    %v288 = vrot.slane %v274, %v287
    %v289 = vcombine.high %v281, %v281
    %v290 = vcombine.high %v288, %v288
    %v291 = vcombine.low %v214, %v216
    %v292 = vcombine.high %v214, %v216
    %v294 = vunpack.c.l.s4 1983009808
    %v295 = vunpack.c.0.s8 %v294
    %v296 = vlaneseq
    %v297 = vshrl.u32 %v296, 7
    %v298 = vsub.s32 %v295, %v297
    %v299 = vrot.slane %v291, %v298
    %v301 = vunpack.c.l.s4 1983009808
    %v302 = vunpack.c.0.s8 %v301
    %v303 = vlaneseq
    %v304 = vshrl.u32 %v303, 7
    %v305 = vsub.s32 %v302, %v304
    %v306 = vrot.slane %v292, %v305
    %v307 = vcombine.high %v299, %v299
    %v308 = vcombine.high %v306, %v306
    %v310 = vunpack.c.l.s4 1983009808
    %v311 = vunpack.c.0.s8 %v310
    %v312 = vlaneseq
    %v313 = vshrl.u32 %v312, 7
    %v314 = vsub.s32 %v311, %v313
    %v315 = vrot.slane %v281, %v314
    %v316 = vcombine.high %v315, %v315
    %v318 = vunpack.c.l.s4 1983009808
    %v319 = vunpack.c.0.s8 %v318
    %v320 = vlaneseq
    %v321 = vshrl.u32 %v320, 7
    %v322 = vsub.s32 %v319, %v321
    %v323 = vrot.slane %v289, %v322
    %v324 = vcombine.high %v323, %v323
    %v326 = vunpack.c.l.s4 1983009808
    %v327 = vunpack.c.0.s8 %v326
    %v328 = vlaneseq
    %v329 = vshrl.u32 %v328, 7
    %v330 = vsub.s32 %v327, %v329
    %v331 = vrot.slane %v288, %v330
    %v332 = vcombine.high %v331, %v331
    %v334 = vunpack.c.l.s4 1983009808
    %v335 = vunpack.c.0.s8 %v334
    %v336 = vlaneseq
    %v337 = vshrl.u32 %v336, 7
    %v338 = vsub.s32 %v335, %v337
    %v339 = vrot.slane %v290, %v338
    %v340 = vcombine.high %v339, %v339
    %v342 = vunpack.c.l.s4 1983009808
    %v343 = vunpack.c.0.s8 %v342
    %v344 = vlaneseq
    %v345 = vshrl.u32 %v344, 7
    %v346 = vsub.s32 %v343, %v345
    %v347 = vrot.slane %v299, %v346
    %v348 = vcombine.high %v347, %v347
    %v350 = vunpack.c.l.s4 1983009808
    %v351 = vunpack.c.0.s8 %v350
    %v352 = vlaneseq
    %v353 = vshrl.u32 %v352, 7
    %v354 = vsub.s32 %v351, %v353
    %v355 = vrot.slane %v307, %v354
    %v356 = vcombine.high %v355, %v355
    %v358 = vunpack.c.l.s4 1983009808
    %v359 = vunpack.c.0.s8 %v358
    %v360 = vlaneseq
    %v361 = vshrl.u32 %v360, 7
    %v362 = vsub.s32 %v359, %v361
    %v363 = vrot.slane %v306, %v362
    %v364 = vcombine.high %v363, %v363
    %v366 = vunpack.c.l.s4 1983009808
    %v367 = vunpack.c.0.s8 %v366
    %v368 = vlaneseq
    %v369 = vshrl.u32 %v368, 7
    %v370 = vsub.s32 %v367, %v369
    %v371 = vrot.slane %v308, %v370
    %v372 = vcombine.high %v371, %v371
    %373 = vrot.lane.b32.xlu0 %v315, 32
    %v374 = vpop.permute.xlu0 %373
    %375 = vrot.lane.b32.xlu0 %v316, 32
    %v376 = vpop.permute.xlu0 %375
    %377 = vrot.lane.b32.xlu0 %v323, 32
    %v378 = vpop.permute.xlu0 %377
    %379 = vrot.lane.b32.xlu0 %v324, 32
    %v380 = vpop.permute.xlu0 %379
    %381 = vrot.lane.b32.xlu0 %v331, 32
    %v382 = vpop.permute.xlu0 %381
    %383 = vrot.lane.b32.xlu0 %v332, 32
    %v384 = vpop.permute.xlu0 %383
    %385 = vrot.lane.b32.xlu0 %v339, 32
    %v386 = vpop.permute.xlu0 %385
    %387 = vrot.lane.b32.xlu0 %v340, 32
    %v388 = vpop.permute.xlu0 %387
    %389 = vrot.lane.b32.xlu0 %v347, 32
    %v390 = vpop.permute.xlu0 %389
    %391 = vrot.lane.b32.xlu0 %v348, 32
    %v392 = vpop.permute.xlu0 %391
    %393 = vrot.lane.b32.xlu0 %v355, 32
    %v394 = vpop.permute.xlu0 %393
    %395 = vrot.lane.b32.xlu0 %v356, 32
    %v396 = vpop.permute.xlu0 %395
    %397 = vrot.lane.b32.xlu0 %v363, 32
    %v398 = vpop.permute.xlu0 %397
    %399 = vrot.lane.b32.xlu0 %v364, 32
    %v400 = vpop.permute.xlu0 %399
    %401 = vrot.lane.b32.xlu0 %v371, 32
    %v402 = vpop.permute.xlu0 %401
    %403 = vrot.lane.b32.xlu0 %v372, 32
    %v404 = vpop.permute.xlu0 %403
    %v405 = vsel %vm136, %v374, %v376
    %v406 = vsel %vm136, %v378, %v380
    %v407 = vsel %vm136, %v382, %v384
    %v408 = vsel %vm136, %v386, %v388
    %v409 = vsel %vm136, %v390, %v392
    %v410 = vsel %vm136, %v394, %v396
    %v411 = vsel %vm136, %v398, %v400
    %v412 = vsel %vm136, %v402, %v404
    %421 = vst.msk [vmem:[#allocation3] sm:$0x3] %vm262, %v405
    %422 = vst.msk [vmem:[#allocation3 + $0x2] sm:$0x3] %vm262, %v406
    %423 = vst.msk [vmem:[#allocation3 + $0x4] sm:$0x3] %vm262, %v407
    %424 = vst.msk [vmem:[#allocation3 + $0x6] sm:$0x3] %vm262, %v408
    %425 = vst.msk [vmem:[#allocation3 + $0x8] sm:$0x3] %vm262, %v409
    %426 = vst.msk [vmem:[#allocation3 + $0xa] sm:$0x3] %vm262, %v410
    %427 = vst.msk [vmem:[#allocation3 + $0xc] sm:$0x3] %vm262, %v411
    %428 = vst.msk [vmem:[#allocation3 + $0xe] sm:$0x3] %vm262, %v412
    %v429 = vld [vmem:[%s4] sm:$0xff]
    %v430 = vld [vmem:[%s4 + $0x8] sm:$0xff]
    %v431 = vld [vmem:[%s4 + $0x10] sm:$0xff]
    %v432 = vld [vmem:[%s4 + $0x18] sm:$0xff]
    %v433 = vld [vmem:[%s6] sm:$0xff]
    %v434 = vld [vmem:[%s6 + $0x8] sm:$0xff]
    %v435 = vld [vmem:[%s6 + $0x10] sm:$0xff]
    %v436 = vld [vmem:[%s6 + $0x18] sm:$0xff]
    %v437 = vld [vmem:[%s5] sm:$0x1]
    %v439 = vlaneseq
    %v440 = vshrl.u32 %v439, 7
    %v441 = vsub.s32 0, %v440
    %v442 = vrot.slane %v437, %v441
    %v444 = vld [vmem:[%s7] sm:$0x1]
    %v446 = vlaneseq
    %v447 = vshrl.u32 %v446, 7
    %v448 = vsub.s32 0, %v447
    %v449 = vrot.slane %v444, %v448
    %vm451 = vcmp.gt.s32.totalorder %v65, 0
    %v452 = vld [vmem:[#allocation2] sm:$0x3]
    %v454 = vsel %vm136, 0.0, 0
    %456 = vmatprep.subr.mxu0 0.0
    %457 = vmatpush1.msra.mxu0 0.0
    %458 = vmatprep.subr.mxu0 0.0
    %459 = vmatpush1.msra.mxu0 0.0
    %460 = vmatprep.subr.mxu0 0.0
    %461 = vmatpush1.msra.mxu0 0.0
    %462 = vmatprep.subr.mxu0 0.0
    %463 = vmatpush1.msra.mxu0 0.0
    %464 = vmatprep.subr.mxu0 0.0
    %465 = vmatpush1.msra.mxu0 0.0
    %466 = vmatprep.subr.mxu0 0.0
    %467 = vmatpush1.msra.mxu0 0.0
    %468 = vmatprep.subr.mxu0 0.0
    %469 = vmatpush1.msra.mxu0 0.0
    %470 = vmatprep.subr.mxu0 0.0
    %471 = vmatpush1.msra.mxu0 0.0
    %472 = vmatprep.subr.mxu0 0.0
    %473 = vmatpush1.msra.mxu0 0.0
    %474 = vmatprep.subr.mxu0 0.0
    %475 = vmatpush1.msra.mxu0 0.0
    %476 = vmatprep.subr.mxu0 0.0
    %477 = vmatpush1.msra.mxu0 0.0
    %478 = vmatprep.subr.mxu0 0.0
    %479 = vmatpush1.msra.mxu0 0.0
    %480 = vmatprep.subr.mxu0 0.0
    %481 = vmatpush1.msra.mxu0 %v432
    %482 = vmatprep.subr.mxu0 0.0
    %483 = vmatpush1.msra.mxu0 %v431
    %484 = vmatprep.subr.mxu0 0.0
    %485 = vmatpush1.msra.mxu0 %v430
    %486 = vmatprep.subr.mxu0 0.0
    %487 = vmatpush1.msra.mxu0 %v429
    %488 = vmatprep.subr.mxu0 0.0
    %489 = vmatpush2.msra.mxu0 0.0
    %490 = vmatprep.subr.mxu0 0.0
    %491 = vmatpush2.msra.mxu0 0.0
    %492 = vmatprep.subr.mxu0 0.0
    %493 = vmatpush2.msra.mxu0 0.0
    %494 = vmatprep.subr.mxu0 0.0
    %495 = vmatpush2.msra.mxu0 0.0
    %496 = vmatprep.subr.mxu0 0.0
    %497 = vmatpush2.msra.mxu0 0.0
    %498 = vmatprep.subr.mxu0 0.0
    %499 = vmatpush2.msra.mxu0 0.0
    %500 = vmatprep.subr.mxu0 0.0
    %501 = vmatpush2.msra.mxu0 0.0
    %502 = vmatprep.subr.mxu0 0.0
    %503 = vmatpush2.msra.mxu0 0.0
    %504 = vmatprep.subr.mxu0 0.0
    %505 = vmatpush2.msra.mxu0 0.0
    %506 = vmatprep.subr.mxu0 0.0
    %507 = vmatpush2.msra.mxu0 0.0
    %508 = vmatprep.subr.mxu0 0.0
    %509 = vmatpush2.msra.mxu0 0.0
    %510 = vmatprep.subr.mxu0 0.0
    %511 = vmatpush2.msra.mxu0 0.0
    %512 = vmatprep.subr.mxu0 0.0
    %513 = vmatpush2.msra.mxu0 0.0
    %514 = vmatprep.subr.mxu0 0.0
    %515 = vmatpush2.msra.mxu0 0.0
    %516 = vmatprep.subr.mxu0 0.0
    %517 = vmatpush2.msra.mxu0 0.0
    %518 = vmatprep.subr.mxu0 0.0
    %519 = vmatpush2.msra.mxu0 0.0
    %520 = vmatprep.mubr.f32.mxu0 0.0
    %521 = vmatmul.mubr.f32.gmra.mxu0 %v454
    %v522 = vpop.f32.mrf.mxu0
    %v523 = vadd.f32 %v442, %v522
    %v524 = vpop.f32.mrf.mxu0
    %525 = vdwg.mxu0
    %v526 = vadd.f32 %v452, %v523
    %v527 = vxor.u32 %v526, 2147483648
    %v528 = vmul.f32 %v527, 1.442695
    %v529 = vpow.pop %v528
    %v530 = vadd.f32 %v529, 1.0
    %v531 = vrcp.pop %v530
    %v532 = vmul.f32 1.0, %v531
    %534 = vrot.lane.b32.xlu0 %v523, 64
    %v535 = vpop.permute.xlu0 %534
    %v537 = vmul.f32 %v532, %v535
    %539 = vrot.lane.b32.xlu0 %v537, 64
    %v540 = vpop.permute.xlu0 %539
    %v542 = vadd.f32 %v452, %v540
    %v543 = vtanh.pop %v542
    %v544 = vsub.f32 0.0, %v543
    %546 = vrot.lane.b32.xlu0 %v544, 96
    %v547 = vpop.permute.xlu0 %546
    %v549 = vmul.f32 %v532, %v547
    %551 = vrot.lane.b32.xlu0 %v549, 32
    %v552 = vpop.permute.xlu0 %551
    %v554 = vadd.f32 %v543, %v552
    %v555 = vsel %vm451, 1, 0
    %556 = vset.pattern.permute.xlu0 0
    %557 = vperm.xlu0 %556, %v555
    %v558 = vpop.permute.xlu0 %557
    %vm559 = vcmp.eq.s32.totalorder %v558, 1
    %v560 = vsel %vm559, %v554, 0.0
    %562 = vrot.lane.b32.xlu0 %v560, 64
    %v563 = vpop.permute.xlu0 %562
    %vm565 = vcmask 254976
    %566 = vst.msk [vmem:[#allocation4] sm:$0x3] %vm565, %v563
    %vm567 = vcmp.gt.s32.totalorder %v65, 7
    %s568 = scalar_lea.vmem [#allocation3], 14
    %v569 = vld [vmem:[%s568] sm:$0x3]
    %570 = vmatprep.subr.mxu0 0.0
    %571 = vmatpush1.msra.mxu0 0.0
    %572 = vmatprep.subr.mxu0 0.0
    %573 = vmatpush1.msra.mxu0 0.0
    %574 = vmatprep.subr.mxu0 0.0
    %575 = vmatpush1.msra.mxu0 0.0
    %576 = vmatprep.subr.mxu0 0.0
    %577 = vmatpush1.msra.mxu0 0.0
    %578 = vmatprep.subr.mxu0 0.0
    %579 = vmatpush1.msra.mxu0 0.0
    %580 = vmatprep.subr.mxu0 0.0
    %581 = vmatpush1.msra.mxu0 0.0
    %582 = vmatprep.subr.mxu0 0.0
    %583 = vmatpush1.msra.mxu0 0.0
    %584 = vmatprep.subr.mxu0 0.0
    %585 = vmatpush1.msra.mxu0 0.0
    %586 = vmatprep.subr.mxu0 0.0
    %587 = vmatpush1.msra.mxu0 0.0
    %588 = vmatprep.subr.mxu0 0.0
    %589 = vmatpush1.msra.mxu0 0.0
    %590 = vmatprep.subr.mxu0 0.0
    %591 = vmatpush1.msra.mxu0 0.0
    %592 = vmatprep.subr.mxu0 0.0
    %593 = vmatpush1.msra.mxu0 0.0
    %594 = vmatprep.subr.mxu0 0.0
    %595 = vmatpush1.msra.mxu0 %v436
    %596 = vmatprep.subr.mxu0 0.0
    %597 = vmatpush1.msra.mxu0 %v435
    %598 = vmatprep.subr.mxu0 0.0
    %599 = vmatpush1.msra.mxu0 %v434
    %600 = vmatprep.subr.mxu0 0.0
    %601 = vmatpush1.msra.mxu0 %v433
    %602 = vmatprep.subr.mxu0 0.0
    %603 = vmatpush2.msra.mxu0 0.0
    %604 = vmatprep.subr.mxu0 0.0
    %605 = vmatpush2.msra.mxu0 0.0
    %606 = vmatprep.subr.mxu0 0.0
    %607 = vmatpush2.msra.mxu0 0.0
    %608 = vmatprep.subr.mxu0 0.0
    %609 = vmatpush2.msra.mxu0 0.0
    %610 = vmatprep.subr.mxu0 0.0
    %611 = vmatpush2.msra.mxu0 0.0
    %612 = vmatprep.subr.mxu0 0.0
    %613 = vmatpush2.msra.mxu0 0.0
    %614 = vmatprep.subr.mxu0 0.0
    %615 = vmatpush2.msra.mxu0 0.0
    %616 = vmatprep.subr.mxu0 0.0
    %617 = vmatpush2.msra.mxu0 0.0
    %618 = vmatprep.subr.mxu0 0.0
    %619 = vmatpush2.msra.mxu0 0.0
    %620 = vmatprep.subr.mxu0 0.0
    %621 = vmatpush2.msra.mxu0 0.0
    %622 = vmatprep.subr.mxu0 0.0
    %623 = vmatpush2.msra.mxu0 0.0
    %624 = vmatprep.subr.mxu0 0.0
    %625 = vmatpush2.msra.mxu0 0.0
    %626 = vmatprep.subr.mxu0 0.0
    %627 = vmatpush2.msra.mxu0 0.0
    %628 = vmatprep.subr.mxu0 0.0
    %629 = vmatpush2.msra.mxu0 0.0
    %630 = vmatprep.subr.mxu0 0.0
    %631 = vmatpush2.msra.mxu0 0.0
    %632 = vmatprep.subr.mxu0 0.0
    %633 = vmatpush2.msra.mxu0 0.0
    %634 = vmatprep.mubr.f32.mxu0 0.0
    %635 = vmatmul.mubr.f32.gmra.mxu0 %v454
    %v636 = vpop.f32.mrf.mxu0
    %v637 = vadd.f32 %v449, %v636
    %v638 = vpop.f32.mrf.mxu0
    %639 = vdwg.mxu0
    %v640 = vadd.f32 %v569, %v637
    %v641 = vxor.u32 %v640, 2147483648
    %v642 = vmul.f32 %v641, 1.442695
    %v643 = vpow.pop %v642
    %v644 = vadd.f32 %v643, 1.0
    %v645 = vrcp.pop %v644
    %v646 = vmul.f32 1.0, %v645
    %648 = vrot.lane.b32.xlu0 %v637, 64
    %v649 = vpop.permute.xlu0 %648
    %v651 = vmul.f32 %v646, %v649
    %653 = vrot.lane.b32.xlu0 %v651, 64
    %v654 = vpop.permute.xlu0 %653
    %v656 = vadd.f32 %v569, %v654
    %v657 = vtanh.pop %v656
    %v658 = vsub.f32 0.0, %v657
    %660 = vrot.lane.b32.xlu0 %v658, 96
    %v661 = vpop.permute.xlu0 %660
    %v663 = vmul.f32 %v646, %v661
    %665 = vrot.lane.b32.xlu0 %v663, 32
    %v666 = vpop.permute.xlu0 %665
    %v668 = vadd.f32 %v657, %v666
    %v669 = vsel %vm567, 1, 0
    %670 = vset.pattern.permute.xlu0 0
    %671 = vperm.xlu0 %670, %v669
    %v672 = vpop.permute.xlu0 %671
    %vm673 = vcmp.eq.s32.totalorder %v672, 1
    %v674 = vsel %vm673, %v668, 0.0
    %676 = vrot.lane.b32.xlu0 %v674, 64
    %v677 = vpop.permute.xlu0 %676
    %s679 = scalar_lea.vmem [#allocation5], 14
    %680 = vst.msk [vmem:[%s679] sm:$0x3] %vm565, %v677
    %vm681 = vcmp.gt.s32.totalorder %v65, 1
    %s682 = scalar_lea.vmem [#allocation2], 2
    %v683 = vld [vmem:[%s682] sm:$0x3]
    %v684 = vsel %vm136, %v563, 0
    %686 = vmatprep.subr.mxu0 0.0
    %687 = vmatpush1.msra.mxu0 0.0
    %688 = vmatprep.subr.mxu0 0.0
    %689 = vmatpush1.msra.mxu0 0.0
    %690 = vmatprep.subr.mxu0 0.0
    %691 = vmatpush1.msra.mxu0 0.0
    %692 = vmatprep.subr.mxu0 0.0
    %693 = vmatpush1.msra.mxu0 0.0
    %694 = vmatprep.subr.mxu0 0.0
    %695 = vmatpush1.msra.mxu0 0.0
    %696 = vmatprep.subr.mxu0 0.0
    %697 = vmatpush1.msra.mxu0 0.0
    %698 = vmatprep.subr.mxu0 0.0
    %699 = vmatpush1.msra.mxu0 0.0
    %700 = vmatprep.subr.mxu0 0.0
    %701 = vmatpush1.msra.mxu0 0.0
    %702 = vmatprep.subr.mxu0 0.0
    %703 = vmatpush1.msra.mxu0 0.0
    %704 = vmatprep.subr.mxu0 0.0
    %705 = vmatpush1.msra.mxu0 0.0
    %706 = vmatprep.subr.mxu0 0.0
    %707 = vmatpush1.msra.mxu0 0.0
    %708 = vmatprep.subr.mxu0 0.0
    %709 = vmatpush1.msra.mxu0 0.0
    %710 = vmatprep.subr.mxu0 0.0
    %711 = vmatpush1.msra.mxu0 %v432
    %712 = vmatprep.subr.mxu0 0.0
    %713 = vmatpush1.msra.mxu0 %v431
    %714 = vmatprep.subr.mxu0 0.0
    %715 = vmatpush1.msra.mxu0 %v430
    %716 = vmatprep.subr.mxu0 0.0
    %717 = vmatpush1.msra.mxu0 %v429
    %718 = vmatprep.subr.mxu0 0.0
    %719 = vmatpush2.msra.mxu0 0.0
    %720 = vmatprep.subr.mxu0 0.0
    %721 = vmatpush2.msra.mxu0 0.0
    %722 = vmatprep.subr.mxu0 0.0
    %723 = vmatpush2.msra.mxu0 0.0
    %724 = vmatprep.subr.mxu0 0.0
    %725 = vmatpush2.msra.mxu0 0.0
    %726 = vmatprep.subr.mxu0 0.0
    %727 = vmatpush2.msra.mxu0 0.0
    %728 = vmatprep.subr.mxu0 0.0
    %729 = vmatpush2.msra.mxu0 0.0
    %730 = vmatprep.subr.mxu0 0.0
    %731 = vmatpush2.msra.mxu0 0.0
    %732 = vmatprep.subr.mxu0 0.0
    %733 = vmatpush2.msra.mxu0 0.0
    %734 = vmatprep.subr.mxu0 0.0
    %735 = vmatpush2.msra.mxu0 0.0
    %736 = vmatprep.subr.mxu0 0.0
    %737 = vmatpush2.msra.mxu0 0.0
    %738 = vmatprep.subr.mxu0 0.0
    %739 = vmatpush2.msra.mxu0 0.0
    %740 = vmatprep.subr.mxu0 0.0
    %741 = vmatpush2.msra.mxu0 0.0
    %742 = vmatprep.subr.mxu0 0.0
    %743 = vmatpush2.msra.mxu0 0.0
    %744 = vmatprep.subr.mxu0 0.0
    %745 = vmatpush2.msra.mxu0 0.0
    %746 = vmatprep.subr.mxu0 0.0
    %747 = vmatpush2.msra.mxu0 0.0
    %748 = vmatprep.subr.mxu0 0.0
    %749 = vmatpush2.msra.mxu0 0.0
    %750 = vmatprep.mubr.f32.mxu0 0.0
    %751 = vmatmul.mubr.f32.gmra.mxu0 %v684
    %v752 = vpop.f32.mrf.mxu0
    %v753 = vadd.f32 %v442, %v752
    %v754 = vpop.f32.mrf.mxu0
    %755 = vdwg.mxu0
    %v756 = vadd.f32 %v683, %v753
    %v757 = vxor.u32 %v756, 2147483648
    %v758 = vmul.f32 %v757, 1.442695
    %v759 = vpow.pop %v758
    %v760 = vadd.f32 %v759, 1.0
    %v761 = vrcp.pop %v760
    %v762 = vmul.f32 1.0, %v761
    %764 = vrot.lane.b32.xlu0 %v753, 64
    %v765 = vpop.permute.xlu0 %764
    %v767 = vmul.f32 %v762, %v765
    %769 = vrot.lane.b32.xlu0 %v767, 64
    %v770 = vpop.permute.xlu0 %769
    %v772 = vadd.f32 %v683, %v770
    %v773 = vtanh.pop %v772
    %v774 = vsub.f32 %v560, %v773
    %776 = vrot.lane.b32.xlu0 %v774, 96
    %v777 = vpop.permute.xlu0 %776
    %v779 = vmul.f32 %v762, %v777
    %781 = vrot.lane.b32.xlu0 %v779, 32
    %v782 = vpop.permute.xlu0 %781
    %v784 = vadd.f32 %v773, %v782
    %v785 = vsel %vm681, 1, 0
    %786 = vset.pattern.permute.xlu0 0
    %787 = vperm.xlu0 %786, %v785
    %v788 = vpop.permute.xlu0 %787
    %vm789 = vcmp.eq.s32.totalorder %v788, 1
    %v790 = vsel %vm789, %v784, %v560
    %v791 = vsel %vm789, %v784, 0.0
    %793 = vrot.lane.b32.xlu0 %v791, 64
    %v794 = vpop.permute.xlu0 %793
    %s796 = scalar_lea.vmem [#allocation4], 2
    %797 = vst.msk [vmem:[%s796] sm:$0x3] %vm565, %v794
    %vm798 = vcmp.gt.s32.totalorder %v65, 6
    %s799 = scalar_lea.vmem [#allocation3], 12
    %v800 = vld [vmem:[%s799] sm:$0x3]
    %v801 = vsel %vm136, %v677, 0
    %803 = vmatprep.subr.mxu0 0.0
    %804 = vmatpush1.msra.mxu0 0.0
    %805 = vmatprep.subr.mxu0 0.0
    %806 = vmatpush1.msra.mxu0 0.0
    %807 = vmatprep.subr.mxu0 0.0
    %808 = vmatpush1.msra.mxu0 0.0
    %809 = vmatprep.subr.mxu0 0.0
    %810 = vmatpush1.msra.mxu0 0.0
    %811 = vmatprep.subr.mxu0 0.0
    %812 = vmatpush1.msra.mxu0 0.0
    %813 = vmatprep.subr.mxu0 0.0
    %814 = vmatpush1.msra.mxu0 0.0
    %815 = vmatprep.subr.mxu0 0.0
    %816 = vmatpush1.msra.mxu0 0.0
    %817 = vmatprep.subr.mxu0 0.0
    %818 = vmatpush1.msra.mxu0 0.0
    %819 = vmatprep.subr.mxu0 0.0
    %820 = vmatpush1.msra.mxu0 0.0
    %821 = vmatprep.subr.mxu0 0.0
    %822 = vmatpush1.msra.mxu0 0.0
    %823 = vmatprep.subr.mxu0 0.0
    %824 = vmatpush1.msra.mxu0 0.0
    %825 = vmatprep.subr.mxu0 0.0
    %826 = vmatpush1.msra.mxu0 0.0
    %827 = vmatprep.subr.mxu0 0.0
    %828 = vmatpush1.msra.mxu0 %v436
    %829 = vmatprep.subr.mxu0 0.0
    %830 = vmatpush1.msra.mxu0 %v435
    %831 = vmatprep.subr.mxu0 0.0
    %832 = vmatpush1.msra.mxu0 %v434
    %833 = vmatprep.subr.mxu0 0.0
    %834 = vmatpush1.msra.mxu0 %v433
    %835 = vmatprep.subr.mxu0 0.0
    %836 = vmatpush2.msra.mxu0 0.0
    %837 = vmatprep.subr.mxu0 0.0
    %838 = vmatpush2.msra.mxu0 0.0
    %839 = vmatprep.subr.mxu0 0.0
    %840 = vmatpush2.msra.mxu0 0.0
    %841 = vmatprep.subr.mxu0 0.0
    %842 = vmatpush2.msra.mxu0 0.0
    %843 = vmatprep.subr.mxu0 0.0
    %844 = vmatpush2.msra.mxu0 0.0
    %845 = vmatprep.subr.mxu0 0.0
    %846 = vmatpush2.msra.mxu0 0.0
    %847 = vmatprep.subr.mxu0 0.0
    %848 = vmatpush2.msra.mxu0 0.0
    %849 = vmatprep.subr.mxu0 0.0
    %850 = vmatpush2.msra.mxu0 0.0
    %851 = vmatprep.subr.mxu0 0.0
    %852 = vmatpush2.msra.mxu0 0.0
    %853 = vmatprep.subr.mxu0 0.0
    %854 = vmatpush2.msra.mxu0 0.0
    %855 = vmatprep.subr.mxu0 0.0
    %856 = vmatpush2.msra.mxu0 0.0
    %857 = vmatprep.subr.mxu0 0.0
    %858 = vmatpush2.msra.mxu0 0.0
    %859 = vmatprep.subr.mxu0 0.0
    %860 = vmatpush2.msra.mxu0 0.0
    %861 = vmatprep.subr.mxu0 0.0
    %862 = vmatpush2.msra.mxu0 0.0
    %863 = vmatprep.subr.mxu0 0.0
    %864 = vmatpush2.msra.mxu0 0.0
    %865 = vmatprep.subr.mxu0 0.0
    %866 = vmatpush2.msra.mxu0 0.0
    %867 = vmatprep.mubr.f32.mxu0 0.0
    %868 = vmatmul.mubr.f32.gmra.mxu0 %v801
    %v869 = vpop.f32.mrf.mxu0
    %v870 = vadd.f32 %v449, %v869
    %v871 = vpop.f32.mrf.mxu0
    %872 = vdwg.mxu0
    %v873 = vadd.f32 %v800, %v870
    %v874 = vxor.u32 %v873, 2147483648
    %v875 = vmul.f32 %v874, 1.442695
    %v876 = vpow.pop %v875
    %v877 = vadd.f32 %v876, 1.0
    %v878 = vrcp.pop %v877
    %v879 = vmul.f32 1.0, %v878
    %881 = vrot.lane.b32.xlu0 %v870, 64
    %v882 = vpop.permute.xlu0 %881
    %v884 = vmul.f32 %v879, %v882
    %886 = vrot.lane.b32.xlu0 %v884, 64
    %v887 = vpop.permute.xlu0 %886
    %v889 = vadd.f32 %v800, %v887
    %v890 = vtanh.pop %v889
    %v891 = vsub.f32 %v674, %v890
    %893 = vrot.lane.b32.xlu0 %v891, 96
    %v894 = vpop.permute.xlu0 %893
    %v896 = vmul.f32 %v879, %v894
    %898 = vrot.lane.b32.xlu0 %v896, 32
    %v899 = vpop.permute.xlu0 %898
    %v901 = vadd.f32 %v890, %v899
    %v902 = vsel %vm798, 1, 0
    %903 = vset.pattern.permute.xlu0 0
    %904 = vperm.xlu0 %903, %v902
    %v905 = vpop.permute.xlu0 %904
    %vm906 = vcmp.eq.s32.totalorder %v905, 1
    %v907 = vsel %vm906, %v901, %v674
    %v908 = vsel %vm906, %v901, 0.0
    %910 = vrot.lane.b32.xlu0 %v908, 64
    %v911 = vpop.permute.xlu0 %910
    %s913 = scalar_lea.vmem [#allocation5], 12
    %914 = vst.msk [vmem:[%s913] sm:$0x3] %vm565, %v911
    %vm915 = vcmp.gt.s32.totalorder %v65, 2
    %s916 = scalar_lea.vmem [#allocation2], 4
    %v917 = vld [vmem:[%s916] sm:$0x3]
    %919 = vrot.lane.b32.xlu0 %v790, 64
    %v920 = vpop.permute.xlu0 %919
    %v921 = vsel %vm136, %v920, 0
    %923 = vmatprep.subr.mxu0 0.0
    %924 = vmatpush1.msra.mxu0 0.0
    %925 = vmatprep.subr.mxu0 0.0
    %926 = vmatpush1.msra.mxu0 0.0
    %927 = vmatprep.subr.mxu0 0.0
    %928 = vmatpush1.msra.mxu0 0.0
    %929 = vmatprep.subr.mxu0 0.0
    %930 = vmatpush1.msra.mxu0 0.0
    %931 = vmatprep.subr.mxu0 0.0
    %932 = vmatpush1.msra.mxu0 0.0
    %933 = vmatprep.subr.mxu0 0.0
    %934 = vmatpush1.msra.mxu0 0.0
    %935 = vmatprep.subr.mxu0 0.0
    %936 = vmatpush1.msra.mxu0 0.0
    %937 = vmatprep.subr.mxu0 0.0
    %938 = vmatpush1.msra.mxu0 0.0
    %939 = vmatprep.subr.mxu0 0.0
    %940 = vmatpush1.msra.mxu0 0.0
    %941 = vmatprep.subr.mxu0 0.0
    %942 = vmatpush1.msra.mxu0 0.0
    %943 = vmatprep.subr.mxu0 0.0
    %944 = vmatpush1.msra.mxu0 0.0
    %945 = vmatprep.subr.mxu0 0.0
    %946 = vmatpush1.msra.mxu0 0.0
    %947 = vmatprep.subr.mxu0 0.0
    %948 = vmatpush1.msra.mxu0 %v432
    %949 = vmatprep.subr.mxu0 0.0
    %950 = vmatpush1.msra.mxu0 %v431
    %951 = vmatprep.subr.mxu0 0.0
    %952 = vmatpush1.msra.mxu0 %v430
    %953 = vmatprep.subr.mxu0 0.0
    %954 = vmatpush1.msra.mxu0 %v429
    %955 = vmatprep.subr.mxu0 0.0
    %956 = vmatpush2.msra.mxu0 0.0
    %957 = vmatprep.subr.mxu0 0.0
    %958 = vmatpush2.msra.mxu0 0.0
    %959 = vmatprep.subr.mxu0 0.0
    %960 = vmatpush2.msra.mxu0 0.0
    %961 = vmatprep.subr.mxu0 0.0
    %962 = vmatpush2.msra.mxu0 0.0
    %963 = vmatprep.subr.mxu0 0.0
    %964 = vmatpush2.msra.mxu0 0.0
    %965 = vmatprep.subr.mxu0 0.0
    %966 = vmatpush2.msra.mxu0 0.0
    %967 = vmatprep.subr.mxu0 0.0
    %968 = vmatpush2.msra.mxu0 0.0
    %969 = vmatprep.subr.mxu0 0.0
    %970 = vmatpush2.msra.mxu0 0.0
    %971 = vmatprep.subr.mxu0 0.0
    %972 = vmatpush2.msra.mxu0 0.0
    %973 = vmatprep.subr.mxu0 0.0
    %974 = vmatpush2.msra.mxu0 0.0
    %975 = vmatprep.subr.mxu0 0.0
    %976 = vmatpush2.msra.mxu0 0.0
    %977 = vmatprep.subr.mxu0 0.0
    %978 = vmatpush2.msra.mxu0 0.0
    %979 = vmatprep.subr.mxu0 0.0
    %980 = vmatpush2.msra.mxu0 0.0
    %981 = vmatprep.subr.mxu0 0.0
    %982 = vmatpush2.msra.mxu0 0.0
    %983 = vmatprep.subr.mxu0 0.0
    %984 = vmatpush2.msra.mxu0 0.0
    %985 = vmatprep.subr.mxu0 0.0
    %986 = vmatpush2.msra.mxu0 0.0
    %987 = vmatprep.mubr.f32.mxu0 0.0
    %988 = vmatmul.mubr.f32.gmra.mxu0 %v921
    %v989 = vpop.f32.mrf.mxu0
    %v990 = vadd.f32 %v442, %v989
    %v991 = vpop.f32.mrf.mxu0
    %992 = vdwg.mxu0
    %v993 = vadd.f32 %v917, %v990
    %v994 = vxor.u32 %v993, 2147483648
    %v995 = vmul.f32 %v994, 1.442695
    %v996 = vpow.pop %v995
    %v997 = vadd.f32 %v996, 1.0
    %v998 = vrcp.pop %v997
    %v999 = vmul.f32 1.0, %v998
    %1001 = vrot.lane.b32.xlu0 %v990, 64
    %v1002 = vpop.permute.xlu0 %1001
    %v1004 = vmul.f32 %v999, %v1002
    %1006 = vrot.lane.b32.xlu0 %v1004, 64
    %v1007 = vpop.permute.xlu0 %1006
    %v1009 = vadd.f32 %v917, %v1007
    %v1010 = vtanh.pop %v1009
    %v1011 = vsub.f32 %v790, %v1010
    %1013 = vrot.lane.b32.xlu0 %v1011, 96
    %v1014 = vpop.permute.xlu0 %1013
    %v1016 = vmul.f32 %v999, %v1014
    %1018 = vrot.lane.b32.xlu0 %v1016, 32
    %v1019 = vpop.permute.xlu0 %1018
    %v1021 = vadd.f32 %v1010, %v1019
    %v1022 = vsel %vm915, 1, 0
    %1023 = vset.pattern.permute.xlu0 0
    %1024 = vperm.xlu0 %1023, %v1022
    %v1025 = vpop.permute.xlu0 %1024
    %vm1026 = vcmp.eq.s32.totalorder %v1025, 1
    %v1027 = vsel %vm1026, %v1021, %v790
    %v1028 = vsel %vm1026, %v1021, 0.0
    %1030 = vrot.lane.b32.xlu0 %v1028, 64
    %v1031 = vpop.permute.xlu0 %1030
    %s1033 = scalar_lea.vmem [#allocation4], 4
    %1034 = vst.msk [vmem:[%s1033] sm:$0x3] %vm565, %v1031
    %vm1035 = vcmp.gt.s32.totalorder %v65, 5
    %s1036 = scalar_lea.vmem [#allocation3], 10
    %v1037 = vld [vmem:[%s1036] sm:$0x3]
    %1039 = vrot.lane.b32.xlu0 %v907, 64
    %v1040 = vpop.permute.xlu0 %1039
    %v1041 = vsel %vm136, %v1040, 0
    %1043 = vmatprep.subr.mxu0 0.0
    %1044 = vmatpush1.msra.mxu0 0.0
    %1045 = vmatprep.subr.mxu0 0.0
    %1046 = vmatpush1.msra.mxu0 0.0
    %1047 = vmatprep.subr.mxu0 0.0
    %1048 = vmatpush1.msra.mxu0 0.0
    %1049 = vmatprep.subr.mxu0 0.0
    %1050 = vmatpush1.msra.mxu0 0.0
    %1051 = vmatprep.subr.mxu0 0.0
    %1052 = vmatpush1.msra.mxu0 0.0
    %1053 = vmatprep.subr.mxu0 0.0
    %1054 = vmatpush1.msra.mxu0 0.0
    %1055 = vmatprep.subr.mxu0 0.0
    %1056 = vmatpush1.msra.mxu0 0.0
    %1057 = vmatprep.subr.mxu0 0.0
    %1058 = vmatpush1.msra.mxu0 0.0
    %1059 = vmatprep.subr.mxu0 0.0
    %1060 = vmatpush1.msra.mxu0 0.0
    %1061 = vmatprep.subr.mxu0 0.0
    %1062 = vmatpush1.msra.mxu0 0.0
    %1063 = vmatprep.subr.mxu0 0.0
    %1064 = vmatpush1.msra.mxu0 0.0
    %1065 = vmatprep.subr.mxu0 0.0
    %1066 = vmatpush1.msra.mxu0 0.0
    %1067 = vmatprep.subr.mxu0 0.0
    %1068 = vmatpush1.msra.mxu0 %v436
    %1069 = vmatprep.subr.mxu0 0.0
    %1070 = vmatpush1.msra.mxu0 %v435
    %1071 = vmatprep.subr.mxu0 0.0
    %1072 = vmatpush1.msra.mxu0 %v434
    %1073 = vmatprep.subr.mxu0 0.0
    %1074 = vmatpush1.msra.mxu0 %v433
    %1075 = vmatprep.subr.mxu0 0.0
    %1076 = vmatpush2.msra.mxu0 0.0
    %1077 = vmatprep.subr.mxu0 0.0
    %1078 = vmatpush2.msra.mxu0 0.0
    %1079 = vmatprep.subr.mxu0 0.0
    %1080 = vmatpush2.msra.mxu0 0.0
    %1081 = vmatprep.subr.mxu0 0.0
    %1082 = vmatpush2.msra.mxu0 0.0
    %1083 = vmatprep.subr.mxu0 0.0
    %1084 = vmatpush2.msra.mxu0 0.0
    %1085 = vmatprep.subr.mxu0 0.0
    %1086 = vmatpush2.msra.mxu0 0.0
    %1087 = vmatprep.subr.mxu0 0.0
    %1088 = vmatpush2.msra.mxu0 0.0
    %1089 = vmatprep.subr.mxu0 0.0
    %1090 = vmatpush2.msra.mxu0 0.0
    %1091 = vmatprep.subr.mxu0 0.0
    %1092 = vmatpush2.msra.mxu0 0.0
    %1093 = vmatprep.subr.mxu0 0.0
    %1094 = vmatpush2.msra.mxu0 0.0
    %1095 = vmatprep.subr.mxu0 0.0
    %1096 = vmatpush2.msra.mxu0 0.0
    %1097 = vmatprep.subr.mxu0 0.0
    %1098 = vmatpush2.msra.mxu0 0.0
    %1099 = vmatprep.subr.mxu0 0.0
    %1100 = vmatpush2.msra.mxu0 0.0
    %1101 = vmatprep.subr.mxu0 0.0
    %1102 = vmatpush2.msra.mxu0 0.0
    %1103 = vmatprep.subr.mxu0 0.0
    %1104 = vmatpush2.msra.mxu0 0.0
    %1105 = vmatprep.subr.mxu0 0.0
    %1106 = vmatpush2.msra.mxu0 0.0
    %1107 = vmatprep.mubr.f32.mxu0 0.0
    %1108 = vmatmul.mubr.f32.gmra.mxu0 %v1041
    %v1109 = vpop.f32.mrf.mxu0
    %v1110 = vadd.f32 %v449, %v1109
    %v1111 = vpop.f32.mrf.mxu0
    %1112 = vdwg.mxu0
    %v1113 = vadd.f32 %v1037, %v1110
    %v1114 = vxor.u32 %v1113, 2147483648
    %v1115 = vmul.f32 %v1114, 1.442695
    %v1116 = vpow.pop %v1115
    %v1117 = vadd.f32 %v1116, 1.0
    %v1118 = vrcp.pop %v1117
    %v1119 = vmul.f32 1.0, %v1118
    %1121 = vrot.lane.b32.xlu0 %v1110, 64
    %v1122 = vpop.permute.xlu0 %1121
    %v1124 = vmul.f32 %v1119, %v1122
    %1126 = vrot.lane.b32.xlu0 %v1124, 64
    %v1127 = vpop.permute.xlu0 %1126
    %v1129 = vadd.f32 %v1037, %v1127
    %v1130 = vtanh.pop %v1129
    %v1131 = vsub.f32 %v907, %v1130
    %1133 = vrot.lane.b32.xlu0 %v1131, 96
    %v1134 = vpop.permute.xlu0 %1133
    %v1136 = vmul.f32 %v1119, %v1134
    %1138 = vrot.lane.b32.xlu0 %v1136, 32
    %v1139 = vpop.permute.xlu0 %1138
    %v1141 = vadd.f32 %v1130, %v1139
    %v1142 = vsel %vm1035, 1, 0
    %1143 = vset.pattern.permute.xlu0 0
    %1144 = vperm.xlu0 %1143, %v1142
    %v1145 = vpop.permute.xlu0 %1144
    %vm1146 = vcmp.eq.s32.totalorder %v1145, 1
    %v1147 = vsel %vm1146, %v1141, %v907
    %v1148 = vsel %vm1146, %v1141, 0.0
    %1150 = vrot.lane.b32.xlu0 %v1148, 64
    %v1151 = vpop.permute.xlu0 %1150
    %s1153 = scalar_lea.vmem [#allocation5], 10
    %1154 = vst.msk [vmem:[%s1153] sm:$0x3] %vm565, %v1151
    %vm1155 = vcmp.gt.s32.totalorder %v65, 3
    %s1156 = scalar_lea.vmem [#allocation2], 6
    %v1157 = vld [vmem:[%s1156] sm:$0x3]
    %1159 = vrot.lane.b32.xlu0 %v1027, 64
    %v1160 = vpop.permute.xlu0 %1159
    %v1161 = vsel %vm136, %v1160, 0
    %1163 = vmatprep.subr.mxu0 0.0
    %1164 = vmatpush1.msra.mxu0 0.0
    %1165 = vmatprep.subr.mxu0 0.0
    %1166 = vmatpush1.msra.mxu0 0.0
    %1167 = vmatprep.subr.mxu0 0.0
    %1168 = vmatpush1.msra.mxu0 0.0
    %1169 = vmatprep.subr.mxu0 0.0
    %1170 = vmatpush1.msra.mxu0 0.0
    %1171 = vmatprep.subr.mxu0 0.0
    %1172 = vmatpush1.msra.mxu0 0.0
    %1173 = vmatprep.subr.mxu0 0.0
    %1174 = vmatpush1.msra.mxu0 0.0
    %1175 = vmatprep.subr.mxu0 0.0
    %1176 = vmatpush1.msra.mxu0 0.0
    %1177 = vmatprep.subr.mxu0 0.0
    %1178 = vmatpush1.msra.mxu0 0.0
    %1179 = vmatprep.subr.mxu0 0.0
    %1180 = vmatpush1.msra.mxu0 0.0
    %1181 = vmatprep.subr.mxu0 0.0
    %1182 = vmatpush1.msra.mxu0 0.0
    %1183 = vmatprep.subr.mxu0 0.0
    %1184 = vmatpush1.msra.mxu0 0.0
    %1185 = vmatprep.subr.mxu0 0.0
    %1186 = vmatpush1.msra.mxu0 0.0
    %1187 = vmatprep.subr.mxu0 0.0
    %1188 = vmatpush1.msra.mxu0 %v432
    %1189 = vmatprep.subr.mxu0 0.0
    %1190 = vmatpush1.msra.mxu0 %v431
    %1191 = vmatprep.subr.mxu0 0.0
    %1192 = vmatpush1.msra.mxu0 %v430
    %1193 = vmatprep.subr.mxu0 0.0
    %1194 = vmatpush1.msra.mxu0 %v429
    %1195 = vmatprep.subr.mxu0 0.0
    %1196 = vmatpush2.msra.mxu0 0.0
    %1197 = vmatprep.subr.mxu0 0.0
    %1198 = vmatpush2.msra.mxu0 0.0
    %1199 = vmatprep.subr.mxu0 0.0
    %1200 = vmatpush2.msra.mxu0 0.0
    %1201 = vmatprep.subr.mxu0 0.0
    %1202 = vmatpush2.msra.mxu0 0.0
    %1203 = vmatprep.subr.mxu0 0.0
    %1204 = vmatpush2.msra.mxu0 0.0
    %1205 = vmatprep.subr.mxu0 0.0
    %1206 = vmatpush2.msra.mxu0 0.0
    %1207 = vmatprep.subr.mxu0 0.0
    %1208 = vmatpush2.msra.mxu0 0.0
    %1209 = vmatprep.subr.mxu0 0.0
    %1210 = vmatpush2.msra.mxu0 0.0
    %1211 = vmatprep.subr.mxu0 0.0
    %1212 = vmatpush2.msra.mxu0 0.0
    %1213 = vmatprep.subr.mxu0 0.0
    %1214 = vmatpush2.msra.mxu0 0.0
    %1215 = vmatprep.subr.mxu0 0.0
    %1216 = vmatpush2.msra.mxu0 0.0
    %1217 = vmatprep.subr.mxu0 0.0
    %1218 = vmatpush2.msra.mxu0 0.0
    %1219 = vmatprep.subr.mxu0 0.0
    %1220 = vmatpush2.msra.mxu0 0.0
    %1221 = vmatprep.subr.mxu0 0.0
    %1222 = vmatpush2.msra.mxu0 0.0
    %1223 = vmatprep.subr.mxu0 0.0
    %1224 = vmatpush2.msra.mxu0 0.0
    %1225 = vmatprep.subr.mxu0 0.0
    %1226 = vmatpush2.msra.mxu0 0.0
    %1227 = vmatprep.mubr.f32.mxu0 0.0
    %1228 = vmatmul.mubr.f32.gmra.mxu0 %v1161
    %v1229 = vpop.f32.mrf.mxu0
    %v1230 = vadd.f32 %v442, %v1229
    %v1231 = vpop.f32.mrf.mxu0
    %1232 = vdwg.mxu0
    %v1233 = vadd.f32 %v1157, %v1230
    %v1234 = vxor.u32 %v1233, 2147483648
    %v1235 = vmul.f32 %v1234, 1.442695
    %v1236 = vpow.pop %v1235
    %v1237 = vadd.f32 %v1236, 1.0
    %v1238 = vrcp.pop %v1237
    %v1239 = vmul.f32 1.0, %v1238
    %1241 = vrot.lane.b32.xlu0 %v1230, 64
    %v1242 = vpop.permute.xlu0 %1241
    %v1244 = vmul.f32 %v1239, %v1242
    %1246 = vrot.lane.b32.xlu0 %v1244, 64
    %v1247 = vpop.permute.xlu0 %1246
    %v1249 = vadd.f32 %v1157, %v1247
    %v1250 = vtanh.pop %v1249
    %v1251 = vsub.f32 %v1027, %v1250
    %1253 = vrot.lane.b32.xlu0 %v1251, 96
    %v1254 = vpop.permute.xlu0 %1253
    %v1256 = vmul.f32 %v1239, %v1254
    %1258 = vrot.lane.b32.xlu0 %v1256, 32
    %v1259 = vpop.permute.xlu0 %1258
    %v1261 = vadd.f32 %v1250, %v1259
    %v1262 = vsel %vm1155, 1, 0
    %1263 = vset.pattern.permute.xlu0 0
    %1264 = vperm.xlu0 %1263, %v1262
    %v1265 = vpop.permute.xlu0 %1264
    %vm1266 = vcmp.eq.s32.totalorder %v1265, 1
    %v1267 = vsel %vm1266, %v1261, %v1027
    %v1268 = vsel %vm1266, %v1261, 0.0
    %1270 = vrot.lane.b32.xlu0 %v1268, 64
    %v1271 = vpop.permute.xlu0 %1270
    %s1273 = scalar_lea.vmem [#allocation4], 6
    %1274 = vst.msk [vmem:[%s1273] sm:$0x3] %vm565, %v1271
    %vm1275 = vcmp.gt.s32.totalorder %v65, 4
    %s1276 = scalar_lea.vmem [#allocation3], 8
    %v1277 = vld [vmem:[%s1276] sm:$0x3]
    %1279 = vrot.lane.b32.xlu0 %v1147, 64
    %v1280 = vpop.permute.xlu0 %1279
    %v1281 = vsel %vm136, %v1280, 0
    %1283 = vmatprep.subr.mxu0 0.0
    %1284 = vmatpush1.msra.mxu0 0.0
    %1285 = vmatprep.subr.mxu0 0.0
    %1286 = vmatpush1.msra.mxu0 0.0
    %1287 = vmatprep.subr.mxu0 0.0
    %1288 = vmatpush1.msra.mxu0 0.0
    %1289 = vmatprep.subr.mxu0 0.0
    %1290 = vmatpush1.msra.mxu0 0.0
    %1291 = vmatprep.subr.mxu0 0.0
    %1292 = vmatpush1.msra.mxu0 0.0
    %1293 = vmatprep.subr.mxu0 0.0
    %1294 = vmatpush1.msra.mxu0 0.0
    %1295 = vmatprep.subr.mxu0 0.0
    %1296 = vmatpush1.msra.mxu0 0.0
    %1297 = vmatprep.subr.mxu0 0.0
    %1298 = vmatpush1.msra.mxu0 0.0
    %1299 = vmatprep.subr.mxu0 0.0
    %1300 = vmatpush1.msra.mxu0 0.0
    %1301 = vmatprep.subr.mxu0 0.0
    %1302 = vmatpush1.msra.mxu0 0.0
    %1303 = vmatprep.subr.mxu0 0.0
    %1304 = vmatpush1.msra.mxu0 0.0
    %1305 = vmatprep.subr.mxu0 0.0
    %1306 = vmatpush1.msra.mxu0 0.0
    %1307 = vmatprep.subr.mxu0 0.0
    %1308 = vmatpush1.msra.mxu0 %v436
    %1309 = vmatprep.subr.mxu0 0.0
    %1310 = vmatpush1.msra.mxu0 %v435
    %1311 = vmatprep.subr.mxu0 0.0
    %1312 = vmatpush1.msra.mxu0 %v434
    %1313 = vmatprep.subr.mxu0 0.0
    %1314 = vmatpush1.msra.mxu0 %v433
    %1315 = vmatprep.subr.mxu0 0.0
    %1316 = vmatpush2.msra.mxu0 0.0
    %1317 = vmatprep.subr.mxu0 0.0
    %1318 = vmatpush2.msra.mxu0 0.0
    %1319 = vmatprep.subr.mxu0 0.0
    %1320 = vmatpush2.msra.mxu0 0.0
    %1321 = vmatprep.subr.mxu0 0.0
    %1322 = vmatpush2.msra.mxu0 0.0
    %1323 = vmatprep.subr.mxu0 0.0
    %1324 = vmatpush2.msra.mxu0 0.0
    %1325 = vmatprep.subr.mxu0 0.0
    %1326 = vmatpush2.msra.mxu0 0.0
    %1327 = vmatprep.subr.mxu0 0.0
    %1328 = vmatpush2.msra.mxu0 0.0
    %1329 = vmatprep.subr.mxu0 0.0
    %1330 = vmatpush2.msra.mxu0 0.0
    %1331 = vmatprep.subr.mxu0 0.0
    %1332 = vmatpush2.msra.mxu0 0.0
    %1333 = vmatprep.subr.mxu0 0.0
    %1334 = vmatpush2.msra.mxu0 0.0
    %1335 = vmatprep.subr.mxu0 0.0
    %1336 = vmatpush2.msra.mxu0 0.0
    %1337 = vmatprep.subr.mxu0 0.0
    %1338 = vmatpush2.msra.mxu0 0.0
    %1339 = vmatprep.subr.mxu0 0.0
    %1340 = vmatpush2.msra.mxu0 0.0
    %1341 = vmatprep.subr.mxu0 0.0
    %1342 = vmatpush2.msra.mxu0 0.0
    %1343 = vmatprep.subr.mxu0 0.0
    %1344 = vmatpush2.msra.mxu0 0.0
    %1345 = vmatprep.subr.mxu0 0.0
    %1346 = vmatpush2.msra.mxu0 0.0
    %1347 = vmatprep.mubr.f32.mxu0 0.0
    %1348 = vmatmul.mubr.f32.gmra.mxu0 %v1281
    %v1349 = vpop.f32.mrf.mxu0
    %v1350 = vadd.f32 %v449, %v1349
    %v1351 = vpop.f32.mrf.mxu0
    %1352 = vdwg.mxu0
    %v1353 = vadd.f32 %v1277, %v1350
    %v1354 = vxor.u32 %v1353, 2147483648
    %v1355 = vmul.f32 %v1354, 1.442695
    %v1356 = vpow.pop %v1355
    %v1357 = vadd.f32 %v1356, 1.0
    %v1358 = vrcp.pop %v1357
    %v1359 = vmul.f32 1.0, %v1358
    %1361 = vrot.lane.b32.xlu0 %v1350, 64
    %v1362 = vpop.permute.xlu0 %1361
    %v1364 = vmul.f32 %v1359, %v1362
    %1366 = vrot.lane.b32.xlu0 %v1364, 64
    %v1367 = vpop.permute.xlu0 %1366
    %v1369 = vadd.f32 %v1277, %v1367
    %v1370 = vtanh.pop %v1369
    %v1371 = vsub.f32 %v1147, %v1370
    %1373 = vrot.lane.b32.xlu0 %v1371, 96
    %v1374 = vpop.permute.xlu0 %1373
    %v1376 = vmul.f32 %v1359, %v1374
    %1378 = vrot.lane.b32.xlu0 %v1376, 32
    %v1379 = vpop.permute.xlu0 %1378
    %v1381 = vadd.f32 %v1370, %v1379
    %v1382 = vsel %vm1275, 1, 0
    %1383 = vset.pattern.permute.xlu0 0
    %1384 = vperm.xlu0 %1383, %v1382
    %v1385 = vpop.permute.xlu0 %1384
    %vm1386 = vcmp.eq.s32.totalorder %v1385, 1
    %v1387 = vsel %vm1386, %v1381, %v1147
    %v1388 = vsel %vm1386, %v1381, 0.0
    %1390 = vrot.lane.b32.xlu0 %v1388, 64
    %v1391 = vpop.permute.xlu0 %1390
    %s1393 = scalar_lea.vmem [#allocation5], 8
    %1394 = vst.msk [vmem:[%s1393] sm:$0x3] %vm565, %v1391
    %s1395 = scalar_lea.vmem [#allocation2], 8
    %v1396 = vld [vmem:[%s1395] sm:$0x3]
    %1398 = vrot.lane.b32.xlu0 %v1267, 64
    %v1399 = vpop.permute.xlu0 %1398
    %v1400 = vsel %vm136, %v1399, 0
    %1402 = vmatprep.subr.mxu0 0.0
    %1403 = vmatpush1.msra.mxu0 0.0
    %1404 = vmatprep.subr.mxu0 0.0
    %1405 = vmatpush1.msra.mxu0 0.0
    %1406 = vmatprep.subr.mxu0 0.0
    %1407 = vmatpush1.msra.mxu0 0.0
    %1408 = vmatprep.subr.mxu0 0.0
    %1409 = vmatpush1.msra.mxu0 0.0
    %1410 = vmatprep.subr.mxu0 0.0
    %1411 = vmatpush1.msra.mxu0 0.0
    %1412 = vmatprep.subr.mxu0 0.0
    %1413 = vmatpush1.msra.mxu0 0.0
    %1414 = vmatprep.subr.mxu0 0.0
    %1415 = vmatpush1.msra.mxu0 0.0
    %1416 = vmatprep.subr.mxu0 0.0
    %1417 = vmatpush1.msra.mxu0 0.0
    %1418 = vmatprep.subr.mxu0 0.0
    %1419 = vmatpush1.msra.mxu0 0.0
    %1420 = vmatprep.subr.mxu0 0.0
    %1421 = vmatpush1.msra.mxu0 0.0
    %1422 = vmatprep.subr.mxu0 0.0
    %1423 = vmatpush1.msra.mxu0 0.0
    %1424 = vmatprep.subr.mxu0 0.0
    %1425 = vmatpush1.msra.mxu0 0.0
    %1426 = vmatprep.subr.mxu0 0.0
    %1427 = vmatpush1.msra.mxu0 %v432
    %1428 = vmatprep.subr.mxu0 0.0
    %1429 = vmatpush1.msra.mxu0 %v431
    %1430 = vmatprep.subr.mxu0 0.0
    %1431 = vmatpush1.msra.mxu0 %v430
    %1432 = vmatprep.subr.mxu0 0.0
    %1433 = vmatpush1.msra.mxu0 %v429
    %1434 = vmatprep.subr.mxu0 0.0
    %1435 = vmatpush2.msra.mxu0 0.0
    %1436 = vmatprep.subr.mxu0 0.0
    %1437 = vmatpush2.msra.mxu0 0.0
    %1438 = vmatprep.subr.mxu0 0.0
    %1439 = vmatpush2.msra.mxu0 0.0
    %1440 = vmatprep.subr.mxu0 0.0
    %1441 = vmatpush2.msra.mxu0 0.0
    %1442 = vmatprep.subr.mxu0 0.0
    %1443 = vmatpush2.msra.mxu0 0.0
    %1444 = vmatprep.subr.mxu0 0.0
    %1445 = vmatpush2.msra.mxu0 0.0
    %1446 = vmatprep.subr.mxu0 0.0
    %1447 = vmatpush2.msra.mxu0 0.0
    %1448 = vmatprep.subr.mxu0 0.0
    %1449 = vmatpush2.msra.mxu0 0.0
    %1450 = vmatprep.subr.mxu0 0.0
    %1451 = vmatpush2.msra.mxu0 0.0
    %1452 = vmatprep.subr.mxu0 0.0
    %1453 = vmatpush2.msra.mxu0 0.0
    %1454 = vmatprep.subr.mxu0 0.0
    %1455 = vmatpush2.msra.mxu0 0.0
    %1456 = vmatprep.subr.mxu0 0.0
    %1457 = vmatpush2.msra.mxu0 0.0
    %1458 = vmatprep.subr.mxu0 0.0
    %1459 = vmatpush2.msra.mxu0 0.0
    %1460 = vmatprep.subr.mxu0 0.0
    %1461 = vmatpush2.msra.mxu0 0.0
    %1462 = vmatprep.subr.mxu0 0.0
    %1463 = vmatpush2.msra.mxu0 0.0
    %1464 = vmatprep.subr.mxu0 0.0
    %1465 = vmatpush2.msra.mxu0 0.0
    %1466 = vmatprep.mubr.f32.mxu0 0.0
    %1467 = vmatmul.mubr.f32.gmra.mxu0 %v1400
    %v1468 = vpop.f32.mrf.mxu0
    %v1469 = vadd.f32 %v442, %v1468
    %v1470 = vpop.f32.mrf.mxu0
    %1471 = vdwg.mxu0
    %v1472 = vadd.f32 %v1396, %v1469
    %v1473 = vxor.u32 %v1472, 2147483648
    %v1474 = vmul.f32 %v1473, 1.442695
    %v1475 = vpow.pop %v1474
    %v1476 = vadd.f32 %v1475, 1.0
    %v1477 = vrcp.pop %v1476
    %v1478 = vmul.f32 1.0, %v1477
    %1480 = vrot.lane.b32.xlu0 %v1469, 64
    %v1481 = vpop.permute.xlu0 %1480
    %v1483 = vmul.f32 %v1478, %v1481
    %1485 = vrot.lane.b32.xlu0 %v1483, 64
    %v1486 = vpop.permute.xlu0 %1485
    %v1488 = vadd.f32 %v1396, %v1486
    %v1489 = vtanh.pop %v1488
    %v1490 = vsub.f32 %v1267, %v1489
    %1492 = vrot.lane.b32.xlu0 %v1490, 96
    %v1493 = vpop.permute.xlu0 %1492
    %v1495 = vmul.f32 %v1478, %v1493
    %1497 = vrot.lane.b32.xlu0 %v1495, 32
    %v1498 = vpop.permute.xlu0 %1497
    %v1500 = vadd.f32 %v1489, %v1498
    %v1501 = vsel %vm1386, %v1500, %v1267
    %v1502 = vsel %vm1386, %v1500, 0.0
    %1504 = vrot.lane.b32.xlu0 %v1502, 64
    %v1505 = vpop.permute.xlu0 %1504
    %s1507 = scalar_lea.vmem [#allocation4], 8
    %1508 = vst.msk [vmem:[%s1507] sm:$0x3] %vm565, %v1505
    %s1509 = scalar_lea.vmem [#allocation3], 6
    %v1510 = vld [vmem:[%s1509] sm:$0x3]
    %1512 = vrot.lane.b32.xlu0 %v1387, 64
    %v1513 = vpop.permute.xlu0 %1512
    %v1514 = vsel %vm136, %v1513, 0
    %1516 = vmatprep.subr.mxu0 0.0
    %1517 = vmatpush1.msra.mxu0 0.0
    %1518 = vmatprep.subr.mxu0 0.0
    %1519 = vmatpush1.msra.mxu0 0.0
    %1520 = vmatprep.subr.mxu0 0.0
    %1521 = vmatpush1.msra.mxu0 0.0
    %1522 = vmatprep.subr.mxu0 0.0
    %1523 = vmatpush1.msra.mxu0 0.0
    %1524 = vmatprep.subr.mxu0 0.0
    %1525 = vmatpush1.msra.mxu0 0.0
    %1526 = vmatprep.subr.mxu0 0.0
    %1527 = vmatpush1.msra.mxu0 0.0
    %1528 = vmatprep.subr.mxu0 0.0
    %1529 = vmatpush1.msra.mxu0 0.0
    %1530 = vmatprep.subr.mxu0 0.0
    %1531 = vmatpush1.msra.mxu0 0.0
    %1532 = vmatprep.subr.mxu0 0.0
    %1533 = vmatpush1.msra.mxu0 0.0
    %1534 = vmatprep.subr.mxu0 0.0
    %1535 = vmatpush1.msra.mxu0 0.0
    %1536 = vmatprep.subr.mxu0 0.0
    %1537 = vmatpush1.msra.mxu0 0.0
    %1538 = vmatprep.subr.mxu0 0.0
    %1539 = vmatpush1.msra.mxu0 0.0
    %1540 = vmatprep.subr.mxu0 0.0
    %1541 = vmatpush1.msra.mxu0 %v436
    %1542 = vmatprep.subr.mxu0 0.0
    %1543 = vmatpush1.msra.mxu0 %v435
    %1544 = vmatprep.subr.mxu0 0.0
    %1545 = vmatpush1.msra.mxu0 %v434
    %1546 = vmatprep.subr.mxu0 0.0
    %1547 = vmatpush1.msra.mxu0 %v433
    %1548 = vmatprep.subr.mxu0 0.0
    %1549 = vmatpush2.msra.mxu0 0.0
    %1550 = vmatprep.subr.mxu0 0.0
    %1551 = vmatpush2.msra.mxu0 0.0
    %1552 = vmatprep.subr.mxu0 0.0
    %1553 = vmatpush2.msra.mxu0 0.0
    %1554 = vmatprep.subr.mxu0 0.0
    %1555 = vmatpush2.msra.mxu0 0.0
    %1556 = vmatprep.subr.mxu0 0.0
    %1557 = vmatpush2.msra.mxu0 0.0
    %1558 = vmatprep.subr.mxu0 0.0
    %1559 = vmatpush2.msra.mxu0 0.0
    %1560 = vmatprep.subr.mxu0 0.0
    %1561 = vmatpush2.msra.mxu0 0.0
    %1562 = vmatprep.subr.mxu0 0.0
    %1563 = vmatpush2.msra.mxu0 0.0
    %1564 = vmatprep.subr.mxu0 0.0
    %1565 = vmatpush2.msra.mxu0 0.0
    %1566 = vmatprep.subr.mxu0 0.0
    %1567 = vmatpush2.msra.mxu0 0.0
    %1568 = vmatprep.subr.mxu0 0.0
    %1569 = vmatpush2.msra.mxu0 0.0
    %1570 = vmatprep.subr.mxu0 0.0
    %1571 = vmatpush2.msra.mxu0 0.0
    %1572 = vmatprep.subr.mxu0 0.0
    %1573 = vmatpush2.msra.mxu0 0.0
    %1574 = vmatprep.subr.mxu0 0.0
    %1575 = vmatpush2.msra.mxu0 0.0
    %1576 = vmatprep.subr.mxu0 0.0
    %1577 = vmatpush2.msra.mxu0 0.0
    %1578 = vmatprep.subr.mxu0 0.0
    %1579 = vmatpush2.msra.mxu0 0.0
    %1580 = vmatprep.mubr.f32.mxu0 0.0
    %1581 = vmatmul.mubr.f32.gmra.mxu0 %v1514
    %v1582 = vpop.f32.mrf.mxu0
    %v1583 = vadd.f32 %v449, %v1582
    %v1584 = vpop.f32.mrf.mxu0
    %1585 = vdwg.mxu0
    %v1586 = vadd.f32 %v1510, %v1583
    %v1587 = vxor.u32 %v1586, 2147483648
    %v1588 = vmul.f32 %v1587, 1.442695
    %v1589 = vpow.pop %v1588
    %v1590 = vadd.f32 %v1589, 1.0
    %v1591 = vrcp.pop %v1590
    %v1592 = vmul.f32 1.0, %v1591
    %1594 = vrot.lane.b32.xlu0 %v1583, 64
    %v1595 = vpop.permute.xlu0 %1594
    %v1597 = vmul.f32 %v1592, %v1595
    %1599 = vrot.lane.b32.xlu0 %v1597, 64
    %v1600 = vpop.permute.xlu0 %1599
    %v1602 = vadd.f32 %v1510, %v1600
    %v1603 = vtanh.pop %v1602
    %v1604 = vsub.f32 %v1387, %v1603
    %1606 = vrot.lane.b32.xlu0 %v1604, 96
    %v1607 = vpop.permute.xlu0 %1606
    %v1609 = vmul.f32 %v1592, %v1607
    %1611 = vrot.lane.b32.xlu0 %v1609, 32
    %v1612 = vpop.permute.xlu0 %1611
    %v1614 = vadd.f32 %v1603, %v1612
    %v1615 = vsel %vm1266, %v1614, %v1387
    %v1616 = vsel %vm1266, %v1614, 0.0
    %1618 = vrot.lane.b32.xlu0 %v1616, 64
    %v1619 = vpop.permute.xlu0 %1618
    %s1621 = scalar_lea.vmem [#allocation5], 6
    %1622 = vst.msk [vmem:[%s1621] sm:$0x3] %vm565, %v1619
    %s1623 = scalar_lea.vmem [#allocation2], 10
    %v1624 = vld [vmem:[%s1623] sm:$0x3]
    %1626 = vrot.lane.b32.xlu0 %v1501, 64
    %v1627 = vpop.permute.xlu0 %1626
    %v1628 = vsel %vm136, %v1627, 0
    %1630 = vmatprep.subr.mxu0 0.0
    %1631 = vmatpush1.msra.mxu0 0.0
    %1632 = vmatprep.subr.mxu0 0.0
    %1633 = vmatpush1.msra.mxu0 0.0
    %1634 = vmatprep.subr.mxu0 0.0
    %1635 = vmatpush1.msra.mxu0 0.0
    %1636 = vmatprep.subr.mxu0 0.0
    %1637 = vmatpush1.msra.mxu0 0.0
    %1638 = vmatprep.subr.mxu0 0.0
    %1639 = vmatpush1.msra.mxu0 0.0
    %1640 = vmatprep.subr.mxu0 0.0
    %1641 = vmatpush1.msra.mxu0 0.0
    %1642 = vmatprep.subr.mxu0 0.0
    %1643 = vmatpush1.msra.mxu0 0.0
    %1644 = vmatprep.subr.mxu0 0.0
    %1645 = vmatpush1.msra.mxu0 0.0
    %1646 = vmatprep.subr.mxu0 0.0
    %1647 = vmatpush1.msra.mxu0 0.0
    %1648 = vmatprep.subr.mxu0 0.0
    %1649 = vmatpush1.msra.mxu0 0.0
    %1650 = vmatprep.subr.mxu0 0.0
    %1651 = vmatpush1.msra.mxu0 0.0
    %1652 = vmatprep.subr.mxu0 0.0
    %1653 = vmatpush1.msra.mxu0 0.0
    %1654 = vmatprep.subr.mxu0 0.0
    %1655 = vmatpush1.msra.mxu0 %v432
    %1656 = vmatprep.subr.mxu0 0.0
    %1657 = vmatpush1.msra.mxu0 %v431
    %1658 = vmatprep.subr.mxu0 0.0
    %1659 = vmatpush1.msra.mxu0 %v430
    %1660 = vmatprep.subr.mxu0 0.0
    %1661 = vmatpush1.msra.mxu0 %v429
    %1662 = vmatprep.subr.mxu0 0.0
    %1663 = vmatpush2.msra.mxu0 0.0
    %1664 = vmatprep.subr.mxu0 0.0
    %1665 = vmatpush2.msra.mxu0 0.0
    %1666 = vmatprep.subr.mxu0 0.0
    %1667 = vmatpush2.msra.mxu0 0.0
    %1668 = vmatprep.subr.mxu0 0.0
    %1669 = vmatpush2.msra.mxu0 0.0
    %1670 = vmatprep.subr.mxu0 0.0
    %1671 = vmatpush2.msra.mxu0 0.0
    %1672 = vmatprep.subr.mxu0 0.0
    %1673 = vmatpush2.msra.mxu0 0.0
    %1674 = vmatprep.subr.mxu0 0.0
    %1675 = vmatpush2.msra.mxu0 0.0
    %1676 = vmatprep.subr.mxu0 0.0
    %1677 = vmatpush2.msra.mxu0 0.0
    %1678 = vmatprep.subr.mxu0 0.0
    %1679 = vmatpush2.msra.mxu0 0.0
    %1680 = vmatprep.subr.mxu0 0.0
    %1681 = vmatpush2.msra.mxu0 0.0
    %1682 = vmatprep.subr.mxu0 0.0
    %1683 = vmatpush2.msra.mxu0 0.0
    %1684 = vmatprep.subr.mxu0 0.0
    %1685 = vmatpush2.msra.mxu0 0.0
    %1686 = vmatprep.subr.mxu0 0.0
    %1687 = vmatpush2.msra.mxu0 0.0
    %1688 = vmatprep.subr.mxu0 0.0
    %1689 = vmatpush2.msra.mxu0 0.0
    %1690 = vmatprep.subr.mxu0 0.0
    %1691 = vmatpush2.msra.mxu0 0.0
    %1692 = vmatprep.subr.mxu0 0.0
    %1693 = vmatpush2.msra.mxu0 0.0
    %1694 = vmatprep.mubr.f32.mxu0 0.0
    %1695 = vmatmul.mubr.f32.gmra.mxu0 %v1628
    %v1696 = vpop.f32.mrf.mxu0
    %v1697 = vadd.f32 %v442, %v1696
    %v1698 = vpop.f32.mrf.mxu0
    %1699 = vdwg.mxu0
    %v1700 = vadd.f32 %v1624, %v1697
    %v1701 = vxor.u32 %v1700, 2147483648
    %v1702 = vmul.f32 %v1701, 1.442695
    %v1703 = vpow.pop %v1702
    %v1704 = vadd.f32 %v1703, 1.0
    %v1705 = vrcp.pop %v1704
    %v1706 = vmul.f32 1.0, %v1705
    %1708 = vrot.lane.b32.xlu0 %v1697, 64
    %v1709 = vpop.permute.xlu0 %1708
    %v1711 = vmul.f32 %v1706, %v1709
    %1713 = vrot.lane.b32.xlu0 %v1711, 64
    %v1714 = vpop.permute.xlu0 %1713
    %v1716 = vadd.f32 %v1624, %v1714
    %v1717 = vtanh.pop %v1716
    %v1718 = vsub.f32 %v1501, %v1717
    %1720 = vrot.lane.b32.xlu0 %v1718, 96
    %v1721 = vpop.permute.xlu0 %1720
    %v1723 = vmul.f32 %v1706, %v1721
    %1725 = vrot.lane.b32.xlu0 %v1723, 32
    %v1726 = vpop.permute.xlu0 %1725
    %v1728 = vadd.f32 %v1717, %v1726
    %v1729 = vsel %vm1146, %v1728, %v1501
    %v1730 = vsel %vm1146, %v1728, 0.0
    %1732 = vrot.lane.b32.xlu0 %v1730, 64
    %v1733 = vpop.permute.xlu0 %1732
    %s1735 = scalar_lea.vmem [#allocation4], 10
    %1736 = vst.msk [vmem:[%s1735] sm:$0x3] %vm565, %v1733
    %s1737 = scalar_lea.vmem [#allocation3], 4
    %v1738 = vld [vmem:[%s1737] sm:$0x3]
    %1740 = vrot.lane.b32.xlu0 %v1615, 64
    %v1741 = vpop.permute.xlu0 %1740
    %v1742 = vsel %vm136, %v1741, 0
    %1744 = vmatprep.subr.mxu0 0.0
    %1745 = vmatpush1.msra.mxu0 0.0
    %1746 = vmatprep.subr.mxu0 0.0
    %1747 = vmatpush1.msra.mxu0 0.0
    %1748 = vmatprep.subr.mxu0 0.0
    %1749 = vmatpush1.msra.mxu0 0.0
    %1750 = vmatprep.subr.mxu0 0.0
    %1751 = vmatpush1.msra.mxu0 0.0
    %1752 = vmatprep.subr.mxu0 0.0
    %1753 = vmatpush1.msra.mxu0 0.0
    %1754 = vmatprep.subr.mxu0 0.0
    %1755 = vmatpush1.msra.mxu0 0.0
    %1756 = vmatprep.subr.mxu0 0.0
    %1757 = vmatpush1.msra.mxu0 0.0
    %1758 = vmatprep.subr.mxu0 0.0
    %1759 = vmatpush1.msra.mxu0 0.0
    %1760 = vmatprep.subr.mxu0 0.0
    %1761 = vmatpush1.msra.mxu0 0.0
    %1762 = vmatprep.subr.mxu0 0.0
    %1763 = vmatpush1.msra.mxu0 0.0
    %1764 = vmatprep.subr.mxu0 0.0
    %1765 = vmatpush1.msra.mxu0 0.0
    %1766 = vmatprep.subr.mxu0 0.0
    %1767 = vmatpush1.msra.mxu0 0.0
    %1768 = vmatprep.subr.mxu0 0.0
    %1769 = vmatpush1.msra.mxu0 %v436
    %1770 = vmatprep.subr.mxu0 0.0
    %1771 = vmatpush1.msra.mxu0 %v435
    %1772 = vmatprep.subr.mxu0 0.0
    %1773 = vmatpush1.msra.mxu0 %v434
    %1774 = vmatprep.subr.mxu0 0.0
    %1775 = vmatpush1.msra.mxu0 %v433
    %1776 = vmatprep.subr.mxu0 0.0
    %1777 = vmatpush2.msra.mxu0 0.0
    %1778 = vmatprep.subr.mxu0 0.0
    %1779 = vmatpush2.msra.mxu0 0.0
    %1780 = vmatprep.subr.mxu0 0.0
    %1781 = vmatpush2.msra.mxu0 0.0
    %1782 = vmatprep.subr.mxu0 0.0
    %1783 = vmatpush2.msra.mxu0 0.0
    %1784 = vmatprep.subr.mxu0 0.0
    %1785 = vmatpush2.msra.mxu0 0.0
    %1786 = vmatprep.subr.mxu0 0.0
    %1787 = vmatpush2.msra.mxu0 0.0
    %1788 = vmatprep.subr.mxu0 0.0
    %1789 = vmatpush2.msra.mxu0 0.0
    %1790 = vmatprep.subr.mxu0 0.0
    %1791 = vmatpush2.msra.mxu0 0.0
    %1792 = vmatprep.subr.mxu0 0.0
    %1793 = vmatpush2.msra.mxu0 0.0
    %1794 = vmatprep.subr.mxu0 0.0
    %1795 = vmatpush2.msra.mxu0 0.0
    %1796 = vmatprep.subr.mxu0 0.0
    %1797 = vmatpush2.msra.mxu0 0.0
    %1798 = vmatprep.subr.mxu0 0.0
    %1799 = vmatpush2.msra.mxu0 0.0
    %1800 = vmatprep.subr.mxu0 0.0
    %1801 = vmatpush2.msra.mxu0 0.0
    %1802 = vmatprep.subr.mxu0 0.0
    %1803 = vmatpush2.msra.mxu0 0.0
    %1804 = vmatprep.subr.mxu0 0.0
    %1805 = vmatpush2.msra.mxu0 0.0
    %1806 = vmatprep.subr.mxu0 0.0
    %1807 = vmatpush2.msra.mxu0 0.0
    %1808 = vmatprep.mubr.f32.mxu0 0.0
    %1809 = vmatmul.mubr.f32.gmra.mxu0 %v1742
    %v1810 = vpop.f32.mrf.mxu0
    %v1811 = vadd.f32 %v449, %v1810
    %v1812 = vpop.f32.mrf.mxu0
    %1813 = vdwg.mxu0
    %v1814 = vadd.f32 %v1738, %v1811
    %v1815 = vxor.u32 %v1814, 2147483648
    %v1816 = vmul.f32 %v1815, 1.442695
    %v1817 = vpow.pop %v1816
    %v1818 = vadd.f32 %v1817, 1.0
    %v1819 = vrcp.pop %v1818
    %v1820 = vmul.f32 1.0, %v1819
    %1822 = vrot.lane.b32.xlu0 %v1811, 64
    %v1823 = vpop.permute.xlu0 %1822
    %v1825 = vmul.f32 %v1820, %v1823
    %1827 = vrot.lane.b32.xlu0 %v1825, 64
    %v1828 = vpop.permute.xlu0 %1827
    %v1830 = vadd.f32 %v1738, %v1828
    %v1831 = vtanh.pop %v1830
    %v1832 = vsub.f32 %v1615, %v1831
    %1834 = vrot.lane.b32.xlu0 %v1832, 96
    %v1835 = vpop.permute.xlu0 %1834
    %v1837 = vmul.f32 %v1820, %v1835
    %1839 = vrot.lane.b32.xlu0 %v1837, 32
    %v1840 = vpop.permute.xlu0 %1839
    %v1842 = vadd.f32 %v1831, %v1840
    %v1843 = vsel %vm1026, %v1842, %v1615
    %v1844 = vsel %vm1026, %v1842, 0.0
    %1846 = vrot.lane.b32.xlu0 %v1844, 64
    %v1847 = vpop.permute.xlu0 %1846
    %s1849 = scalar_lea.vmem [#allocation5], 4
    %1850 = vst.msk [vmem:[%s1849] sm:$0x3] %vm565, %v1847
    %s1851 = scalar_lea.vmem [#allocation2], 12
    %v1852 = vld [vmem:[%s1851] sm:$0x3]
    %1854 = vrot.lane.b32.xlu0 %v1729, 64
    %v1855 = vpop.permute.xlu0 %1854
    %v1856 = vsel %vm136, %v1855, 0
    %1858 = vmatprep.subr.mxu0 0.0
    %1859 = vmatpush1.msra.mxu0 0.0
    %1860 = vmatprep.subr.mxu0 0.0
    %1861 = vmatpush1.msra.mxu0 0.0
    %1862 = vmatprep.subr.mxu0 0.0
    %1863 = vmatpush1.msra.mxu0 0.0
    %1864 = vmatprep.subr.mxu0 0.0
    %1865 = vmatpush1.msra.mxu0 0.0
    %1866 = vmatprep.subr.mxu0 0.0
    %1867 = vmatpush1.msra.mxu0 0.0
    %1868 = vmatprep.subr.mxu0 0.0
    %1869 = vmatpush1.msra.mxu0 0.0
    %1870 = vmatprep.subr.mxu0 0.0
    %1871 = vmatpush1.msra.mxu0 0.0
    %1872 = vmatprep.subr.mxu0 0.0
    %1873 = vmatpush1.msra.mxu0 0.0
    %1874 = vmatprep.subr.mxu0 0.0
    %1875 = vmatpush1.msra.mxu0 0.0
    %1876 = vmatprep.subr.mxu0 0.0
    %1877 = vmatpush1.msra.mxu0 0.0
    %1878 = vmatprep.subr.mxu0 0.0
    %1879 = vmatpush1.msra.mxu0 0.0
    %1880 = vmatprep.subr.mxu0 0.0
    %1881 = vmatpush1.msra.mxu0 0.0
    %1882 = vmatprep.subr.mxu0 0.0
    %1883 = vmatpush1.msra.mxu0 %v432
    %1884 = vmatprep.subr.mxu0 0.0
    %1885 = vmatpush1.msra.mxu0 %v431
    %1886 = vmatprep.subr.mxu0 0.0
    %1887 = vmatpush1.msra.mxu0 %v430
    %1888 = vmatprep.subr.mxu0 0.0
    %1889 = vmatpush1.msra.mxu0 %v429
    %1890 = vmatprep.subr.mxu0 0.0
    %1891 = vmatpush2.msra.mxu0 0.0
    %1892 = vmatprep.subr.mxu0 0.0
    %1893 = vmatpush2.msra.mxu0 0.0
    %1894 = vmatprep.subr.mxu0 0.0
    %1895 = vmatpush2.msra.mxu0 0.0
    %1896 = vmatprep.subr.mxu0 0.0
    %1897 = vmatpush2.msra.mxu0 0.0
    %1898 = vmatprep.subr.mxu0 0.0
    %1899 = vmatpush2.msra.mxu0 0.0
    %1900 = vmatprep.subr.mxu0 0.0
    %1901 = vmatpush2.msra.mxu0 0.0
    %1902 = vmatprep.subr.mxu0 0.0
    %1903 = vmatpush2.msra.mxu0 0.0
    %1904 = vmatprep.subr.mxu0 0.0
    %1905 = vmatpush2.msra.mxu0 0.0
    %1906 = vmatprep.subr.mxu0 0.0
    %1907 = vmatpush2.msra.mxu0 0.0
    %1908 = vmatprep.subr.mxu0 0.0
    %1909 = vmatpush2.msra.mxu0 0.0
    %1910 = vmatprep.subr.mxu0 0.0
    %1911 = vmatpush2.msra.mxu0 0.0
    %1912 = vmatprep.subr.mxu0 0.0
    %1913 = vmatpush2.msra.mxu0 0.0
    %1914 = vmatprep.subr.mxu0 0.0
    %1915 = vmatpush2.msra.mxu0 0.0
    %1916 = vmatprep.subr.mxu0 0.0
    %1917 = vmatpush2.msra.mxu0 0.0
    %1918 = vmatprep.subr.mxu0 0.0
    %1919 = vmatpush2.msra.mxu0 0.0
    %1920 = vmatprep.subr.mxu0 0.0
    %1921 = vmatpush2.msra.mxu0 0.0
    %1922 = vmatprep.mubr.f32.mxu0 0.0
    %1923 = vmatmul.mubr.f32.gmra.mxu0 %v1856
    %v1924 = vpop.f32.mrf.mxu0
    %v1925 = vadd.f32 %v442, %v1924
    %v1926 = vpop.f32.mrf.mxu0
    %1927 = vdwg.mxu0
    %v1928 = vadd.f32 %v1852, %v1925
    %v1929 = vxor.u32 %v1928, 2147483648
    %v1930 = vmul.f32 %v1929, 1.442695
    %v1931 = vpow.pop %v1930
    %v1932 = vadd.f32 %v1931, 1.0
    %v1933 = vrcp.pop %v1932
    %v1934 = vmul.f32 1.0, %v1933
    %1936 = vrot.lane.b32.xlu0 %v1925, 64
    %v1937 = vpop.permute.xlu0 %1936
    %v1939 = vmul.f32 %v1934, %v1937
    %1941 = vrot.lane.b32.xlu0 %v1939, 64
    %v1942 = vpop.permute.xlu0 %1941
    %v1944 = vadd.f32 %v1852, %v1942
    %v1945 = vtanh.pop %v1944
    %v1946 = vsub.f32 %v1729, %v1945
    %1948 = vrot.lane.b32.xlu0 %v1946, 96
    %v1949 = vpop.permute.xlu0 %1948
    %v1951 = vmul.f32 %v1934, %v1949
    %1953 = vrot.lane.b32.xlu0 %v1951, 32
    %v1954 = vpop.permute.xlu0 %1953
    %v1956 = vadd.f32 %v1945, %v1954
    %v1957 = vsel %vm906, %v1956, %v1729
    %v1958 = vsel %vm906, %v1956, 0.0
    %1960 = vrot.lane.b32.xlu0 %v1958, 64
    %v1961 = vpop.permute.xlu0 %1960
    %s1963 = scalar_lea.vmem [#allocation4], 12
    %1964 = vst.msk [vmem:[%s1963] sm:$0x3] %vm565, %v1961
    %s1965 = scalar_lea.vmem [#allocation3], 2
    %v1966 = vld [vmem:[%s1965] sm:$0x3]
    %1968 = vrot.lane.b32.xlu0 %v1843, 64
    %v1969 = vpop.permute.xlu0 %1968
    %v1970 = vsel %vm136, %v1969, 0
    %1972 = vmatprep.subr.mxu0 0.0
    %1973 = vmatpush1.msra.mxu0 0.0
    %1974 = vmatprep.subr.mxu0 0.0
    %1975 = vmatpush1.msra.mxu0 0.0
    %1976 = vmatprep.subr.mxu0 0.0
    %1977 = vmatpush1.msra.mxu0 0.0
    %1978 = vmatprep.subr.mxu0 0.0
    %1979 = vmatpush1.msra.mxu0 0.0
    %1980 = vmatprep.subr.mxu0 0.0
    %1981 = vmatpush1.msra.mxu0 0.0
    %1982 = vmatprep.subr.mxu0 0.0
    %1983 = vmatpush1.msra.mxu0 0.0
    %1984 = vmatprep.subr.mxu0 0.0
    %1985 = vmatpush1.msra.mxu0 0.0
    %1986 = vmatprep.subr.mxu0 0.0
    %1987 = vmatpush1.msra.mxu0 0.0
    %1988 = vmatprep.subr.mxu0 0.0
    %1989 = vmatpush1.msra.mxu0 0.0
    %1990 = vmatprep.subr.mxu0 0.0
    %1991 = vmatpush1.msra.mxu0 0.0
    %1992 = vmatprep.subr.mxu0 0.0
    %1993 = vmatpush1.msra.mxu0 0.0
    %1994 = vmatprep.subr.mxu0 0.0
    %1995 = vmatpush1.msra.mxu0 0.0
    %1996 = vmatprep.subr.mxu0 0.0
    %1997 = vmatpush1.msra.mxu0 %v436
    %1998 = vmatprep.subr.mxu0 0.0
    %1999 = vmatpush1.msra.mxu0 %v435
    %2000 = vmatprep.subr.mxu0 0.0
    %2001 = vmatpush1.msra.mxu0 %v434
    %2002 = vmatprep.subr.mxu0 0.0
    %2003 = vmatpush1.msra.mxu0 %v433
    %2004 = vmatprep.subr.mxu0 0.0
    %2005 = vmatpush2.msra.mxu0 0.0
    %2006 = vmatprep.subr.mxu0 0.0
    %2007 = vmatpush2.msra.mxu0 0.0
    %2008 = vmatprep.subr.mxu0 0.0
    %2009 = vmatpush2.msra.mxu0 0.0
    %2010 = vmatprep.subr.mxu0 0.0
    %2011 = vmatpush2.msra.mxu0 0.0
    %2012 = vmatprep.subr.mxu0 0.0
    %2013 = vmatpush2.msra.mxu0 0.0
    %2014 = vmatprep.subr.mxu0 0.0
    %2015 = vmatpush2.msra.mxu0 0.0
    %2016 = vmatprep.subr.mxu0 0.0
    %2017 = vmatpush2.msra.mxu0 0.0
    %2018 = vmatprep.subr.mxu0 0.0
    %2019 = vmatpush2.msra.mxu0 0.0
    %2020 = vmatprep.subr.mxu0 0.0
    %2021 = vmatpush2.msra.mxu0 0.0
    %2022 = vmatprep.subr.mxu0 0.0
    %2023 = vmatpush2.msra.mxu0 0.0
    %2024 = vmatprep.subr.mxu0 0.0
    %2025 = vmatpush2.msra.mxu0 0.0
    %2026 = vmatprep.subr.mxu0 0.0
    %2027 = vmatpush2.msra.mxu0 0.0
    %2028 = vmatprep.subr.mxu0 0.0
    %2029 = vmatpush2.msra.mxu0 0.0
    %2030 = vmatprep.subr.mxu0 0.0
    %2031 = vmatpush2.msra.mxu0 0.0
    %2032 = vmatprep.subr.mxu0 0.0
    %2033 = vmatpush2.msra.mxu0 0.0
    %2034 = vmatprep.subr.mxu0 0.0
    %2035 = vmatpush2.msra.mxu0 0.0
    %2036 = vmatprep.mubr.f32.mxu0 0.0
    %2037 = vmatmul.mubr.f32.gmra.mxu0 %v1970
    %v2038 = vpop.f32.mrf.mxu0
    %v2039 = vadd.f32 %v449, %v2038
    %v2040 = vpop.f32.mrf.mxu0
    %2041 = vdwg.mxu0
    %v2042 = vadd.f32 %v1966, %v2039
    %v2043 = vxor.u32 %v2042, 2147483648
    %v2044 = vmul.f32 %v2043, 1.442695
    %v2045 = vpow.pop %v2044
    %v2046 = vadd.f32 %v2045, 1.0
    %v2047 = vrcp.pop %v2046
    %v2048 = vmul.f32 1.0, %v2047
    %2050 = vrot.lane.b32.xlu0 %v2039, 64
    %v2051 = vpop.permute.xlu0 %2050
    %v2053 = vmul.f32 %v2048, %v2051
    %2055 = vrot.lane.b32.xlu0 %v2053, 64
    %v2056 = vpop.permute.xlu0 %2055
    %v2058 = vadd.f32 %v1966, %v2056
    %v2059 = vtanh.pop %v2058
    %v2060 = vsub.f32 %v1843, %v2059
    %2062 = vrot.lane.b32.xlu0 %v2060, 96
    %v2063 = vpop.permute.xlu0 %2062
    %v2065 = vmul.f32 %v2048, %v2063
    %2067 = vrot.lane.b32.xlu0 %v2065, 32
    %v2068 = vpop.permute.xlu0 %2067
    %v2070 = vadd.f32 %v2059, %v2068
    %v2071 = vsel %vm789, %v2070, %v1843
    %v2072 = vsel %vm789, %v2070, 0.0
    %2074 = vrot.lane.b32.xlu0 %v2072, 64
    %v2075 = vpop.permute.xlu0 %2074
    %s2077 = scalar_lea.vmem [#allocation5], 2
    %2078 = vst.msk [vmem:[%s2077] sm:$0x3] %vm565, %v2075
    %s2079 = scalar_lea.vmem [#allocation2], 14
    %v2080 = vld [vmem:[%s2079] sm:$0x3]
    %2082 = vrot.lane.b32.xlu0 %v1957, 64
    %v2083 = vpop.permute.xlu0 %2082
    %v2084 = vsel %vm136, %v2083, 0
    %2086 = vmatprep.subr.mxu0 0.0
    %2087 = vmatpush1.msra.mxu0 0.0
    %2088 = vmatprep.subr.mxu0 0.0
    %2089 = vmatpush1.msra.mxu0 0.0
    %2090 = vmatprep.subr.mxu0 0.0
    %2091 = vmatpush1.msra.mxu0 0.0
    %2092 = vmatprep.subr.mxu0 0.0
    %2093 = vmatpush1.msra.mxu0 0.0
    %2094 = vmatprep.subr.mxu0 0.0
    %2095 = vmatpush1.msra.mxu0 0.0
    %2096 = vmatprep.subr.mxu0 0.0
    %2097 = vmatpush1.msra.mxu0 0.0
    %2098 = vmatprep.subr.mxu0 0.0
    %2099 = vmatpush1.msra.mxu0 0.0
    %2100 = vmatprep.subr.mxu0 0.0
    %2101 = vmatpush1.msra.mxu0 0.0
    %2102 = vmatprep.subr.mxu0 0.0
    %2103 = vmatpush1.msra.mxu0 0.0
    %2104 = vmatprep.subr.mxu0 0.0
    %2105 = vmatpush1.msra.mxu0 0.0
    %2106 = vmatprep.subr.mxu0 0.0
    %2107 = vmatpush1.msra.mxu0 0.0
    %2108 = vmatprep.subr.mxu0 0.0
    %2109 = vmatpush1.msra.mxu0 0.0
    %2110 = vmatprep.subr.mxu0 0.0
    %2111 = vmatpush1.msra.mxu0 %v432
    %2112 = vmatprep.subr.mxu0 0.0
    %2113 = vmatpush1.msra.mxu0 %v431
    %2114 = vmatprep.subr.mxu0 0.0
    %2115 = vmatpush1.msra.mxu0 %v430
    %2116 = vmatprep.subr.mxu0 0.0
    %2117 = vmatpush1.msra.mxu0 %v429
    %2118 = vmatprep.subr.mxu0 0.0
    %2119 = vmatpush2.msra.mxu0 0.0
    %2120 = vmatprep.subr.mxu0 0.0
    %2121 = vmatpush2.msra.mxu0 0.0
    %2122 = vmatprep.subr.mxu0 0.0
    %2123 = vmatpush2.msra.mxu0 0.0
    %2124 = vmatprep.subr.mxu0 0.0
    %2125 = vmatpush2.msra.mxu0 0.0
    %2126 = vmatprep.subr.mxu0 0.0
    %2127 = vmatpush2.msra.mxu0 0.0
    %2128 = vmatprep.subr.mxu0 0.0
    %2129 = vmatpush2.msra.mxu0 0.0
    %2130 = vmatprep.subr.mxu0 0.0
    %2131 = vmatpush2.msra.mxu0 0.0
    %2132 = vmatprep.subr.mxu0 0.0
    %2133 = vmatpush2.msra.mxu0 0.0
    %2134 = vmatprep.subr.mxu0 0.0
    %2135 = vmatpush2.msra.mxu0 0.0
    %2136 = vmatprep.subr.mxu0 0.0
    %2137 = vmatpush2.msra.mxu0 0.0
    %2138 = vmatprep.subr.mxu0 0.0
    %2139 = vmatpush2.msra.mxu0 0.0
    %2140 = vmatprep.subr.mxu0 0.0
    %2141 = vmatpush2.msra.mxu0 0.0
    %2142 = vmatprep.subr.mxu0 0.0
    %2143 = vmatpush2.msra.mxu0 0.0
    %2144 = vmatprep.subr.mxu0 0.0
    %2145 = vmatpush2.msra.mxu0 0.0
    %2146 = vmatprep.subr.mxu0 0.0
    %2147 = vmatpush2.msra.mxu0 0.0
    %2148 = vmatprep.subr.mxu0 0.0
    %2149 = vmatpush2.msra.mxu0 0.0
    %2150 = vmatprep.mubr.f32.mxu0 0.0
    %2151 = vmatmul.mubr.f32.gmra.mxu0 %v2084
    %v2152 = vpop.f32.mrf.mxu0
    %v2153 = vadd.f32 %v442, %v2152
    %v2154 = vpop.f32.mrf.mxu0
    %2155 = vdwg.mxu0
    %v2156 = vadd.f32 %v2080, %v2153
    %v2157 = vxor.u32 %v2156, 2147483648
    %v2158 = vmul.f32 %v2157, 1.442695
    %v2159 = vpow.pop %v2158
    %v2160 = vadd.f32 %v2159, 1.0
    %v2161 = vrcp.pop %v2160
    %v2162 = vmul.f32 1.0, %v2161
    %2164 = vrot.lane.b32.xlu0 %v2153, 64
    %v2165 = vpop.permute.xlu0 %2164
    %v2167 = vmul.f32 %v2162, %v2165
    %2169 = vrot.lane.b32.xlu0 %v2167, 64
    %v2170 = vpop.permute.xlu0 %2169
    %v2172 = vadd.f32 %v2080, %v2170
    %v2173 = vtanh.pop %v2172
    %v2174 = vsub.f32 %v1957, %v2173
    %2176 = vrot.lane.b32.xlu0 %v2174, 96
    %v2177 = vpop.permute.xlu0 %2176
    %v2179 = vmul.f32 %v2162, %v2177
    %2181 = vrot.lane.b32.xlu0 %v2179, 32
    %v2182 = vpop.permute.xlu0 %2181
    %v2184 = vadd.f32 %v2173, %v2182
    %v2185 = vsel %vm673, %v2184, 0.0
    %2187 = vrot.lane.b32.xlu0 %v2185, 64
    %v2188 = vpop.permute.xlu0 %2187
    %s2190 = scalar_lea.vmem [#allocation4], 14
    %2191 = vst.msk [vmem:[%s2190] sm:$0x3] %vm565, %v2188
    %v2192 = vld [vmem:[#allocation3] sm:$0x3]
    %2194 = vrot.lane.b32.xlu0 %v2071, 64
    %v2195 = vpop.permute.xlu0 %2194
    %v2196 = vsel %vm136, %v2195, 0
    %2198 = vmatprep.subr.mxu0 0.0
    %2199 = vmatpush1.msra.mxu0 0.0
    %2200 = vmatprep.subr.mxu0 0.0
    %2201 = vmatpush1.msra.mxu0 0.0
    %2202 = vmatprep.subr.mxu0 0.0
    %2203 = vmatpush1.msra.mxu0 0.0
    %2204 = vmatprep.subr.mxu0 0.0
    %2205 = vmatpush1.msra.mxu0 0.0
    %2206 = vmatprep.subr.mxu0 0.0
    %2207 = vmatpush1.msra.mxu0 0.0
    %2208 = vmatprep.subr.mxu0 0.0
    %2209 = vmatpush1.msra.mxu0 0.0
    %2210 = vmatprep.subr.mxu0 0.0
    %2211 = vmatpush1.msra.mxu0 0.0
    %2212 = vmatprep.subr.mxu0 0.0
    %2213 = vmatpush1.msra.mxu0 0.0
    %2214 = vmatprep.subr.mxu0 0.0
    %2215 = vmatpush1.msra.mxu0 0.0
    %2216 = vmatprep.subr.mxu0 0.0
    %2217 = vmatpush1.msra.mxu0 0.0
    %2218 = vmatprep.subr.mxu0 0.0
    %2219 = vmatpush1.msra.mxu0 0.0
    %2220 = vmatprep.subr.mxu0 0.0
    %2221 = vmatpush1.msra.mxu0 0.0
    %2222 = vmatprep.subr.mxu0 0.0
    %2223 = vmatpush1.msra.mxu0 %v436
    %2224 = vmatprep.subr.mxu0 0.0
    %2225 = vmatpush1.msra.mxu0 %v435
    %2226 = vmatprep.subr.mxu0 0.0
    %2227 = vmatpush1.msra.mxu0 %v434
    %2228 = vmatprep.subr.mxu0 0.0
    %2229 = vmatpush1.msra.mxu0 %v433
    %2230 = vmatprep.subr.mxu0 0.0
    %2231 = vmatpush2.msra.mxu0 0.0
    %2232 = vmatprep.subr.mxu0 0.0
    %2233 = vmatpush2.msra.mxu0 0.0
    %2234 = vmatprep.subr.mxu0 0.0
    %2235 = vmatpush2.msra.mxu0 0.0
    %2236 = vmatprep.subr.mxu0 0.0
    %2237 = vmatpush2.msra.mxu0 0.0
    %2238 = vmatprep.subr.mxu0 0.0
    %2239 = vmatpush2.msra.mxu0 0.0
    %2240 = vmatprep.subr.mxu0 0.0
    %2241 = vmatpush2.msra.mxu0 0.0
    %2242 = vmatprep.subr.mxu0 0.0
    %2243 = vmatpush2.msra.mxu0 0.0
    %2244 = vmatprep.subr.mxu0 0.0
    %2245 = vmatpush2.msra.mxu0 0.0
    %2246 = vmatprep.subr.mxu0 0.0
    %2247 = vmatpush2.msra.mxu0 0.0
    %2248 = vmatprep.subr.mxu0 0.0
    %2249 = vmatpush2.msra.mxu0 0.0
    %2250 = vmatprep.subr.mxu0 0.0
    %2251 = vmatpush2.msra.mxu0 0.0
    %2252 = vmatprep.subr.mxu0 0.0
    %2253 = vmatpush2.msra.mxu0 0.0
    %2254 = vmatprep.subr.mxu0 0.0
    %2255 = vmatpush2.msra.mxu0 0.0
    %2256 = vmatprep.subr.mxu0 0.0
    %2257 = vmatpush2.msra.mxu0 0.0
    %2258 = vmatprep.subr.mxu0 0.0
    %2259 = vmatpush2.msra.mxu0 0.0
    %2260 = vmatprep.subr.mxu0 0.0
    %2261 = vmatpush2.msra.mxu0 0.0
    %2262 = vmatprep.mubr.f32.mxu0 0.0
    %2263 = vmatmul.mubr.f32.gmra.mxu0 %v2196
    %v2264 = vpop.f32.mrf.mxu0
    %v2265 = vadd.f32 %v449, %v2264
    %v2266 = vpop.f32.mrf.mxu0
    %2267 = vdwg.mxu0
    %v2268 = vadd.f32 %v2192, %v2265
    %v2269 = vxor.u32 %v2268, 2147483648
    %v2270 = vmul.f32 %v2269, 1.442695
    %v2271 = vpow.pop %v2270
    %v2272 = vadd.f32 %v2271, 1.0
    %v2273 = vrcp.pop %v2272
    %v2274 = vmul.f32 1.0, %v2273
    %2276 = vrot.lane.b32.xlu0 %v2265, 64
    %v2277 = vpop.permute.xlu0 %2276
    %v2279 = vmul.f32 %v2274, %v2277
    %2281 = vrot.lane.b32.xlu0 %v2279, 64
    %v2282 = vpop.permute.xlu0 %2281
    %v2284 = vadd.f32 %v2192, %v2282
    %v2285 = vtanh.pop %v2284
    %v2286 = vsub.f32 %v2071, %v2285
    %2288 = vrot.lane.b32.xlu0 %v2286, 96
    %v2289 = vpop.permute.xlu0 %2288
    %v2291 = vmul.f32 %v2274, %v2289
    %2293 = vrot.lane.b32.xlu0 %v2291, 32
    %v2294 = vpop.permute.xlu0 %2293
    %v2296 = vadd.f32 %v2285, %v2294
    %v2297 = vsel %vm559, %v2296, 0.0
    %2299 = vrot.lane.b32.xlu0 %v2297, 64
    %v2300 = vpop.permute.xlu0 %2299
    %2302 = vst.msk [vmem:[#allocation5] sm:$0x3] %vm565, %v2300
    %v2303 = vld [vmem:[#allocation4] sm:$0x3]
    %v2304 = vld [vmem:[#allocation4 + $0x2] sm:$0x3]
    %v2305 = vld [vmem:[#allocation4 + $0x4] sm:$0x3]
    %v2306 = vld [vmem:[#allocation4 + $0x6] sm:$0x3]
    %v2307 = vld [vmem:[#allocation4 + $0x8] sm:$0x3]
    %v2308 = vld [vmem:[#allocation4 + $0xa] sm:$0x3]
    %v2309 = vld [vmem:[#allocation4 + $0xc] sm:$0x3]
    %v2310 = vld [vmem:[#allocation4 + $0xe] sm:$0x3]
    %v2311 = vld [vmem:[#allocation5] sm:$0x3]
    %v2312 = vld [vmem:[#allocation5 + $0x2] sm:$0x3]
    %v2313 = vld [vmem:[#allocation5 + $0x4] sm:$0x3]
    %v2314 = vld [vmem:[#allocation5 + $0x6] sm:$0x3]
    %v2315 = vld [vmem:[#allocation5 + $0x8] sm:$0x3]
    %v2316 = vld [vmem:[#allocation5 + $0xa] sm:$0x3]
    %v2317 = vld [vmem:[#allocation5 + $0xc] sm:$0x3]
    %v2318 = vld [vmem:[#allocation5 + $0xe] sm:$0x3]
    %v2319 = vld [vmem:[%s8] sm:$0xff]
    %v2320 = vld [vmem:[%s8 + $0x8] sm:$0xff]
    %v2321 = vld [vmem:[%s8 + $0x10] sm:$0xff]
    %v2322 = vld [vmem:[%s8 + $0x18] sm:$0xff]
    %v2323 = vld [vmem:[%s9] sm:$0xff]
    %v2324 = vld [vmem:[%s9 + $0x8] sm:$0xff]
    %v2325 = vld [vmem:[%s9 + $0x10] sm:$0xff]
    %v2326 = vld [vmem:[%s9 + $0x18] sm:$0xff]
    %v2335 = vcombine.low %v2311, %v2312
    %v2336 = vcombine.low %v2313, %v2314
    %v2338 = vunpack.c.l.s4 1983009808
    %v2339 = vunpack.c.0.s8 %v2338
    %v2340 = vlaneseq
    %v2341 = vshrl.u32 %v2340, 7
    %v2342 = vsub.s32 %v2339, %v2341
    %v2343 = vrot.slane %v2335, %v2342
    %v2345 = vunpack.c.l.s4 1983009808
    %v2346 = vunpack.c.0.s8 %v2345
    %v2347 = vlaneseq
    %v2348 = vshrl.u32 %v2347, 7
    %v2349 = vsub.s32 %v2346, %v2348
    %v2350 = vrot.slane %v2336, %v2349
    %v2351 = vcombine.low %v2343, %v2350
    %v2352 = vcombine.low %v2315, %v2316
    %v2353 = vcombine.low %v2317, %v2318
    %v2355 = vunpack.c.l.s4 1983009808
    %v2356 = vunpack.c.0.s8 %v2355
    %v2357 = vlaneseq
    %v2358 = vshrl.u32 %v2357, 7
    %v2359 = vsub.s32 %v2356, %v2358
    %v2360 = vrot.slane %v2352, %v2359
    %v2362 = vunpack.c.l.s4 1983009808
    %v2363 = vunpack.c.0.s8 %v2362
    %v2364 = vlaneseq
    %v2365 = vshrl.u32 %v2364, 7
    %v2366 = vsub.s32 %v2363, %v2365
    %v2367 = vrot.slane %v2353, %v2366
    %v2368 = vcombine.low %v2360, %v2367
    %v2369 = vsel %vm136, %v2351, 0
    %v2371 = vsel %vm136, %v2368, 0
    %2373 = vmatprep.subr.mxu0 0.0
    %2374 = vmatpush1.msra.mxu0 0.0
    %2375 = vmatprep.subr.mxu0 0.0
    %2376 = vmatpush1.msra.mxu0 0.0
    %2377 = vmatprep.subr.mxu0 0.0
    %2378 = vmatpush1.msra.mxu0 0.0
    %2379 = vmatprep.subr.mxu0 0.0
    %2380 = vmatpush1.msra.mxu0 0.0
    %2381 = vmatprep.subr.mxu0 0.0
    %2382 = vmatpush1.msra.mxu0 0.0
    %2383 = vmatprep.subr.mxu0 0.0
    %2384 = vmatpush1.msra.mxu0 0.0
    %2385 = vmatprep.subr.mxu0 0.0
    %2386 = vmatpush1.msra.mxu0 0.0
    %2387 = vmatprep.subr.mxu0 0.0
    %2388 = vmatpush1.msra.mxu0 0.0
    %2389 = vmatprep.subr.mxu0 0.0
    %2390 = vmatpush1.msra.mxu0 0.0
    %2391 = vmatprep.subr.mxu0 0.0
    %2392 = vmatpush1.msra.mxu0 0.0
    %2393 = vmatprep.subr.mxu0 0.0
    %2394 = vmatpush1.msra.mxu0 0.0
    %2395 = vmatprep.subr.mxu0 0.0
    %2396 = vmatpush1.msra.mxu0 0.0
    %2397 = vmatprep.subr.mxu0 0.0
    %2398 = vmatpush1.msra.mxu0 %v2326
    %2399 = vmatprep.subr.mxu0 0.0
    %2400 = vmatpush1.msra.mxu0 %v2325
    %2401 = vmatprep.subr.mxu0 0.0
    %2402 = vmatpush1.msra.mxu0 %v2324
    %2403 = vmatprep.subr.mxu0 0.0
    %2404 = vmatpush1.msra.mxu0 %v2323
    %2405 = vmatprep.subr.mxu0 0.0
    %2406 = vmatpush2.msra.mxu0 0.0
    %2407 = vmatprep.subr.mxu0 0.0
    %2408 = vmatpush2.msra.mxu0 0.0
    %2409 = vmatprep.subr.mxu0 0.0
    %2410 = vmatpush2.msra.mxu0 0.0
    %2411 = vmatprep.subr.mxu0 0.0
    %2412 = vmatpush2.msra.mxu0 0.0
    %2413 = vmatprep.subr.mxu0 0.0
    %2414 = vmatpush2.msra.mxu0 0.0
    %2415 = vmatprep.subr.mxu0 0.0
    %2416 = vmatpush2.msra.mxu0 0.0
    %2417 = vmatprep.subr.mxu0 0.0
    %2418 = vmatpush2.msra.mxu0 0.0
    %2419 = vmatprep.subr.mxu0 0.0
    %2420 = vmatpush2.msra.mxu0 0.0
    %2421 = vmatprep.subr.mxu0 0.0
    %2422 = vmatpush2.msra.mxu0 0.0
    %2423 = vmatprep.subr.mxu0 0.0
    %2424 = vmatpush2.msra.mxu0 0.0
    %2425 = vmatprep.subr.mxu0 0.0
    %2426 = vmatpush2.msra.mxu0 0.0
    %2427 = vmatprep.subr.mxu0 0.0
    %2428 = vmatpush2.msra.mxu0 0.0
    %2429 = vmatprep.subr.mxu0 0.0
    %2430 = vmatpush2.msra.mxu0 0.0
    %2431 = vmatprep.subr.mxu0 0.0
    %2432 = vmatpush2.msra.mxu0 0.0
    %2433 = vmatprep.subr.mxu0 0.0
    %2434 = vmatpush2.msra.mxu0 0.0
    %2435 = vmatprep.subr.mxu0 0.0
    %2436 = vmatpush2.msra.mxu0 0.0
    %2437 = vmatprep.mubr.f32.mxu0 0.0
    %2438 = vmatmul.mubr.f32.gmra.mxu0 %v2369
    %v2439 = vpop.f32.mrf.mxu0
    %v2440 = vadd.f32 0.0, %v2439
    %v2441 = vpop.f32.mrf.mxu0
    %2442 = vmatprep.mubr.f32.mxu0 0.0
    %2443 = vmatmul.mubr.f32.gmra.mxu0 %v2371
    %v2444 = vpop.f32.mrf.mxu0
    %v2445 = vadd.f32 0.0, %v2444
    %v2446 = vpop.f32.mrf.mxu0
    %2447 = vdwg.mxu0
    %v2456 = vcombine.low %v2303, %v2304
    %v2457 = vcombine.low %v2305, %v2306
    %v2459 = vunpack.c.l.s4 1983009808
    %v2460 = vunpack.c.0.s8 %v2459
    %v2461 = vlaneseq
    %v2462 = vshrl.u32 %v2461, 7
    %v2463 = vsub.s32 %v2460, %v2462
    %v2464 = vrot.slane %v2456, %v2463
    %v2466 = vunpack.c.l.s4 1983009808
    %v2467 = vunpack.c.0.s8 %v2466
    %v2468 = vlaneseq
    %v2469 = vshrl.u32 %v2468, 7
    %v2470 = vsub.s32 %v2467, %v2469
    %v2471 = vrot.slane %v2457, %v2470
    %v2472 = vcombine.low %v2464, %v2471
    %v2473 = vcombine.low %v2307, %v2308
    %v2474 = vcombine.low %v2309, %v2310
    %v2476 = vunpack.c.l.s4 1983009808
    %v2477 = vunpack.c.0.s8 %v2476
    %v2478 = vlaneseq
    %v2479 = vshrl.u32 %v2478, 7
    %v2480 = vsub.s32 %v2477, %v2479
    %v2481 = vrot.slane %v2473, %v2480
    %v2483 = vunpack.c.l.s4 1983009808
    %v2484 = vunpack.c.0.s8 %v2483
    %v2485 = vlaneseq
    %v2486 = vshrl.u32 %v2485, 7
    %v2487 = vsub.s32 %v2484, %v2486
    %v2488 = vrot.slane %v2474, %v2487
    %v2489 = vcombine.low %v2481, %v2488
    %v2490 = vsel %vm136, %v2472, 0
    %v2492 = vsel %vm136, %v2489, 0
    %2494 = vmatprep.subr.mxu0 0.0
    %2495 = vmatpush1.msra.mxu0 0.0
    %2496 = vmatprep.subr.mxu0 0.0
    %2497 = vmatpush1.msra.mxu0 0.0
    %2498 = vmatprep.subr.mxu0 0.0
    %2499 = vmatpush1.msra.mxu0 0.0
    %2500 = vmatprep.subr.mxu0 0.0
    %2501 = vmatpush1.msra.mxu0 0.0
    %2502 = vmatprep.subr.mxu0 0.0
    %2503 = vmatpush1.msra.mxu0 0.0
    %2504 = vmatprep.subr.mxu0 0.0
    %2505 = vmatpush1.msra.mxu0 0.0
    %2506 = vmatprep.subr.mxu0 0.0
    %2507 = vmatpush1.msra.mxu0 0.0
    %2508 = vmatprep.subr.mxu0 0.0
    %2509 = vmatpush1.msra.mxu0 0.0
    %2510 = vmatprep.subr.mxu0 0.0
    %2511 = vmatpush1.msra.mxu0 0.0
    %2512 = vmatprep.subr.mxu0 0.0
    %2513 = vmatpush1.msra.mxu0 0.0
    %2514 = vmatprep.subr.mxu0 0.0
    %2515 = vmatpush1.msra.mxu0 0.0
    %2516 = vmatprep.subr.mxu0 0.0
    %2517 = vmatpush1.msra.mxu0 0.0
    %2518 = vmatprep.subr.mxu0 0.0
    %2519 = vmatpush1.msra.mxu0 %v2322
    %2520 = vmatprep.subr.mxu0 0.0
    %2521 = vmatpush1.msra.mxu0 %v2321
    %2522 = vmatprep.subr.mxu0 0.0
    %2523 = vmatpush1.msra.mxu0 %v2320
    %2524 = vmatprep.subr.mxu0 0.0
    %2525 = vmatpush1.msra.mxu0 %v2319
    %2526 = vmatprep.subr.mxu0 0.0
    %2527 = vmatpush2.msra.mxu0 0.0
    %2528 = vmatprep.subr.mxu0 0.0
    %2529 = vmatpush2.msra.mxu0 0.0
    %2530 = vmatprep.subr.mxu0 0.0
    %2531 = vmatpush2.msra.mxu0 0.0
    %2532 = vmatprep.subr.mxu0 0.0
    %2533 = vmatpush2.msra.mxu0 0.0
    %2534 = vmatprep.subr.mxu0 0.0
    %2535 = vmatpush2.msra.mxu0 0.0
    %2536 = vmatprep.subr.mxu0 0.0
    %2537 = vmatpush2.msra.mxu0 0.0
    %2538 = vmatprep.subr.mxu0 0.0
    %2539 = vmatpush2.msra.mxu0 0.0
    %2540 = vmatprep.subr.mxu0 0.0
    %2541 = vmatpush2.msra.mxu0 0.0
    %2542 = vmatprep.subr.mxu0 0.0
    %2543 = vmatpush2.msra.mxu0 0.0
    %2544 = vmatprep.subr.mxu0 0.0
    %2545 = vmatpush2.msra.mxu0 0.0
    %2546 = vmatprep.subr.mxu0 0.0
    %2547 = vmatpush2.msra.mxu0 0.0
    %2548 = vmatprep.subr.mxu0 0.0
    %2549 = vmatpush2.msra.mxu0 0.0
    %2550 = vmatprep.subr.mxu0 0.0
    %2551 = vmatpush2.msra.mxu0 0.0
    %2552 = vmatprep.subr.mxu0 0.0
    %2553 = vmatpush2.msra.mxu0 0.0
    %2554 = vmatprep.subr.mxu0 0.0
    %2555 = vmatpush2.msra.mxu0 0.0
    %2556 = vmatprep.subr.mxu0 0.0
    %2557 = vmatpush2.msra.mxu0 0.0
    %2558 = vmatprep.mubr.f32.mxu0 0.0
    %2559 = vmatmul.mubr.f32.gmra.mxu0 %v2490
    %v2560 = vpop.f32.mrf.mxu0
    %v2561 = vadd.f32 %v2440, %v2560
    %v2562 = vpop.f32.mrf.mxu0
    %2563 = vmatprep.mubr.f32.mxu0 0.0
    %2564 = vmatmul.mubr.f32.gmra.mxu0 %v2492
    %v2565 = vpop.f32.mrf.mxu0
    %v2566 = vadd.f32 %v2445, %v2565
    %v2567 = vpop.f32.mrf.mxu0
    %2568 = vdwg.mxu0
    %v2569 = vtanh.pop %v2561
    %v2570 = vtanh.pop %v2566
    %v2571 = vld [vmem:[%s10] sm:$0xff]
    %v2572 = vld [vmem:[%s10 + $0x8] sm:$0xff]
    %v2573 = vld [vmem:[%s10 + $0x10] sm:$0xff]
    %v2574 = vld [vmem:[%s10 + $0x18] sm:$0xff]
    %v2576 = vsel %vm136, %v2569, 0
    %v2579 = vsel %vm136, %v2570, 0
    %2581 = vmatprep.subr.mxu0 0.0
    %2582 = vmatpush1.msra.mxu0 0.0
    %2583 = vmatprep.subr.mxu0 0.0
    %2584 = vmatpush1.msra.mxu0 0.0
    %2585 = vmatprep.subr.mxu0 0.0
    %2586 = vmatpush1.msra.mxu0 0.0
    %2587 = vmatprep.subr.mxu0 0.0
    %2588 = vmatpush1.msra.mxu0 0.0
    %2589 = vmatprep.subr.mxu0 0.0
    %2590 = vmatpush1.msra.mxu0 0.0
    %2591 = vmatprep.subr.mxu0 0.0
    %2592 = vmatpush1.msra.mxu0 0.0
    %2593 = vmatprep.subr.mxu0 0.0
    %2594 = vmatpush1.msra.mxu0 0.0
    %2595 = vmatprep.subr.mxu0 0.0
    %2596 = vmatpush1.msra.mxu0 0.0
    %2597 = vmatprep.subr.mxu0 0.0
    %2598 = vmatpush1.msra.mxu0 0.0
    %2599 = vmatprep.subr.mxu0 0.0
    %2600 = vmatpush1.msra.mxu0 0.0
    %2601 = vmatprep.subr.mxu0 0.0
    %2602 = vmatpush1.msra.mxu0 0.0
    %2603 = vmatprep.subr.mxu0 0.0
    %2604 = vmatpush1.msra.mxu0 0.0
    %2605 = vmatprep.subr.mxu0 0.0
    %2606 = vmatpush1.msra.mxu0 %v2574
    %2607 = vmatprep.subr.mxu0 0.0
    %2608 = vmatpush1.msra.mxu0 %v2573
    %2609 = vmatprep.subr.mxu0 0.0
    %2610 = vmatpush1.msra.mxu0 %v2572
    %2611 = vmatprep.subr.mxu0 0.0
    %2612 = vmatpush1.msra.mxu0 %v2571
    %2613 = vmatprep.subr.mxu0 0.0
    %2614 = vmatpush2.msra.mxu0 0.0
    %2615 = vmatprep.subr.mxu0 0.0
    %2616 = vmatpush2.msra.mxu0 0.0
    %2617 = vmatprep.subr.mxu0 0.0
    %2618 = vmatpush2.msra.mxu0 0.0
    %2619 = vmatprep.subr.mxu0 0.0
    %2620 = vmatpush2.msra.mxu0 0.0
    %2621 = vmatprep.subr.mxu0 0.0
    %2622 = vmatpush2.msra.mxu0 0.0
    %2623 = vmatprep.subr.mxu0 0.0
    %2624 = vmatpush2.msra.mxu0 0.0
    %2625 = vmatprep.subr.mxu0 0.0
    %2626 = vmatpush2.msra.mxu0 0.0
    %2627 = vmatprep.subr.mxu0 0.0
    %2628 = vmatpush2.msra.mxu0 0.0
    %2629 = vmatprep.subr.mxu0 0.0
    %2630 = vmatpush2.msra.mxu0 0.0
    %2631 = vmatprep.subr.mxu0 0.0
    %2632 = vmatpush2.msra.mxu0 0.0
    %2633 = vmatprep.subr.mxu0 0.0
    %2634 = vmatpush2.msra.mxu0 0.0
    %2635 = vmatprep.subr.mxu0 0.0
    %2636 = vmatpush2.msra.mxu0 0.0
    %2637 = vmatprep.subr.mxu0 0.0
    %2638 = vmatpush2.msra.mxu0 0.0
    %2639 = vmatprep.subr.mxu0 0.0
    %2640 = vmatpush2.msra.mxu0 0.0
    %2641 = vmatprep.subr.mxu0 0.0
    %2642 = vmatpush2.msra.mxu0 0.0
    %2643 = vmatprep.subr.mxu0 0.0
    %2644 = vmatpush2.msra.mxu0 0.0
    %2645 = vmatprep.mubr.f32.mxu0 0.0
    %2646 = vmatmul.mubr.f32.gmra.mxu0 %v2576
    %v2647 = vpop.f32.mrf.mxu0
    %v2648 = vadd.f32 0.0, %v2647
    %v2649 = vpop.f32.mrf.mxu0
    %2650 = vmatprep.mubr.f32.mxu0 0.0
    %2651 = vmatmul.mubr.f32.gmra.mxu0 %v2579
    %v2652 = vpop.f32.mrf.mxu0
    %v2653 = vadd.f32 0.0, %v2652
    %v2654 = vpop.f32.mrf.mxu0
    %2655 = vdwg.mxu0
    %v2658 = vcombine.high %v2648, %v2648
    %v2660 = vunpack.c.l.s4 1983009808
    %v2661 = vunpack.c.0.s8 %v2660
    %v2662 = vlaneseq
    %v2663 = vshrl.u32 %v2662, 7
    %v2664 = vsub.s32 %v2661, %v2663
    %v2665 = vrot.slane %v2648, %v2664
    %v2667 = vunpack.c.l.s4 1983009808
    %v2668 = vunpack.c.0.s8 %v2667
    %v2669 = vlaneseq
    %v2670 = vshrl.u32 %v2669, 7
    %v2671 = vsub.s32 %v2668, %v2670
    %v2672 = vrot.slane %v2658, %v2671
    %v2673 = vcombine.high %v2665, %v2665
    %v2674 = vcombine.high %v2672, %v2672
    %v2675 = vcombine.high %v2653, %v2653
    %v2677 = vunpack.c.l.s4 1983009808
    %v2678 = vunpack.c.0.s8 %v2677
    %v2679 = vlaneseq
    %v2680 = vshrl.u32 %v2679, 7
    %v2681 = vsub.s32 %v2678, %v2680
    %v2682 = vrot.slane %v2653, %v2681
    %v2684 = vunpack.c.l.s4 1983009808
    %v2685 = vunpack.c.0.s8 %v2684
    %v2686 = vlaneseq
    %v2687 = vshrl.u32 %v2686, 7
    %v2688 = vsub.s32 %v2685, %v2687
    %v2689 = vrot.slane %v2675, %v2688
    %v2690 = vcombine.high %v2682, %v2682
    %v2691 = vcombine.high %v2689, %v2689
    %v2700 = vsel %vm559, %v2665, -1e+30
    %v2701 = vsel %vm789, %v2673, -1e+30
    %v2702 = vsel %vm1026, %v2672, -1e+30
    %v2703 = vsel %vm1266, %v2674, -1e+30
    %v2704 = vsel %vm1386, %v2682, -1e+30
    %v2705 = vsel %vm1146, %v2690, -1e+30
    %v2706 = vsel %vm906, %v2689, -1e+30
    %v2707 = vsel %vm673, %v2691, -1e+30
    %vm2708 = vcmask 58368
    %v2709 = vsel %vm2708, %v2700, -inf
    %v2710 = vsel %vm2708, %v2701, -inf
    %v2711 = vsel %vm2708, %v2702, -inf
    %v2712 = vsel %vm2708, %v2703, -inf
    %v2713 = vsel %vm2708, %v2704, -inf
    %v2714 = vmax.f32 %v2709, %v2713
    %v2715 = vsel %vm2708, %v2705, -inf
    %v2716 = vmax.f32 %v2710, %v2715
    %v2717 = vsel %vm2708, %v2706, -inf
    %v2718 = vmax.f32 %v2711, %v2717
    %v2719 = vsel %vm2708, %v2707, -inf
    %v2720 = vmax.f32 %v2712, %v2719
    %v2721 = vmax.f32 %v2714, %v2716
    %v2722 = vmax.f32 %v2718, %v2720
    %v2723 = vmax.f32 %v2721, %v2722
    %v2724 = vsub.f32 %v2700, %v2723
    %v2725 = vsub.f32 %v2701, %v2723
    %v2726 = vsub.f32 %v2702, %v2723
    %v2727 = vsub.f32 %v2703, %v2723
    %v2728 = vsub.f32 %v2704, %v2723
    %v2729 = vsub.f32 %v2705, %v2723
    %v2730 = vsub.f32 %v2706, %v2723
    %v2731 = vsub.f32 %v2707, %v2723
    %v2732 = vmul.f32 %v2724, 1.442695
    %v2733 = vpow.pop %v2732
    %v2734 = vmul.f32 %v2725, 1.442695
    %v2735 = vpow.pop %v2734
    %v2736 = vmul.f32 %v2726, 1.442695
    %v2737 = vpow.pop %v2736
    %v2738 = vmul.f32 %v2727, 1.442695
    %v2739 = vpow.pop %v2738
    %v2740 = vmul.f32 %v2728, 1.442695
    %v2741 = vpow.pop %v2740
    %v2742 = vmul.f32 %v2729, 1.442695
    %v2743 = vpow.pop %v2742
    %v2744 = vmul.f32 %v2730, 1.442695
    %v2745 = vpow.pop %v2744
    %v2746 = vmul.f32 %v2731, 1.442695
    %v2747 = vpow.pop %v2746
    %v2748 = vsel %vm2708, %v2733, 0.0
    %v2749 = vsel %vm2708, %v2735, 0.0
    %v2750 = vadd.f32 %v2748, %v2749
    %v2751 = vsel %vm2708, %v2737, 0.0
    %v2752 = vadd.f32 %v2750, %v2751
    %v2753 = vsel %vm2708, %v2739, 0.0
    %v2754 = vadd.f32 %v2752, %v2753
    %v2755 = vsel %vm2708, %v2741, 0.0
    %v2756 = vadd.f32 %v2754, %v2755
    %v2757 = vsel %vm2708, %v2743, 0.0
    %v2758 = vadd.f32 %v2756, %v2757
    %v2759 = vsel %vm2708, %v2745, 0.0
    %v2760 = vadd.f32 %v2758, %v2759
    %v2761 = vsel %vm2708, %v2747, 0.0
    %v2762 = vadd.f32 %v2760, %v2761
    %v2763 = vrcp.pop %v2762
    %v2764 = vmul.f32 %v2733, %v2763
    %v2765 = vmul.f32 %v2735, %v2763
    %v2766 = vmul.f32 %v2737, %v2763
    %v2767 = vmul.f32 %v2739, %v2763
    %v2768 = vmul.f32 %v2741, %v2763
    %v2769 = vmul.f32 %v2743, %v2763
    %v2770 = vmul.f32 %v2745, %v2763
    %v2771 = vmul.f32 %v2747, %v2763
    %2773 = vset.pattern.permute.xlu0 0
    %2774 = vperm.xlu0 %2773, %v2764
    %v2775 = vpop.permute.xlu0 %2774
    %2778 = vset.pattern.permute.xlu0 0
    %2779 = vperm.xlu0 %2778, %v2765
    %v2780 = vpop.permute.xlu0 %2779
    %2783 = vset.pattern.permute.xlu0 0
    %2784 = vperm.xlu0 %2783, %v2766
    %v2785 = vpop.permute.xlu0 %2784
    %2788 = vset.pattern.permute.xlu0 0
    %2789 = vperm.xlu0 %2788, %v2767
    %v2790 = vpop.permute.xlu0 %2789
    %2793 = vset.pattern.permute.xlu0 0
    %2794 = vperm.xlu0 %2793, %v2768
    %v2795 = vpop.permute.xlu0 %2794
    %2798 = vset.pattern.permute.xlu0 0
    %2799 = vperm.xlu0 %2798, %v2769
    %v2800 = vpop.permute.xlu0 %2799
    %2803 = vset.pattern.permute.xlu0 0
    %2804 = vperm.xlu0 %2803, %v2770
    %v2805 = vpop.permute.xlu0 %2804
    %2808 = vset.pattern.permute.xlu0 0
    %2809 = vperm.xlu0 %2808, %v2771
    %v2810 = vpop.permute.xlu0 %2809
    %v2812 = vmul.f32 %v2775, %v2303
    %v2813 = vmul.f32 %v2780, %v2304
    %v2814 = vmul.f32 %v2785, %v2305
    %v2815 = vmul.f32 %v2790, %v2306
    %v2816 = vmul.f32 %v2795, %v2307
    %v2817 = vmul.f32 %v2800, %v2308
    %v2818 = vmul.f32 %v2805, %v2309
    %v2819 = vmul.f32 %v2810, %v2310
    %v2820 = vsel %vm565, %v2812, 0.0
    %v2821 = vsel %vm565, %v2813, 0.0
    %v2822 = vadd.f32 %v2820, %v2821
    %v2823 = vsel %vm565, %v2814, 0.0
    %v2824 = vadd.f32 %v2822, %v2823
    %v2825 = vsel %vm565, %v2815, 0.0
    %v2826 = vadd.f32 %v2824, %v2825
    %v2827 = vsel %vm565, %v2816, 0.0
    %v2828 = vadd.f32 %v2826, %v2827
    %v2829 = vsel %vm565, %v2817, 0.0
    %v2830 = vadd.f32 %v2828, %v2829
    %v2831 = vsel %vm565, %v2818, 0.0
    %v2832 = vadd.f32 %v2830, %v2831
    %v2833 = vsel %vm565, %v2819, 0.0
    %v2834 = vadd.f32 %v2832, %v2833
    %v2835 = vmul.f32 %v2775, %v2311
    %v2836 = vmul.f32 %v2780, %v2312
    %v2837 = vmul.f32 %v2785, %v2313
    %v2838 = vmul.f32 %v2790, %v2314
    %v2839 = vmul.f32 %v2795, %v2315
    %v2840 = vmul.f32 %v2800, %v2316
    %v2841 = vmul.f32 %v2805, %v2317
    %v2842 = vmul.f32 %v2810, %v2318
    %v2843 = vsel %vm565, %v2835, 0.0
    %v2844 = vsel %vm565, %v2836, 0.0
    %v2845 = vadd.f32 %v2843, %v2844
    %v2846 = vsel %vm565, %v2837, 0.0
    %v2847 = vadd.f32 %v2845, %v2846
    %v2848 = vsel %vm565, %v2838, 0.0
    %v2849 = vadd.f32 %v2847, %v2848
    %v2850 = vsel %vm565, %v2839, 0.0
    %v2851 = vadd.f32 %v2849, %v2850
    %v2852 = vsel %vm565, %v2840, 0.0
    %v2853 = vadd.f32 %v2851, %v2852
    %v2854 = vsel %vm565, %v2841, 0.0
    %v2855 = vadd.f32 %v2853, %v2854
    %v2856 = vsel %vm565, %v2842, 0.0
    %v2857 = vadd.f32 %v2855, %v2856
    %2858 = vset.pattern.permute.xlu0 1
    %2859 = vperm.xlu0 %2858, %v2764
    %v2860 = vpop.permute.xlu0 %2859
    %2862 = vset.pattern.permute.xlu0 1
    %2863 = vperm.xlu0 %2862, %v2765
    %v2864 = vpop.permute.xlu0 %2863
    %2866 = vset.pattern.permute.xlu0 1
    %2867 = vperm.xlu0 %2866, %v2766
    %v2868 = vpop.permute.xlu0 %2867
    %2870 = vset.pattern.permute.xlu0 1
    %2871 = vperm.xlu0 %2870, %v2767
    %v2872 = vpop.permute.xlu0 %2871
    %2874 = vset.pattern.permute.xlu0 1
    %2875 = vperm.xlu0 %2874, %v2768
    %v2876 = vpop.permute.xlu0 %2875
    %2878 = vset.pattern.permute.xlu0 1
    %2879 = vperm.xlu0 %2878, %v2769
    %v2880 = vpop.permute.xlu0 %2879
    %2882 = vset.pattern.permute.xlu0 1
    %2883 = vperm.xlu0 %2882, %v2770
    %v2884 = vpop.permute.xlu0 %2883
    %2886 = vset.pattern.permute.xlu0 1
    %2887 = vperm.xlu0 %2886, %v2771
    %v2888 = vpop.permute.xlu0 %2887
    %v2890 = vmul.f32 %v2860, %v2303
    %v2891 = vmul.f32 %v2864, %v2304
    %v2892 = vmul.f32 %v2868, %v2305
    %v2893 = vmul.f32 %v2872, %v2306
    %v2894 = vmul.f32 %v2876, %v2307
    %v2895 = vmul.f32 %v2880, %v2308
    %v2896 = vmul.f32 %v2884, %v2309
    %v2897 = vmul.f32 %v2888, %v2310
    %v2898 = vsel %vm565, %v2890, 0.0
    %v2899 = vsel %vm565, %v2891, 0.0
    %v2900 = vadd.f32 %v2898, %v2899
    %v2901 = vsel %vm565, %v2892, 0.0
    %v2902 = vadd.f32 %v2900, %v2901
    %v2903 = vsel %vm565, %v2893, 0.0
    %v2904 = vadd.f32 %v2902, %v2903
    %v2905 = vsel %vm565, %v2894, 0.0
    %v2906 = vadd.f32 %v2904, %v2905
    %v2907 = vsel %vm565, %v2895, 0.0
    %v2908 = vadd.f32 %v2906, %v2907
    %v2909 = vsel %vm565, %v2896, 0.0
    %v2910 = vadd.f32 %v2908, %v2909
    %v2911 = vsel %vm565, %v2897, 0.0
    %v2912 = vadd.f32 %v2910, %v2911
    %v2913 = vmul.f32 %v2860, %v2311
    %v2914 = vmul.f32 %v2864, %v2312
    %v2915 = vmul.f32 %v2868, %v2313
    %v2916 = vmul.f32 %v2872, %v2314
    %v2917 = vmul.f32 %v2876, %v2315
    %v2918 = vmul.f32 %v2880, %v2316
    %v2919 = vmul.f32 %v2884, %v2317
    %v2920 = vmul.f32 %v2888, %v2318
    %v2921 = vsel %vm565, %v2913, 0.0
    %v2922 = vsel %vm565, %v2914, 0.0
    %v2923 = vadd.f32 %v2921, %v2922
    %v2924 = vsel %vm565, %v2915, 0.0
    %v2925 = vadd.f32 %v2923, %v2924
    %v2926 = vsel %vm565, %v2916, 0.0
    %v2927 = vadd.f32 %v2925, %v2926
    %v2928 = vsel %vm565, %v2917, 0.0
    %v2929 = vadd.f32 %v2927, %v2928
    %v2930 = vsel %vm565, %v2918, 0.0
    %v2931 = vadd.f32 %v2929, %v2930
    %v2932 = vsel %vm565, %v2919, 0.0
    %v2933 = vadd.f32 %v2931, %v2932
    %v2934 = vsel %vm565, %v2920, 0.0
    %v2935 = vadd.f32 %v2933, %v2934
    %2936 = vset.pattern.permute.xlu0 2
    %2937 = vperm.xlu0 %2936, %v2764
    %v2938 = vpop.permute.xlu0 %2937
    %2940 = vset.pattern.permute.xlu0 2
    %2941 = vperm.xlu0 %2940, %v2765
    %v2942 = vpop.permute.xlu0 %2941
    %2944 = vset.pattern.permute.xlu0 2
    %2945 = vperm.xlu0 %2944, %v2766
    %v2946 = vpop.permute.xlu0 %2945
    %2948 = vset.pattern.permute.xlu0 2
    %2949 = vperm.xlu0 %2948, %v2767
    %v2950 = vpop.permute.xlu0 %2949
    %2952 = vset.pattern.permute.xlu0 2
    %2953 = vperm.xlu0 %2952, %v2768
    %v2954 = vpop.permute.xlu0 %2953
    %2956 = vset.pattern.permute.xlu0 2
    %2957 = vperm.xlu0 %2956, %v2769
    %v2958 = vpop.permute.xlu0 %2957
    %2960 = vset.pattern.permute.xlu0 2
    %2961 = vperm.xlu0 %2960, %v2770
    %v2962 = vpop.permute.xlu0 %2961
    %2964 = vset.pattern.permute.xlu0 2
    %2965 = vperm.xlu0 %2964, %v2771
    %v2966 = vpop.permute.xlu0 %2965
    %v2968 = vmul.f32 %v2938, %v2303
    %v2969 = vmul.f32 %v2942, %v2304
    %v2970 = vmul.f32 %v2946, %v2305
    %v2971 = vmul.f32 %v2950, %v2306
    %v2972 = vmul.f32 %v2954, %v2307
    %v2973 = vmul.f32 %v2958, %v2308
    %v2974 = vmul.f32 %v2962, %v2309
    %v2975 = vmul.f32 %v2966, %v2310
    %v2976 = vsel %vm565, %v2968, 0.0
    %v2977 = vsel %vm565, %v2969, 0.0
    %v2978 = vadd.f32 %v2976, %v2977
    %v2979 = vsel %vm565, %v2970, 0.0
    %v2980 = vadd.f32 %v2978, %v2979
    %v2981 = vsel %vm565, %v2971, 0.0
    %v2982 = vadd.f32 %v2980, %v2981
    %v2983 = vsel %vm565, %v2972, 0.0
    %v2984 = vadd.f32 %v2982, %v2983
    %v2985 = vsel %vm565, %v2973, 0.0
    %v2986 = vadd.f32 %v2984, %v2985
    %v2987 = vsel %vm565, %v2974, 0.0
    %v2988 = vadd.f32 %v2986, %v2987
    %v2989 = vsel %vm565, %v2975, 0.0
    %v2990 = vadd.f32 %v2988, %v2989
    %v2991 = vmul.f32 %v2938, %v2311
    %v2992 = vmul.f32 %v2942, %v2312
    %v2993 = vmul.f32 %v2946, %v2313
    %v2994 = vmul.f32 %v2950, %v2314
    %v2995 = vmul.f32 %v2954, %v2315
    %v2996 = vmul.f32 %v2958, %v2316
    %v2997 = vmul.f32 %v2962, %v2317
    %v2998 = vmul.f32 %v2966, %v2318
    %v2999 = vsel %vm565, %v2991, 0.0
    %v3000 = vsel %vm565, %v2992, 0.0
    %v3001 = vadd.f32 %v2999, %v3000
    %v3002 = vsel %vm565, %v2993, 0.0
    %v3003 = vadd.f32 %v3001, %v3002
    %v3004 = vsel %vm565, %v2994, 0.0
    %v3005 = vadd.f32 %v3003, %v3004
    %v3006 = vsel %vm565, %v2995, 0.0
    %v3007 = vadd.f32 %v3005, %v3006
    %v3008 = vsel %vm565, %v2996, 0.0
    %v3009 = vadd.f32 %v3007, %v3008
    %v3010 = vsel %vm565, %v2997, 0.0
    %v3011 = vadd.f32 %v3009, %v3010
    %v3012 = vsel %vm565, %v2998, 0.0
    %v3013 = vadd.f32 %v3011, %v3012
    %3014 = vset.pattern.permute.xlu0 3
    %3015 = vperm.xlu0 %3014, %v2764
    %v3016 = vpop.permute.xlu0 %3015
    %3018 = vset.pattern.permute.xlu0 3
    %3019 = vperm.xlu0 %3018, %v2765
    %v3020 = vpop.permute.xlu0 %3019
    %3022 = vset.pattern.permute.xlu0 3
    %3023 = vperm.xlu0 %3022, %v2766
    %v3024 = vpop.permute.xlu0 %3023
    %3026 = vset.pattern.permute.xlu0 3
    %3027 = vperm.xlu0 %3026, %v2767
    %v3028 = vpop.permute.xlu0 %3027
    %3030 = vset.pattern.permute.xlu0 3
    %3031 = vperm.xlu0 %3030, %v2768
    %v3032 = vpop.permute.xlu0 %3031
    %3034 = vset.pattern.permute.xlu0 3
    %3035 = vperm.xlu0 %3034, %v2769
    %v3036 = vpop.permute.xlu0 %3035
    %3038 = vset.pattern.permute.xlu0 3
    %3039 = vperm.xlu0 %3038, %v2770
    %v3040 = vpop.permute.xlu0 %3039
    %3042 = vset.pattern.permute.xlu0 3
    %3043 = vperm.xlu0 %3042, %v2771
    %v3044 = vpop.permute.xlu0 %3043
    %v3046 = vmul.f32 %v3016, %v2303
    %v3047 = vmul.f32 %v3020, %v2304
    %v3048 = vmul.f32 %v3024, %v2305
    %v3049 = vmul.f32 %v3028, %v2306
    %v3050 = vmul.f32 %v3032, %v2307
    %v3051 = vmul.f32 %v3036, %v2308
    %v3052 = vmul.f32 %v3040, %v2309
    %v3053 = vmul.f32 %v3044, %v2310
    %v3054 = vsel %vm565, %v3046, 0.0
    %v3055 = vsel %vm565, %v3047, 0.0
    %v3056 = vadd.f32 %v3054, %v3055
    %v3057 = vsel %vm565, %v3048, 0.0
    %v3058 = vadd.f32 %v3056, %v3057
    %v3059 = vsel %vm565, %v3049, 0.0
    %v3060 = vadd.f32 %v3058, %v3059
    %v3061 = vsel %vm565, %v3050, 0.0
    %v3062 = vadd.f32 %v3060, %v3061
    %v3063 = vsel %vm565, %v3051, 0.0
    %v3064 = vadd.f32 %v3062, %v3063
    %v3065 = vsel %vm565, %v3052, 0.0
    %v3066 = vadd.f32 %v3064, %v3065
    %v3067 = vsel %vm565, %v3053, 0.0
    %v3068 = vadd.f32 %v3066, %v3067
    %v3069 = vmul.f32 %v3016, %v2311
    %v3070 = vmul.f32 %v3020, %v2312
    %v3071 = vmul.f32 %v3024, %v2313
    %v3072 = vmul.f32 %v3028, %v2314
    %v3073 = vmul.f32 %v3032, %v2315
    %v3074 = vmul.f32 %v3036, %v2316
    %v3075 = vmul.f32 %v3040, %v2317
    %v3076 = vmul.f32 %v3044, %v2318
    %v3077 = vsel %vm565, %v3069, 0.0
    %v3078 = vsel %vm565, %v3070, 0.0
    %v3079 = vadd.f32 %v3077, %v3078
    %v3080 = vsel %vm565, %v3071, 0.0
    %v3081 = vadd.f32 %v3079, %v3080
    %v3082 = vsel %vm565, %v3072, 0.0
    %v3083 = vadd.f32 %v3081, %v3082
    %v3084 = vsel %vm565, %v3073, 0.0
    %v3085 = vadd.f32 %v3083, %v3084
    %v3086 = vsel %vm565, %v3074, 0.0
    %v3087 = vadd.f32 %v3085, %v3086
    %v3088 = vsel %vm565, %v3075, 0.0
    %v3089 = vadd.f32 %v3087, %v3088
    %v3090 = vsel %vm565, %v3076, 0.0
    %v3091 = vadd.f32 %v3089, %v3090
    %3092 = vset.pattern.permute.xlu0 4
    %3093 = vperm.xlu0 %3092, %v2764
    %v3094 = vpop.permute.xlu0 %3093
    %3096 = vset.pattern.permute.xlu0 4
    %3097 = vperm.xlu0 %3096, %v2765
    %v3098 = vpop.permute.xlu0 %3097
    %3100 = vset.pattern.permute.xlu0 4
    %3101 = vperm.xlu0 %3100, %v2766
    %v3102 = vpop.permute.xlu0 %3101
    %3104 = vset.pattern.permute.xlu0 4
    %3105 = vperm.xlu0 %3104, %v2767
    %v3106 = vpop.permute.xlu0 %3105
    %3108 = vset.pattern.permute.xlu0 4
    %3109 = vperm.xlu0 %3108, %v2768
    %v3110 = vpop.permute.xlu0 %3109
    %3112 = vset.pattern.permute.xlu0 4
    %3113 = vperm.xlu0 %3112, %v2769
    %v3114 = vpop.permute.xlu0 %3113
    %3116 = vset.pattern.permute.xlu0 4
    %3117 = vperm.xlu0 %3116, %v2770
    %v3118 = vpop.permute.xlu0 %3117
    %3120 = vset.pattern.permute.xlu0 4
    %3121 = vperm.xlu0 %3120, %v2771
    %v3122 = vpop.permute.xlu0 %3121
    %v3124 = vmul.f32 %v3094, %v2303
    %v3125 = vmul.f32 %v3098, %v2304
    %v3126 = vmul.f32 %v3102, %v2305
    %v3127 = vmul.f32 %v3106, %v2306
    %v3128 = vmul.f32 %v3110, %v2307
    %v3129 = vmul.f32 %v3114, %v2308
    %v3130 = vmul.f32 %v3118, %v2309
    %v3131 = vmul.f32 %v3122, %v2310
    %v3132 = vsel %vm565, %v3124, 0.0
    %v3133 = vsel %vm565, %v3125, 0.0
    %v3134 = vadd.f32 %v3132, %v3133
    %v3135 = vsel %vm565, %v3126, 0.0
    %v3136 = vadd.f32 %v3134, %v3135
    %v3137 = vsel %vm565, %v3127, 0.0
    %v3138 = vadd.f32 %v3136, %v3137
    %v3139 = vsel %vm565, %v3128, 0.0
    %v3140 = vadd.f32 %v3138, %v3139
    %v3141 = vsel %vm565, %v3129, 0.0
    %v3142 = vadd.f32 %v3140, %v3141
    %v3143 = vsel %vm565, %v3130, 0.0
    %v3144 = vadd.f32 %v3142, %v3143
    %v3145 = vsel %vm565, %v3131, 0.0
    %v3146 = vadd.f32 %v3144, %v3145
    %v3147 = vmul.f32 %v3094, %v2311
    %v3148 = vmul.f32 %v3098, %v2312
    %v3149 = vmul.f32 %v3102, %v2313
    %v3150 = vmul.f32 %v3106, %v2314
    %v3151 = vmul.f32 %v3110, %v2315
    %v3152 = vmul.f32 %v3114, %v2316
    %v3153 = vmul.f32 %v3118, %v2317
    %v3154 = vmul.f32 %v3122, %v2318
    %v3155 = vsel %vm565, %v3147, 0.0
    %v3156 = vsel %vm565, %v3148, 0.0
    %v3157 = vadd.f32 %v3155, %v3156
    %v3158 = vsel %vm565, %v3149, 0.0
    %v3159 = vadd.f32 %v3157, %v3158
    %v3160 = vsel %vm565, %v3150, 0.0
    %v3161 = vadd.f32 %v3159, %v3160
    %v3162 = vsel %vm565, %v3151, 0.0
    %v3163 = vadd.f32 %v3161, %v3162
    %v3164 = vsel %vm565, %v3152, 0.0
    %v3165 = vadd.f32 %v3163, %v3164
    %v3166 = vsel %vm565, %v3153, 0.0
    %v3167 = vadd.f32 %v3165, %v3166
    %v3168 = vsel %vm565, %v3154, 0.0
    %v3169 = vadd.f32 %v3167, %v3168
    %3170 = vset.pattern.permute.xlu0 5
    %3171 = vperm.xlu0 %3170, %v2764
    %v3172 = vpop.permute.xlu0 %3171
    %3174 = vset.pattern.permute.xlu0 5
    %3175 = vperm.xlu0 %3174, %v2765
    %v3176 = vpop.permute.xlu0 %3175
    %3178 = vset.pattern.permute.xlu0 5
    %3179 = vperm.xlu0 %3178, %v2766
    %v3180 = vpop.permute.xlu0 %3179
    %3182 = vset.pattern.permute.xlu0 5
    %3183 = vperm.xlu0 %3182, %v2767
    %v3184 = vpop.permute.xlu0 %3183
    %3186 = vset.pattern.permute.xlu0 5
    %3187 = vperm.xlu0 %3186, %v2768
    %v3188 = vpop.permute.xlu0 %3187
    %3190 = vset.pattern.permute.xlu0 5
    %3191 = vperm.xlu0 %3190, %v2769
    %v3192 = vpop.permute.xlu0 %3191
    %3194 = vset.pattern.permute.xlu0 5
    %3195 = vperm.xlu0 %3194, %v2770
    %v3196 = vpop.permute.xlu0 %3195
    %3198 = vset.pattern.permute.xlu0 5
    %3199 = vperm.xlu0 %3198, %v2771
    %v3200 = vpop.permute.xlu0 %3199
    %v3202 = vmul.f32 %v3172, %v2303
    %v3203 = vmul.f32 %v3176, %v2304
    %v3204 = vmul.f32 %v3180, %v2305
    %v3205 = vmul.f32 %v3184, %v2306
    %v3206 = vmul.f32 %v3188, %v2307
    %v3207 = vmul.f32 %v3192, %v2308
    %v3208 = vmul.f32 %v3196, %v2309
    %v3209 = vmul.f32 %v3200, %v2310
    %v3210 = vsel %vm565, %v3202, 0.0
    %v3211 = vsel %vm565, %v3203, 0.0
    %v3212 = vadd.f32 %v3210, %v3211
    %v3213 = vsel %vm565, %v3204, 0.0
    %v3214 = vadd.f32 %v3212, %v3213
    %v3215 = vsel %vm565, %v3205, 0.0
    %v3216 = vadd.f32 %v3214, %v3215
    %v3217 = vsel %vm565, %v3206, 0.0
    %v3218 = vadd.f32 %v3216, %v3217
    %v3219 = vsel %vm565, %v3207, 0.0
    %v3220 = vadd.f32 %v3218, %v3219
    %v3221 = vsel %vm565, %v3208, 0.0
    %v3222 = vadd.f32 %v3220, %v3221
    %v3223 = vsel %vm565, %v3209, 0.0
    %v3224 = vadd.f32 %v3222, %v3223
    %v3225 = vmul.f32 %v3172, %v2311
    %v3226 = vmul.f32 %v3176, %v2312
    %v3227 = vmul.f32 %v3180, %v2313
    %v3228 = vmul.f32 %v3184, %v2314
    %v3229 = vmul.f32 %v3188, %v2315
    %v3230 = vmul.f32 %v3192, %v2316
    %v3231 = vmul.f32 %v3196, %v2317
    %v3232 = vmul.f32 %v3200, %v2318
    %v3233 = vsel %vm565, %v3225, 0.0
    %v3234 = vsel %vm565, %v3226, 0.0
    %v3235 = vadd.f32 %v3233, %v3234
    %v3236 = vsel %vm565, %v3227, 0.0
    %v3237 = vadd.f32 %v3235, %v3236
    %v3238 = vsel %vm565, %v3228, 0.0
    %v3239 = vadd.f32 %v3237, %v3238
    %v3240 = vsel %vm565, %v3229, 0.0
    %v3241 = vadd.f32 %v3239, %v3240
    %v3242 = vsel %vm565, %v3230, 0.0
    %v3243 = vadd.f32 %v3241, %v3242
    %v3244 = vsel %vm565, %v3231, 0.0
    %v3245 = vadd.f32 %v3243, %v3244
    %v3246 = vsel %vm565, %v3232, 0.0
    %v3247 = vadd.f32 %v3245, %v3246
    %3248 = vset.pattern.permute.xlu0 6
    %3249 = vperm.xlu0 %3248, %v2764
    %v3250 = vpop.permute.xlu0 %3249
    %3252 = vset.pattern.permute.xlu0 6
    %3253 = vperm.xlu0 %3252, %v2765
    %v3254 = vpop.permute.xlu0 %3253
    %3256 = vset.pattern.permute.xlu0 6
    %3257 = vperm.xlu0 %3256, %v2766
    %v3258 = vpop.permute.xlu0 %3257
    %3260 = vset.pattern.permute.xlu0 6
    %3261 = vperm.xlu0 %3260, %v2767
    %v3262 = vpop.permute.xlu0 %3261
    %3264 = vset.pattern.permute.xlu0 6
    %3265 = vperm.xlu0 %3264, %v2768
    %v3266 = vpop.permute.xlu0 %3265
    %3268 = vset.pattern.permute.xlu0 6
    %3269 = vperm.xlu0 %3268, %v2769
    %v3270 = vpop.permute.xlu0 %3269
    %3272 = vset.pattern.permute.xlu0 6
    %3273 = vperm.xlu0 %3272, %v2770
    %v3274 = vpop.permute.xlu0 %3273
    %3276 = vset.pattern.permute.xlu0 6
    %3277 = vperm.xlu0 %3276, %v2771
    %v3278 = vpop.permute.xlu0 %3277
    %v3280 = vmul.f32 %v3250, %v2303
    %v3281 = vmul.f32 %v3254, %v2304
    %v3282 = vmul.f32 %v3258, %v2305
    %v3283 = vmul.f32 %v3262, %v2306
    %v3284 = vmul.f32 %v3266, %v2307
    %v3285 = vmul.f32 %v3270, %v2308
    %v3286 = vmul.f32 %v3274, %v2309
    %v3287 = vmul.f32 %v3278, %v2310
    %v3288 = vsel %vm565, %v3280, 0.0
    %v3289 = vsel %vm565, %v3281, 0.0
    %v3290 = vadd.f32 %v3288, %v3289
    %v3291 = vsel %vm565, %v3282, 0.0
    %v3292 = vadd.f32 %v3290, %v3291
    %v3293 = vsel %vm565, %v3283, 0.0
    %v3294 = vadd.f32 %v3292, %v3293
    %v3295 = vsel %vm565, %v3284, 0.0
    %v3296 = vadd.f32 %v3294, %v3295
    %v3297 = vsel %vm565, %v3285, 0.0
    %v3298 = vadd.f32 %v3296, %v3297
    %v3299 = vsel %vm565, %v3286, 0.0
    %v3300 = vadd.f32 %v3298, %v3299
    %v3301 = vsel %vm565, %v3287, 0.0
    %v3302 = vadd.f32 %v3300, %v3301
    %v3303 = vmul.f32 %v3250, %v2311
    %v3304 = vmul.f32 %v3254, %v2312
    %v3305 = vmul.f32 %v3258, %v2313
    %v3306 = vmul.f32 %v3262, %v2314
    %v3307 = vmul.f32 %v3266, %v2315
    %v3308 = vmul.f32 %v3270, %v2316
    %v3309 = vmul.f32 %v3274, %v2317
    %v3310 = vmul.f32 %v3278, %v2318
    %v3311 = vsel %vm565, %v3303, 0.0
    %v3312 = vsel %vm565, %v3304, 0.0
    %v3313 = vadd.f32 %v3311, %v3312
    %v3314 = vsel %vm565, %v3305, 0.0
    %v3315 = vadd.f32 %v3313, %v3314
    %v3316 = vsel %vm565, %v3306, 0.0
    %v3317 = vadd.f32 %v3315, %v3316
    %v3318 = vsel %vm565, %v3307, 0.0
    %v3319 = vadd.f32 %v3317, %v3318
    %v3320 = vsel %vm565, %v3308, 0.0
    %v3321 = vadd.f32 %v3319, %v3320
    %v3322 = vsel %vm565, %v3309, 0.0
    %v3323 = vadd.f32 %v3321, %v3322
    %v3324 = vsel %vm565, %v3310, 0.0
    %v3325 = vadd.f32 %v3323, %v3324
    %3326 = vset.pattern.permute.xlu0 7
    %3327 = vperm.xlu0 %3326, %v2764
    %v3328 = vpop.permute.xlu0 %3327
    %3330 = vset.pattern.permute.xlu0 7
    %3331 = vperm.xlu0 %3330, %v2765
    %v3332 = vpop.permute.xlu0 %3331
    %3334 = vset.pattern.permute.xlu0 7
    %3335 = vperm.xlu0 %3334, %v2766
    %v3336 = vpop.permute.xlu0 %3335
    %3338 = vset.pattern.permute.xlu0 7
    %3339 = vperm.xlu0 %3338, %v2767
    %v3340 = vpop.permute.xlu0 %3339
    %3342 = vset.pattern.permute.xlu0 7
    %3343 = vperm.xlu0 %3342, %v2768
    %v3344 = vpop.permute.xlu0 %3343
    %3346 = vset.pattern.permute.xlu0 7
    %3347 = vperm.xlu0 %3346, %v2769
    %v3348 = vpop.permute.xlu0 %3347
    %3350 = vset.pattern.permute.xlu0 7
    %3351 = vperm.xlu0 %3350, %v2770
    %v3352 = vpop.permute.xlu0 %3351
    %3354 = vset.pattern.permute.xlu0 7
    %3355 = vperm.xlu0 %3354, %v2771
    %v3356 = vpop.permute.xlu0 %3355
    %v3358 = vmul.f32 %v3328, %v2303
    %v3359 = vmul.f32 %v3332, %v2304
    %v3360 = vmul.f32 %v3336, %v2305
    %v3361 = vmul.f32 %v3340, %v2306
    %v3362 = vmul.f32 %v3344, %v2307
    %v3363 = vmul.f32 %v3348, %v2308
    %v3364 = vmul.f32 %v3352, %v2309
    %v3365 = vmul.f32 %v3356, %v2310
    %v3366 = vsel %vm565, %v3358, 0.0
    %v3367 = vsel %vm565, %v3359, 0.0
    %v3368 = vadd.f32 %v3366, %v3367
    %v3369 = vsel %vm565, %v3360, 0.0
    %v3370 = vadd.f32 %v3368, %v3369
    %v3371 = vsel %vm565, %v3361, 0.0
    %v3372 = vadd.f32 %v3370, %v3371
    %v3373 = vsel %vm565, %v3362, 0.0
    %v3374 = vadd.f32 %v3372, %v3373
    %v3375 = vsel %vm565, %v3363, 0.0
    %v3376 = vadd.f32 %v3374, %v3375
    %v3377 = vsel %vm565, %v3364, 0.0
    %v3378 = vadd.f32 %v3376, %v3377
    %v3379 = vsel %vm565, %v3365, 0.0
    %v3380 = vadd.f32 %v3378, %v3379
    %v3381 = vmul.f32 %v3328, %v2311
    %v3382 = vmul.f32 %v3332, %v2312
    %v3383 = vmul.f32 %v3336, %v2313
    %v3384 = vmul.f32 %v3340, %v2314
    %v3385 = vmul.f32 %v3344, %v2315
    %v3386 = vmul.f32 %v3348, %v2316
    %v3387 = vmul.f32 %v3352, %v2317
    %v3388 = vmul.f32 %v3356, %v2318
    %v3389 = vsel %vm565, %v3381, 0.0
    %v3390 = vsel %vm565, %v3382, 0.0
    %v3391 = vadd.f32 %v3389, %v3390
    %v3392 = vsel %vm565, %v3383, 0.0
    %v3393 = vadd.f32 %v3391, %v3392
    %v3394 = vsel %vm565, %v3384, 0.0
    %v3395 = vadd.f32 %v3393, %v3394
    %v3396 = vsel %vm565, %v3385, 0.0
    %v3397 = vadd.f32 %v3395, %v3396
    %v3398 = vsel %vm565, %v3386, 0.0
    %v3399 = vadd.f32 %v3397, %v3398
    %v3400 = vsel %vm565, %v3387, 0.0
    %v3401 = vadd.f32 %v3399, %v3400
    %v3402 = vsel %vm565, %v3388, 0.0
    %v3403 = vadd.f32 %v3401, %v3402
    %3405 = vrot.lane.b32.xlu0 %v2857, 32
    %v3406 = vpop.permute.xlu0 %3405
    %3409 = vrot.lane.b32.xlu0 %v2912, 64
    %v3410 = vpop.permute.xlu0 %3409
    %3413 = vrot.lane.b32.xlu0 %v2935, 96
    %v3414 = vpop.permute.xlu0 %3413
    %3417 = vrot.lane.b32.xlu0 %v3013, 32
    %v3418 = vpop.permute.xlu0 %3417
    %3421 = vrot.lane.b32.xlu0 %v3068, 64
    %v3422 = vpop.permute.xlu0 %3421
    %3425 = vrot.lane.b32.xlu0 %v3091, 96
    %v3426 = vpop.permute.xlu0 %3425
    %3429 = vrot.lane.b32.xlu0 %v3169, 32
    %v3430 = vpop.permute.xlu0 %3429
    %3433 = vrot.lane.b32.xlu0 %v3224, 64
    %v3434 = vpop.permute.xlu0 %3433
    %3437 = vrot.lane.b32.xlu0 %v3247, 96
    %v3438 = vpop.permute.xlu0 %3437
    %3441 = vrot.lane.b32.xlu0 %v3325, 32
    %v3442 = vpop.permute.xlu0 %3441
    %3445 = vrot.lane.b32.xlu0 %v3380, 64
    %v3446 = vpop.permute.xlu0 %3445
    %3449 = vrot.lane.b32.xlu0 %v3403, 96
    %v3450 = vpop.permute.xlu0 %3449
    %v3452 = vsel %vm136, %v2834, %v3406
    %vm3453 = vcmask 523264
    %v3454 = vsel %vm3453, %v3452, %v3410
    %vm3455 = vcmask 785408
    %v3456 = vsel %vm3455, %v3454, %v3414
    %v3457 = vsel %vm136, %v2990, %v3418
    %v3458 = vsel %vm3453, %v3457, %v3422
    %v3459 = vsel %vm3455, %v3458, %v3426
    %v3460 = vsel %vm136, %v3146, %v3430
    %v3461 = vsel %vm3453, %v3460, %v3434
    %v3462 = vsel %vm3455, %v3461, %v3438
    %v3463 = vsel %vm136, %v3302, %v3442
    %v3464 = vsel %vm3453, %v3463, %v3446
    %v3465 = vsel %vm3455, %v3464, %v3450
    %v3466 = vld [vmem:[#allocation6] sm:$0xff]
    %v3467 = vld [vmem:[#allocation6 + $0x8] sm:$0xff]
    %v3468 = vld [vmem:[#allocation6 + $0x10] sm:$0xff]
    %v3469 = vld [vmem:[#allocation6 + $0x18] sm:$0xff]
    %v3470 = vld [vmem:[#allocation6 + $0x20] sm:$0xff]
    %v3471 = vld [vmem:[#allocation6 + $0x28] sm:$0xff]
    %v3472 = vld [vmem:[#allocation6 + $0x30] sm:$0xff]
    %v3473 = vld [vmem:[#allocation6 + $0x38] sm:$0xff]
    %v3474 = vld [vmem:[#allocation6 + $0x40] sm:$0xff]
    %v3475 = vld [vmem:[#allocation6 + $0x48] sm:$0xff]
    %v3476 = vld [vmem:[#allocation6 + $0x50] sm:$0xff]
    %v3477 = vld [vmem:[#allocation6 + $0x58] sm:$0xff]
    %v3478 = vld [vmem:[#allocation6 + $0x60] sm:$0xff]
    %v3479 = vld [vmem:[#allocation6 + $0x68] sm:$0xff]
    %v3480 = vld [vmem:[#allocation6 + $0x70] sm:$0xff]
    %v3481 = vld [vmem:[#allocation6 + $0x78] sm:$0xff]
    %v3482 = vld [vmem:[#allocation6 + $0x80] sm:$0xff]
    %v3483 = vld [vmem:[#allocation6 + $0x88] sm:$0xff]
    %v3484 = vld [vmem:[#allocation6 + $0x90] sm:$0xff]
    %v3485 = vld [vmem:[#allocation6 + $0x98] sm:$0xff]
    %v3486 = vld [vmem:[#allocation6 + $0xa0] sm:$0xff]
    %v3487 = vld [vmem:[#allocation6 + $0xa8] sm:$0xff]
    %v3488 = vld [vmem:[#allocation6 + $0xb0] sm:$0xff]
    %v3489 = vld [vmem:[#allocation6 + $0xb8] sm:$0xff]
    %v3490 = vld [vmem:[#allocation6 + $0xc0] sm:$0xff]
    %v3491 = vld [vmem:[#allocation6 + $0xc8] sm:$0xff]
    %v3492 = vld [vmem:[#allocation6 + $0xd0] sm:$0xff]
    %v3493 = vld [vmem:[#allocation6 + $0xd8] sm:$0xff]
    %v3494 = vld [vmem:[#allocation6 + $0xe0] sm:$0xff]
    %v3495 = vld [vmem:[#allocation6 + $0xe8] sm:$0xff]
    %v3496 = vld [vmem:[#allocation6 + $0xf0] sm:$0xff]
    %v3497 = vld [vmem:[#allocation6 + $0xf8] sm:$0xff]
    %v3498 = vld [vmem:[#allocation6 + $0x100] sm:$0xff]
    %v3499 = vld [vmem:[#allocation6 + $0x108] sm:$0xff]
    %v3500 = vld [vmem:[#allocation6 + $0x110] sm:$0xff]
    %v3501 = vld [vmem:[#allocation6 + $0x118] sm:$0xff]
    %v3502 = vld [vmem:[#allocation6 + $0x120] sm:$0xff]
    %v3503 = vld [vmem:[#allocation6 + $0x128] sm:$0xff]
    %v3504 = vld [vmem:[#allocation6 + $0x130] sm:$0xff]
    %v3505 = vld [vmem:[#allocation6 + $0x138] sm:$0xff]
    %v3506 = vld [vmem:[#allocation6 + $0x140] sm:$0xff]
    %v3507 = vld [vmem:[#allocation6 + $0x148] sm:$0xff]
    %v3508 = vld [vmem:[#allocation6 + $0x150] sm:$0xff]
    %v3509 = vld [vmem:[#allocation6 + $0x158] sm:$0xff]
    %v3510 = vld [vmem:[#allocation6 + $0x160] sm:$0xff]
    %v3511 = vld [vmem:[#allocation6 + $0x168] sm:$0xff]
    %v3512 = vld [vmem:[#allocation6 + $0x170] sm:$0xff]
    %v3513 = vld [vmem:[#allocation6 + $0x178] sm:$0xff]
    %v3514 = vld [vmem:[#allocation6 + $0x180] sm:$0xff]
    %v3515 = vld [vmem:[#allocation6 + $0x188] sm:$0xff]
    %v3516 = vld [vmem:[#allocation6 + $0x190] sm:$0xff]
    %v3517 = vld [vmem:[#allocation6 + $0x198] sm:$0xff]
    %v3518 = vld [vmem:[#allocation6 + $0x1a0] sm:$0xff]
    %v3519 = vld [vmem:[#allocation6 + $0x1a8] sm:$0xff]
    %v3520 = vld [vmem:[#allocation6 + $0x1b0] sm:$0xff]
    %v3521 = vld [vmem:[#allocation6 + $0x1b8] sm:$0xff]
    %v3522 = vld [vmem:[#allocation6 + $0x1c0] sm:$0xff]
    %v3523 = vld [vmem:[#allocation6 + $0x1c8] sm:$0xff]
    %v3524 = vld [vmem:[#allocation6 + $0x1d0] sm:$0xff]
    %v3525 = vld [vmem:[#allocation6 + $0x1d8] sm:$0xff]
    %v3526 = vld [vmem:[#allocation6 + $0x1e0] sm:$0xff]
    %v3527 = vld [vmem:[#allocation6 + $0x1e8] sm:$0xff]
    %v3528 = vld [vmem:[#allocation6 + $0x1f0] sm:$0xff]
    %v3529 = vld [vmem:[#allocation6 + $0x1f8] sm:$0xff]
    %v3530 = vld [vmem:[#allocation6 + $0x200] sm:$0xff]
    %v3531 = vld [vmem:[#allocation6 + $0x208] sm:$0xff]
    %v3532 = vld [vmem:[#allocation6 + $0x210] sm:$0xff]
    %v3533 = vld [vmem:[#allocation6 + $0x218] sm:$0xff]
    %v3534 = vld [vmem:[#allocation6 + $0x220] sm:$0xff]
    %v3535 = vld [vmem:[#allocation6 + $0x228] sm:$0xff]
    %v3536 = vld [vmem:[#allocation6 + $0x230] sm:$0xff]
    %v3537 = vld [vmem:[#allocation6 + $0x238] sm:$0xff]
    %v3538 = vld [vmem:[#allocation6 + $0x240] sm:$0xff]
    %v3539 = vld [vmem:[#allocation6 + $0x248] sm:$0xff]
    %v3540 = vld [vmem:[#allocation6 + $0x250] sm:$0xff]
    %v3541 = vld [vmem:[#allocation6 + $0x258] sm:$0xff]
    %v3542 = vld [vmem:[#allocation6 + $0x260] sm:$0xff]
    %v3543 = vld [vmem:[#allocation6 + $0x268] sm:$0xff]
    %v3544 = vld [vmem:[#allocation6 + $0x270] sm:$0xff]
    %v3545 = vld [vmem:[#allocation6 + $0x278] sm:$0xff]
    %v3546 = vld [vmem:[#allocation6 + $0x280] sm:$0xff]
    %v3547 = vld [vmem:[#allocation6 + $0x288] sm:$0xff]
    %v3548 = vld [vmem:[#allocation6 + $0x290] sm:$0xff]
    %v3549 = vld [vmem:[#allocation6 + $0x298] sm:$0xff]
    %v3550 = vld [vmem:[#allocation6 + $0x2a0] sm:$0xff]
    %v3551 = vld [vmem:[#allocation6 + $0x2a8] sm:$0xff]
    %v3552 = vld [vmem:[#allocation6 + $0x2b0] sm:$0xff]
    %v3553 = vld [vmem:[#allocation6 + $0x2b8] sm:$0xff]
    %v3554 = vld [vmem:[#allocation6 + $0x2c0] sm:$0xff]
    %v3555 = vld [vmem:[#allocation6 + $0x2c8] sm:$0xff]
    %v3556 = vld [vmem:[#allocation6 + $0x2d0] sm:$0xff]
    %v3557 = vld [vmem:[#allocation6 + $0x2d8] sm:$0xff]
    %v3558 = vld [vmem:[#allocation6 + $0x2e0] sm:$0xff]
    %v3559 = vld [vmem:[#allocation6 + $0x2e8] sm:$0xff]
    %v3560 = vld [vmem:[#allocation6 + $0x2f0] sm:$0xff]
    %v3561 = vld [vmem:[#allocation6 + $0x2f8] sm:$0xff]
    %v3562 = vld [vmem:[#allocation6 + $0x300] sm:$0xff]
    %v3563 = vld [vmem:[#allocation6 + $0x308] sm:$0xff]
    %v3564 = vld [vmem:[#allocation6 + $0x310] sm:$0xff]
    %v3565 = vld [vmem:[#allocation6 + $0x318] sm:$0xff]
    %v3566 = vld [vmem:[#allocation6 + $0x320] sm:$0xff]
    %v3567 = vld [vmem:[#allocation6 + $0x328] sm:$0xff]
    %v3568 = vld [vmem:[#allocation6 + $0x330] sm:$0xff]
    %v3569 = vld [vmem:[#allocation6 + $0x338] sm:$0xff]
    %v3570 = vld [vmem:[#allocation6 + $0x340] sm:$0xff]
    %v3571 = vld [vmem:[#allocation6 + $0x348] sm:$0xff]
    %v3572 = vld [vmem:[#allocation6 + $0x350] sm:$0xff]
    %v3573 = vld [vmem:[#allocation6 + $0x358] sm:$0xff]
    %v3574 = vld [vmem:[#allocation6 + $0x360] sm:$0xff]
    %v3575 = vld [vmem:[#allocation6 + $0x368] sm:$0xff]
    %v3576 = vld [vmem:[#allocation6 + $0x370] sm:$0xff]
    %v3577 = vld [vmem:[#allocation6 + $0x378] sm:$0xff]
    %v3578 = vld [vmem:[#allocation6 + $0x380] sm:$0xff]
    %v3579 = vld [vmem:[#allocation6 + $0x388] sm:$0xff]
    %v3580 = vld [vmem:[#allocation6 + $0x390] sm:$0xff]
    %v3581 = vld [vmem:[#allocation6 + $0x398] sm:$0xff]
    %v3582 = vld [vmem:[#allocation6 + $0x3a0] sm:$0xff]
    %v3583 = vld [vmem:[#allocation6 + $0x3a8] sm:$0xff]
    %v3584 = vld [vmem:[#allocation6 + $0x3b0] sm:$0xff]
    %v3585 = vld [vmem:[#allocation6 + $0x3b8] sm:$0xff]
    %v3586 = vld [vmem:[#allocation6 + $0x3c0] sm:$0xff]
    %v3587 = vld [vmem:[#allocation6 + $0x3c8] sm:$0xff]
    %v3588 = vld [vmem:[#allocation6 + $0x3d0] sm:$0xff]
    %v3589 = vld [vmem:[#allocation6 + $0x3d8] sm:$0xff]
    %v3590 = vld [vmem:[#allocation6 + $0x3e0] sm:$0xff]
    %v3591 = vld [vmem:[#allocation6 + $0x3e8] sm:$0xff]
    %v3592 = vld [vmem:[#allocation6 + $0x3f0] sm:$0xff]
    %v3593 = vld [vmem:[#allocation6 + $0x3f8] sm:$0xff]
    %v3594 = vld [vmem:[%s12] sm:$0x3]
    %v3596 = vlaneseq
    %v3597 = vshrl.u32 %v3596, 7
    %v3598 = vsub.s32 0, %v3597
    %v3599 = vrot.slane %v3594, %v3598
    %v3600 = vlaneseq
    %v3601 = vshrl.u32 %v3600, 7
    %v3602 = vsub.s32 1, %v3601
    %v3603 = vrot.slane %v3594, %v3602
    %3606 = vmatprep.subr.mxu0 %v3497
    %3607 = vmatpush1.msra.mxu0 %v3496
    %3608 = vmatprep.subr.mxu0 %v3495
    %3609 = vmatpush1.msra.mxu0 %v3494
    %3610 = vmatprep.subr.mxu0 %v3493
    %3611 = vmatpush1.msra.mxu0 %v3492
    %3612 = vmatprep.subr.mxu0 %v3491
    %3613 = vmatpush1.msra.mxu0 %v3490
    %3614 = vmatprep.subr.mxu0 %v3489
    %3615 = vmatpush1.msra.mxu0 %v3488
    %3616 = vmatprep.subr.mxu0 %v3487
    %3617 = vmatpush1.msra.mxu0 %v3486
    %3618 = vmatprep.subr.mxu0 %v3485
    %3619 = vmatpush1.msra.mxu0 %v3484
    %3620 = vmatprep.subr.mxu0 %v3483
    %3621 = vmatpush1.msra.mxu0 %v3482
    %3622 = vmatprep.subr.mxu0 %v3481
    %3623 = vmatpush1.msra.mxu0 %v3480
    %3624 = vmatprep.subr.mxu0 %v3479
    %3625 = vmatpush1.msra.mxu0 %v3478
    %3626 = vmatprep.subr.mxu0 %v3477
    %3627 = vmatpush1.msra.mxu0 %v3476
    %3628 = vmatprep.subr.mxu0 %v3475
    %3629 = vmatpush1.msra.mxu0 %v3474
    %3630 = vmatprep.subr.mxu0 %v3473
    %3631 = vmatpush1.msra.mxu0 %v3472
    %3632 = vmatprep.subr.mxu0 %v3471
    %3633 = vmatpush1.msra.mxu0 %v3470
    %3634 = vmatprep.subr.mxu0 %v3469
    %3635 = vmatpush1.msra.mxu0 %v3468
    %3636 = vmatprep.subr.mxu0 %v3467
    %3637 = vmatpush1.msra.mxu0 %v3466
    %3638 = vmatprep.subr.mxu0 %v3529
    %3639 = vmatpush2.msra.mxu0 %v3528
    %3640 = vmatprep.subr.mxu0 %v3527
    %3641 = vmatpush2.msra.mxu0 %v3526
    %3642 = vmatprep.subr.mxu0 %v3525
    %3643 = vmatpush2.msra.mxu0 %v3524
    %3644 = vmatprep.subr.mxu0 %v3523
    %3645 = vmatpush2.msra.mxu0 %v3522
    %3646 = vmatprep.subr.mxu0 %v3521
    %3647 = vmatpush2.msra.mxu0 %v3520
    %3648 = vmatprep.subr.mxu0 %v3519
    %3649 = vmatpush2.msra.mxu0 %v3518
    %3650 = vmatprep.subr.mxu0 %v3517
    %3651 = vmatpush2.msra.mxu0 %v3516
    %3652 = vmatprep.subr.mxu0 %v3515
    %3653 = vmatpush2.msra.mxu0 %v3514
    %3654 = vmatprep.subr.mxu0 %v3513
    %3655 = vmatpush2.msra.mxu0 %v3512
    %3656 = vmatprep.subr.mxu0 %v3511
    %3657 = vmatpush2.msra.mxu0 %v3510
    %3658 = vmatprep.subr.mxu0 %v3509
    %3659 = vmatpush2.msra.mxu0 %v3508
    %3660 = vmatprep.subr.mxu0 %v3507
    %3661 = vmatpush2.msra.mxu0 %v3506
    %3662 = vmatprep.subr.mxu0 %v3505
    %3663 = vmatpush2.msra.mxu0 %v3504
    %3664 = vmatprep.subr.mxu0 %v3503
    %3665 = vmatpush2.msra.mxu0 %v3502
    %3666 = vmatprep.subr.mxu0 %v3501
    %3667 = vmatpush2.msra.mxu0 %v3500
    %3668 = vmatprep.subr.mxu0 %v3499
    %3669 = vmatpush2.msra.mxu0 %v3498
    %3670 = vmatprep.mubr.f32.mxu0 %v3459
    %3671 = vmatmul.mubr.f32.gmra.mxu0 %v3456
    %v3672 = vpop.f32.mrf.mxu0
    %v3673 = vadd.f32 %v3599, %v3672
    %v3674 = vpop.f32.mrf.mxu0
    %v3675 = vadd.f32 %v3603, %v3674
    %3676 = vdwg.mxu0
    %3677 = vmatprep.subr.mxu0 %v3561
    %3678 = vmatpush1.msra.mxu0 %v3560
    %3679 = vmatprep.subr.mxu0 %v3559
    %3680 = vmatpush1.msra.mxu0 %v3558
    %3681 = vmatprep.subr.mxu0 %v3557
    %3682 = vmatpush1.msra.mxu0 %v3556
    %3683 = vmatprep.subr.mxu0 %v3555
    %3684 = vmatpush1.msra.mxu0 %v3554
    %3685 = vmatprep.subr.mxu0 %v3553
    %3686 = vmatpush1.msra.mxu0 %v3552
    %3687 = vmatprep.subr.mxu0 %v3551
    %3688 = vmatpush1.msra.mxu0 %v3550
    %3689 = vmatprep.subr.mxu0 %v3549
    %3690 = vmatpush1.msra.mxu0 %v3548
    %3691 = vmatprep.subr.mxu0 %v3547
    %3692 = vmatpush1.msra.mxu0 %v3546
    %3693 = vmatprep.subr.mxu0 %v3545
    %3694 = vmatpush1.msra.mxu0 %v3544
    %3695 = vmatprep.subr.mxu0 %v3543
    %3696 = vmatpush1.msra.mxu0 %v3542
    %3697 = vmatprep.subr.mxu0 %v3541
    %3698 = vmatpush1.msra.mxu0 %v3540
    %3699 = vmatprep.subr.mxu0 %v3539
    %3700 = vmatpush1.msra.mxu0 %v3538
    %3701 = vmatprep.subr.mxu0 %v3537
    %3702 = vmatpush1.msra.mxu0 %v3536
    %3703 = vmatprep.subr.mxu0 %v3535
    %3704 = vmatpush1.msra.mxu0 %v3534
    %3705 = vmatprep.subr.mxu0 %v3533
    %3706 = vmatpush1.msra.mxu0 %v3532
    %3707 = vmatprep.subr.mxu0 %v3531
    %3708 = vmatpush1.msra.mxu0 %v3530
    %3709 = vmatprep.subr.mxu0 %v3593
    %3710 = vmatpush2.msra.mxu0 %v3592
    %3711 = vmatprep.subr.mxu0 %v3591
    %3712 = vmatpush2.msra.mxu0 %v3590
    %3713 = vmatprep.subr.mxu0 %v3589
    %3714 = vmatpush2.msra.mxu0 %v3588
    %3715 = vmatprep.subr.mxu0 %v3587
    %3716 = vmatpush2.msra.mxu0 %v3586
    %3717 = vmatprep.subr.mxu0 %v3585
    %3718 = vmatpush2.msra.mxu0 %v3584
    %3719 = vmatprep.subr.mxu0 %v3583
    %3720 = vmatpush2.msra.mxu0 %v3582
    %3721 = vmatprep.subr.mxu0 %v3581
    %3722 = vmatpush2.msra.mxu0 %v3580
    %3723 = vmatprep.subr.mxu0 %v3579
    %3724 = vmatpush2.msra.mxu0 %v3578
    %3725 = vmatprep.subr.mxu0 %v3577
    %3726 = vmatpush2.msra.mxu0 %v3576
    %3727 = vmatprep.subr.mxu0 %v3575
    %3728 = vmatpush2.msra.mxu0 %v3574
    %3729 = vmatprep.subr.mxu0 %v3573
    %3730 = vmatpush2.msra.mxu0 %v3572
    %3731 = vmatprep.subr.mxu0 %v3571
    %3732 = vmatpush2.msra.mxu0 %v3570
    %3733 = vmatprep.subr.mxu0 %v3569
    %3734 = vmatpush2.msra.mxu0 %v3568
    %3735 = vmatprep.subr.mxu0 %v3567
    %3736 = vmatpush2.msra.mxu0 %v3566
    %3737 = vmatprep.subr.mxu0 %v3565
    %3738 = vmatpush2.msra.mxu0 %v3564
    %3739 = vmatprep.subr.mxu0 %v3563
    %3740 = vmatpush2.msra.mxu0 %v3562
    %3741 = vmatprep.mubr.f32.mxu0 %v3465
    %3742 = vmatmul.mubr.f32.gmra.mxu0 %v3462
    %v3743 = vpop.f32.mrf.mxu0
    %v3744 = vadd.f32 %v3673, %v3743
    %v3745 = vpop.f32.mrf.mxu0
    %v3746 = vadd.f32 %v3675, %v3745
    %3747 = vdwg.mxu0
    %v3748 = vmax.f32 %v3744, 0.0
    %v3749 = vmax.f32 %v3746, 0.0
    %v3750 = vld [vmem:[%s13] sm:$0xff]
    %v3751 = vld [vmem:[%s13 + $0x8] sm:$0xff]
    %v3752 = vld [vmem:[%s13 + $0x10] sm:$0xff]
    %v3753 = vld [vmem:[%s13 + $0x18] sm:$0xff]
    %v3754 = vld [vmem:[%s13 + $0x20] sm:$0xff]
    %v3755 = vld [vmem:[%s13 + $0x28] sm:$0xff]
    %v3756 = vld [vmem:[%s13 + $0x30] sm:$0xff]
    %v3757 = vld [vmem:[%s13 + $0x38] sm:$0xff]
    %v3758 = vld [vmem:[%s13 + $0x40] sm:$0xff]
    %v3759 = vld [vmem:[%s13 + $0x48] sm:$0xff]
    %v3760 = vld [vmem:[%s13 + $0x50] sm:$0xff]
    %v3761 = vld [vmem:[%s13 + $0x58] sm:$0xff]
    %v3762 = vld [vmem:[%s13 + $0x60] sm:$0xff]
    %v3763 = vld [vmem:[%s13 + $0x68] sm:$0xff]
    %v3764 = vld [vmem:[%s13 + $0x70] sm:$0xff]
    %v3765 = vld [vmem:[%s13 + $0x78] sm:$0xff]
    %v3766 = vld [vmem:[%s13 + $0x80] sm:$0xff]
    %v3767 = vld [vmem:[%s13 + $0x88] sm:$0xff]
    %v3768 = vld [vmem:[%s13 + $0x90] sm:$0xff]
    %v3769 = vld [vmem:[%s13 + $0x98] sm:$0xff]
    %v3770 = vld [vmem:[%s13 + $0xa0] sm:$0xff]
    %v3771 = vld [vmem:[%s13 + $0xa8] sm:$0xff]
    %v3772 = vld [vmem:[%s13 + $0xb0] sm:$0xff]
    %v3773 = vld [vmem:[%s13 + $0xb8] sm:$0xff]
    %v3774 = vld [vmem:[%s13 + $0xc0] sm:$0xff]
    %v3775 = vld [vmem:[%s13 + $0xc8] sm:$0xff]
    %v3776 = vld [vmem:[%s13 + $0xd0] sm:$0xff]
    %v3777 = vld [vmem:[%s13 + $0xd8] sm:$0xff]
    %v3778 = vld [vmem:[%s13 + $0xe0] sm:$0xff]
    %v3779 = vld [vmem:[%s13 + $0xe8] sm:$0xff]
    %v3780 = vld [vmem:[%s13 + $0xf0] sm:$0xff]
    %v3781 = vld [vmem:[%s13 + $0xf8] sm:$0xff]
    %v3782 = vld [vmem:[%s14] sm:$0x1]
    %v3784 = vlaneseq
    %v3785 = vshrl.u32 %v3784, 7
    %v3786 = vsub.s32 0, %v3785
    %v3787 = vrot.slane %v3782, %v3786
    %3789 = vmatprep.subr.mxu0 0.0
    %3790 = vmatpush1.msra.mxu0 %v3765
    %3791 = vmatprep.subr.mxu0 0.0
    %3792 = vmatpush1.msra.mxu0 %v3764
    %3793 = vmatprep.subr.mxu0 0.0
    %3794 = vmatpush1.msra.mxu0 %v3763
    %3795 = vmatprep.subr.mxu0 0.0
    %3796 = vmatpush1.msra.mxu0 %v3762
    %3797 = vmatprep.subr.mxu0 0.0
    %3798 = vmatpush1.msra.mxu0 %v3761
    %3799 = vmatprep.subr.mxu0 0.0
    %3800 = vmatpush1.msra.mxu0 %v3760
    %3801 = vmatprep.subr.mxu0 0.0
    %3802 = vmatpush1.msra.mxu0 %v3759
    %3803 = vmatprep.subr.mxu0 0.0
    %3804 = vmatpush1.msra.mxu0 %v3758
    %3805 = vmatprep.subr.mxu0 0.0
    %3806 = vmatpush1.msra.mxu0 %v3757
    %3807 = vmatprep.subr.mxu0 0.0
    %3808 = vmatpush1.msra.mxu0 %v3756
    %3809 = vmatprep.subr.mxu0 0.0
    %3810 = vmatpush1.msra.mxu0 %v3755
    %3811 = vmatprep.subr.mxu0 0.0
    %3812 = vmatpush1.msra.mxu0 %v3754
    %3813 = vmatprep.subr.mxu0 0.0
    %3814 = vmatpush1.msra.mxu0 %v3753
    %3815 = vmatprep.subr.mxu0 0.0
    %3816 = vmatpush1.msra.mxu0 %v3752
    %3817 = vmatprep.subr.mxu0 0.0
    %3818 = vmatpush1.msra.mxu0 %v3751
    %3819 = vmatprep.subr.mxu0 0.0
    %3820 = vmatpush1.msra.mxu0 %v3750
    %3821 = vmatprep.subr.mxu0 0.0
    %3822 = vmatpush2.msra.mxu0 %v3781
    %3823 = vmatprep.subr.mxu0 0.0
    %3824 = vmatpush2.msra.mxu0 %v3780
    %3825 = vmatprep.subr.mxu0 0.0
    %3826 = vmatpush2.msra.mxu0 %v3779
    %3827 = vmatprep.subr.mxu0 0.0
    %3828 = vmatpush2.msra.mxu0 %v3778
    %3829 = vmatprep.subr.mxu0 0.0
    %3830 = vmatpush2.msra.mxu0 %v3777
    %3831 = vmatprep.subr.mxu0 0.0
    %3832 = vmatpush2.msra.mxu0 %v3776
    %3833 = vmatprep.subr.mxu0 0.0
    %3834 = vmatpush2.msra.mxu0 %v3775
    %3835 = vmatprep.subr.mxu0 0.0
    %3836 = vmatpush2.msra.mxu0 %v3774
    %3837 = vmatprep.subr.mxu0 0.0
    %3838 = vmatpush2.msra.mxu0 %v3773
    %3839 = vmatprep.subr.mxu0 0.0
    %3840 = vmatpush2.msra.mxu0 %v3772
    %3841 = vmatprep.subr.mxu0 0.0
    %3842 = vmatpush2.msra.mxu0 %v3771
    %3843 = vmatprep.subr.mxu0 0.0
    %3844 = vmatpush2.msra.mxu0 %v3770
    %3845 = vmatprep.subr.mxu0 0.0
    %3846 = vmatpush2.msra.mxu0 %v3769
    %3847 = vmatprep.subr.mxu0 0.0
    %3848 = vmatpush2.msra.mxu0 %v3768
    %3849 = vmatprep.subr.mxu0 0.0
    %3850 = vmatpush2.msra.mxu0 %v3767
    %3851 = vmatprep.subr.mxu0 0.0
    %3852 = vmatpush2.msra.mxu0 %v3766
    %3853 = vmatprep.mubr.f32.mxu0 %v3749
    %3854 = vmatmul.mubr.f32.gmra.mxu0 %v3748
    %v3855 = vpop.f32.mrf.mxu0
    %v3856 = vadd.f32 %v3787, %v3855
    %v3857 = vpop.f32.mrf.mxu0
    %3858 = vdwg.mxu0
    %vm3859 = vcmask 9216
    %3860 = vst.msk [vmem:[#allocation9] sm:$0x3] %vm3859, %v3856
    // Predicated region
    $region66: #{tpu_custom_call.1} parent=1 // pred_check
      _
    $region67: #{tpu_custom_call.1} parent=1 // pred_check_branch
      %3862 = sbr.rel (0) target = $region69
    $region68: #{tpu_custom_call.1} parent=1 // pred_region
      %s3864 = ssub.s32 32, 32
      %3865 = vsyncadd [#allocation8], %s3864
      %s3867 = sshll.u32 [#allocation9], 4
      %s3868 = int_to_ptr.vmem [resolvable:$true] %s3867
      %3870 = dma.vmem_to_hbm [thread:$0]  %s3868, 32, %s15, [#allocation8]
    $region69: #{tpu_custom_call.1} parent=1 // pred_fallthru
      _
    // Predicated region
    $region70: #{tpu_custom_call.1} parent=1 // pred_check
      _
    $region71: #{tpu_custom_call.1} parent=1 // pred_check_branch
      %3872 = sbr.rel (0) target = $region73
    $region72: #{tpu_custom_call.1} parent=1 // pred_region
      %3873 = dma.done [#allocation8], 32
    $region73: #{tpu_custom_call.1} parent=1 // pred_fallthru
      _
    %3874 = vsyncpa [#allocation7], 1
    %3875 = vsyncpa [#allocation8], 1

</llo_original>
